<compile_context>
chip_gen: v5e
topology: v5e:2x2
jax: 0.10.0
libtpu: 0.0.40
codegen_flags: <defaults>
</compile_context>

<pallas_src>
import functools

import numpy as np
import jax
import jax.numpy as jnp
from jax import lax
from jax.experimental import pallas as pl
from jax.experimental.pallas import tpu as pltpu

EPS = 1e-5


def deconv_norm_kernel(x_ref, w_ref, b_ref, g_ref, bt_ref, o_ref, col_ref, *, K):
    """One batch element.

    x_ref  : (1, Hp, Wp, Cin)    zero-dilated + padded input (NHWC)
    w_ref  : (Cout, K*K*Cin)     flipped / channel-transposed ConvTranspose2d weight
    b_ref  : (Cout, 1)           conv bias
    g_ref  : (Cout, 1)           InstanceNorm gamma
    bt_ref : (Cout, 1)           InstanceNorm beta
    o_ref  : (1, Cout, Ho*Wo)    output, flat spatial in lanes (lane-dense)
    col_ref: (Ho*Wo, K*K*Cin)    VMEM im2col scratch
    """
    Hp, Wp, Cin = x_ref.shape[1], x_ref.shape[2], x_ref.shape[3]
    Ho, Wo = Hp - K + 1, Wp - K + 1
    HW = Ho * Wo

    xv = x_ref[0]                                            # (Hp, Wp, Cin)

    # ---- im2col: build the patch matrix once (single fused matmul below) ----
    # col[oh*Wo+ow, (kh*K+kw)*Cin + ci] = x_pad[oh+kh, ow+kw, ci]
    for kh in range(K):
        for kw in range(K):
            t = (kh * K + kw) * Cin
            col_ref[:, t:t + Cin] = (
                xv[kh:kh + Ho, kw:kw + Wo, :].reshape(HW, Cin))

    # ---- one MXU push, contraction depth K*K*Cin, f32 accumulation ----
    # acc[co, j] = sum_t w[co, t] * col[j, t]   (contract minor dims of both operands)
    acc = lax.dot_general(
        w_ref[...], col_ref[...],
        dimension_numbers=(((1,), (1,)), ((), ())),
        preferred_element_type=jnp.float32)                  # (Cout, Ho*Wo)

    acc = acc + b_ref[...]                                   # (Cout,1) -> lane broadcast

    # ---- InstanceNorm2d (affine): per-channel stats over the spatial (lane) axis ----
    mean = jnp.mean(acc, axis=1, keepdims=True)              # (Cout, 1)
    cen = acc - mean
    var = jnp.mean(cen * cen, axis=1, keepdims=True)         # biased variance
    scale = g_ref[...] * lax.rsqrt(var + EPS)                # fused per-channel scale
    o_ref[0] = (cen * scale + bt_ref[...]).astype(o_ref.dtype)


def deconv_layer(x, w_t, bias, gamma, beta, *, stride, output_padding,
                 compute_dtype=jnp.float32):
    """x: (N, Cin, H, W) NCHW.  w_t: (Cin, Cout, K, K) PyTorch ConvTranspose2d weight.

    Returns (N, Cout, Ho, Wo) float32 (NCHW), matching the PyTorch module.
    Set compute_dtype=jnp.bfloat16 to run the matmul operands in bf16 (f32 accumulate).
    """
    N, Cin, H, W = x.shape
    _, Cout, K, _ = w_t.shape
    p = K // 2
    s = stride
    op = output_padding
    pad = K - 1 - p

    Hu = (H - 1) * s + 1 + op
    Wu = (W - 1) * s + 1 + op
    Hp, Wp = Hu + 2 * pad, Wu + 2 * pad
    Ho, Wo = Hp - K + 1, Wp - K + 1          # == (H-1)*s - 2*p + K + op

    # Dilation + padding + NCHW->NHWC fused into ONE scatter into a zero buffer
    # (no separate pad pass, no separate transpose pass over the dilated tensor).
    x_nhwc = jnp.zeros((N, Hp, Wp, Cin), compute_dtype)
    x_nhwc = x_nhwc.at[:, pad:pad + (H - 1) * s + 1:s,
                          pad:pad + (W - 1) * s + 1:s, :].set(
        jnp.transpose(x, (0, 2, 3, 1)).astype(compute_dtype))

    # ConvTranspose2d weight -> direct-conv matrix:
    #   w_mat[co, (kh*K+kw)*Cin + ci] = w_t[ci, co, K-1-kh, K-1-kw]
    w_mat = jnp.transpose(w_t[:, :, ::-1, ::-1], (1, 2, 3, 0)) \
               .reshape(Cout, K * K * Cin).astype(compute_dtype)

    b2 = bias.reshape(Cout, 1).astype(jnp.float32)
    g2 = gamma.reshape(Cout, 1).astype(jnp.float32)
    bt2 = beta.reshape(Cout, 1).astype(jnp.float32)

    kernel = functools.partial(deconv_norm_kernel, K=K)

    out_flat = pl.pallas_call(
        kernel,
        out_shape=jax.ShapeDtypeStruct((N, Cout, Ho * Wo), jnp.float32),
        grid_spec=pltpu.PrefetchScalarGridSpec(
            num_scalar_prefetch=0,
            grid=(N,),
            in_specs=[
                pl.BlockSpec((1, Hp, Wp, Cin), lambda n: (n, 0, 0, 0)),
                pl.BlockSpec((Cout, K * K * Cin), lambda n: (0, 0)),
                pl.BlockSpec((Cout, 1), lambda n: (0, 0)),
                pl.BlockSpec((Cout, 1), lambda n: (0, 0)),
                pl.BlockSpec((Cout, 1), lambda n: (0, 0)),
            ],
            out_specs=pl.BlockSpec((1, Cout, Ho * Wo), lambda n: (n, 0, 0)),
            scratch_shapes=[pltpu.VMEM((Ho * Wo, K * K * Cin), compute_dtype)],
        ),
        compiler_params=pltpu.CompilerParams(
            dimension_semantics=("parallel",)),
    )(x_nhwc, w_mat, b2, g2, bt2)

    # Lane-dense flat output -> NCHW with a contiguous (free) reshape; no transpose.
    return out_flat.reshape(N, Cout, Ho, Wo)


def _reference(x, w_t, bias, gamma, beta, stride, output_padding):
    """Plain-numpy ConvTranspose2d + InstanceNorm2d reference (PyTorch semantics)."""
    x = np.asarray(x, np.float32)
    w_t = np.asarray(w_t, np.float32)
    N, Cin, H, W = x.shape
    _, Cout, K, _ = w_t.shape
    p = K // 2
    s = stride
    Ho = (H - 1) * s - 2 * p + K + output_padding
    Wo = (W - 1) * s - 2 * p + K + output_padding
    out = np.zeros((N, Cout, Ho, Wo), np.float32)
    for ih in range(H):
        for iw in range(W):
            for kh in range(K):
                for kw in range(K):
                    oh = ih * s - p + kh
                    ow = iw * s - p + kw
                    if 0 <= oh < Ho and 0 <= ow < Wo:
                        out[:, :, oh, ow] += np.einsum(
                            'nc,cd->nd', x[:, :, ih, iw], w_t[:, :, kh, kw])
    out += np.asarray(bias, np.float32)[None, :, None, None]
    mean = out.mean(axis=(2, 3), keepdims=True)
    var = out.var(axis=(2, 3), keepdims=True)
    out = (out - mean) / np.sqrt(var + EPS)
    out = out * np.asarray(gamma)[None, :, None, None] + \
        np.asarray(beta)[None, :, None, None]
    return out


if __name__ == "__main__":
    # Small shapes consistent with a style-transfer upsampling block.
    N, Cin, Cout, H, W = 2, 4, 8, 16, 16
    K, stride, output_padding = 3, 2, 1

    key = jax.random.PRNGKey(0)
    kx, kw, kb, kg, kbt = jax.random.split(key, 5)
    x = jax.random.normal(kx, (N, Cin, H, W), jnp.float32)
    # ConvTranspose2d weight shape: (in_channels, out_channels, K, K)
    w_t = jax.random.normal(kw, (Cin, Cout, K, K), jnp.float32) * 0.1
    bias = jax.random.normal(kb, (Cout,), jnp.float32) * 0.1
    gamma = 1.0 + 0.1 * jax.random.normal(kg, (Cout,), jnp.float32)
    beta = 0.1 * jax.random.normal(kbt, (Cout,), jnp.float32)

    out = deconv_layer(x, w_t, bias, gamma, beta,
                       stride=stride, output_padding=output_padding)
    out = jax.block_until_ready(out)

    ref = _reference(x, w_t, bias, gamma, beta, stride, output_padding)
    np.testing.assert_allclose(np.asarray(out), ref, rtol=1e-4, atol=1e-4)

    print("KERNEL_OK")
</pallas_src>

<mosaic_0001>
module attributes {stable_mosaic.version = 11 : i64} {
  func.func @deconv_norm_kernel(%arg0: i32, %arg1: memref<1x34x34x4xf32, #tpu.memory_space<vmem>>, %arg2: memref<8x36xf32, #tpu.memory_space<vmem>>, %arg3: memref<8x1xf32, #tpu.memory_space<vmem>>, %arg4: memref<8x1xf32, #tpu.memory_space<vmem>>, %arg5: memref<8x1xf32, #tpu.memory_space<vmem>>, %arg6: memref<1x8x1024xf32, #tpu.memory_space<vmem>>, %arg7: memref<1024x36xf32, #tpu.memory_space<vmem>>) attributes {dimension_semantics = [#tpu.dimension_semantics<parallel>], iteration_bounds = array<i64: 2>, scalar_prefetch = 0 : i64, scratch_operands = 1 : i64, tpu.core_type = #tpu.core_type<tc>, window_params = [{transform_indices = @transform_0, window_bounds = array<i64: 1, 34, 34, 4>}, {pipeline_mode = #tpu.pipeline_mode<synchronous>, transform_indices = @transform_1, window_bounds = array<i64: 8, 36>}, {pipeline_mode = #tpu.pipeline_mode<synchronous>, transform_indices = @transform_2, window_bounds = array<i64: 8, 1>}, {pipeline_mode = #tpu.pipeline_mode<synchronous>, transform_indices = @transform_3, window_bounds = array<i64: 8, 1>}, {pipeline_mode = #tpu.pipeline_mode<synchronous>, transform_indices = @transform_4, window_bounds = array<i64: 8, 1>}, {transform_indices = @transform_5, window_bounds = array<i64: 1, 8, 1024>}]} {
    %c0 = arith.constant 0 : index
    %c0_0 = arith.constant 0 : index
    %c0_1 = arith.constant 0 : index
    %c0_2 = arith.constant 0 : index
    %0 = vector.load %arg1[%c0, %c0_0, %c0_1, %c0_2] : memref<1x34x34x4xf32, #tpu.memory_space<vmem>>, vector<1x34x34x4xf32>
    %1 = vector.shape_cast %0 : vector<1x34x34x4xf32> to vector<34x34x4xf32>
    %2 = vector.extract_strided_slice %1 {offsets = [0, 0, 0], sizes = [32, 32, 4], strides = [1, 1, 1]} : vector<34x34x4xf32> to vector<32x32x4xf32>
    %3 = vector.shape_cast %2 : vector<32x32x4xf32> to vector<1024x4xf32>
    %c0_3 = arith.constant 0 : index
    %c0_4 = arith.constant 0 : index
    %4 = vector.load %arg7[%c0_3, %c0_4] : memref<1024x36xf32, #tpu.memory_space<vmem>>, vector<1024x4xf32>
    tpu.vector_store %arg7[%c0_3, %c0_4], %3 {strides = array<i32>} : memref<1024x36xf32, #tpu.memory_space<vmem>>, vector<1024x4xf32>,
    %5 = vector.extract_strided_slice %1 {offsets = [0, 1, 0], sizes = [32, 32, 4], strides = [1, 1, 1]} : vector<34x34x4xf32> to vector<32x32x4xf32>
    %6 = vector.shape_cast %5 : vector<32x32x4xf32> to vector<1024x4xf32>
    %c0_5 = arith.constant 0 : index
    %c4 = arith.constant 4 : index
    %7 = vector.load %arg7[%c0_5, %c4] : memref<1024x36xf32, #tpu.memory_space<vmem>>, vector<1024x4xf32>
    tpu.vector_store %arg7[%c0_5, %c4], %6 {strides = array<i32>} : memref<1024x36xf32, #tpu.memory_space<vmem>>, vector<1024x4xf32>,
    %8 = vector.extract_strided_slice %1 {offsets = [0, 2, 0], sizes = [32, 32, 4], strides = [1, 1, 1]} : vector<34x34x4xf32> to vector<32x32x4xf32>
    %9 = vector.shape_cast %8 : vector<32x32x4xf32> to vector<1024x4xf32>
    %c0_6 = arith.constant 0 : index
    %c8 = arith.constant 8 : index
    %10 = vector.load %arg7[%c0_6, %c8] : memref<1024x36xf32, #tpu.memory_space<vmem>>, vector<1024x4xf32>
    tpu.vector_store %arg7[%c0_6, %c8], %9 {strides = array<i32>} : memref<1024x36xf32, #tpu.memory_space<vmem>>, vector<1024x4xf32>,
    %11 = vector.extract_strided_slice %1 {offsets = [1, 0, 0], sizes = [32, 32, 4], strides = [1, 1, 1]} : vector<34x34x4xf32> to vector<32x32x4xf32>
    %12 = vector.shape_cast %11 : vector<32x32x4xf32> to vector<1024x4xf32>
    %c0_7 = arith.constant 0 : index
    %c12 = arith.constant 12 : index
    %13 = vector.load %arg7[%c0_7, %c12] : memref<1024x36xf32, #tpu.memory_space<vmem>>, vector<1024x4xf32>
    tpu.vector_store %arg7[%c0_7, %c12], %12 {strides = array<i32>} : memref<1024x36xf32, #tpu.memory_space<vmem>>, vector<1024x4xf32>,
    %14 = vector.extract_strided_slice %1 {offsets = [1, 1, 0], sizes = [32, 32, 4], strides = [1, 1, 1]} : vector<34x34x4xf32> to vector<32x32x4xf32>
    %15 = vector.shape_cast %14 : vector<32x32x4xf32> to vector<1024x4xf32>
    %c0_8 = arith.constant 0 : index
    %c16 = arith.constant 16 : index
    %16 = vector.load %arg7[%c0_8, %c16] : memref<1024x36xf32, #tpu.memory_space<vmem>>, vector<1024x4xf32>
    tpu.vector_store %arg7[%c0_8, %c16], %15 {strides = array<i32>} : memref<1024x36xf32, #tpu.memory_space<vmem>>, vector<1024x4xf32>,
    %17 = vector.extract_strided_slice %1 {offsets = [1, 2, 0], sizes = [32, 32, 4], strides = [1, 1, 1]} : vector<34x34x4xf32> to vector<32x32x4xf32>
    %18 = vector.shape_cast %17 : vector<32x32x4xf32> to vector<1024x4xf32>
    %c0_9 = arith.constant 0 : index
    %c20 = arith.constant 20 : index
    %19 = vector.load %arg7[%c0_9, %c20] : memref<1024x36xf32, #tpu.memory_space<vmem>>, vector<1024x4xf32>
    tpu.vector_store %arg7[%c0_9, %c20], %18 {strides = array<i32>} : memref<1024x36xf32, #tpu.memory_space<vmem>>, vector<1024x4xf32>,
    %20 = vector.extract_strided_slice %1 {offsets = [2, 0, 0], sizes = [32, 32, 4], strides = [1, 1, 1]} : vector<34x34x4xf32> to vector<32x32x4xf32>
    %21 = vector.shape_cast %20 : vector<32x32x4xf32> to vector<1024x4xf32>
    %c0_10 = arith.constant 0 : index
    %c24 = arith.constant 24 : index
    %22 = vector.load %arg7[%c0_10, %c24] : memref<1024x36xf32, #tpu.memory_space<vmem>>, vector<1024x4xf32>
    tpu.vector_store %arg7[%c0_10, %c24], %21 {strides = array<i32>} : memref<1024x36xf32, #tpu.memory_space<vmem>>, vector<1024x4xf32>,
    %23 = vector.extract_strided_slice %1 {offsets = [2, 1, 0], sizes = [32, 32, 4], strides = [1, 1, 1]} : vector<34x34x4xf32> to vector<32x32x4xf32>
    %24 = vector.shape_cast %23 : vector<32x32x4xf32> to vector<1024x4xf32>
    %c0_11 = arith.constant 0 : index
    %c28 = arith.constant 28 : index
    %25 = vector.load %arg7[%c0_11, %c28] : memref<1024x36xf32, #tpu.memory_space<vmem>>, vector<1024x4xf32>
    tpu.vector_store %arg7[%c0_11, %c28], %24 {strides = array<i32>} : memref<1024x36xf32, #tpu.memory_space<vmem>>, vector<1024x4xf32>,
    %26 = vector.extract_strided_slice %1 {offsets = [2, 2, 0], sizes = [32, 32, 4], strides = [1, 1, 1]} : vector<34x34x4xf32> to vector<32x32x4xf32>
    %27 = vector.shape_cast %26 : vector<32x32x4xf32> to vector<1024x4xf32>
    %c0_12 = arith.constant 0 : index
    %c32 = arith.constant 32 : index
    %28 = vector.load %arg7[%c0_12, %c32] : memref<1024x36xf32, #tpu.memory_space<vmem>>, vector<1024x4xf32>
    tpu.vector_store %arg7[%c0_12, %c32], %27 {strides = array<i32>} : memref<1024x36xf32, #tpu.memory_space<vmem>>, vector<1024x4xf32>,
    %c0_13 = arith.constant 0 : index
    %c0_14 = arith.constant 0 : index
    %29 = vector.load %arg2[%c0_13, %c0_14] : memref<8x36xf32, #tpu.memory_space<vmem>>, vector<8x36xf32>
    %c0_15 = arith.constant 0 : index
    %c0_16 = arith.constant 0 : index
    %30 = vector.load %arg7[%c0_15, %c0_16] : memref<1024x36xf32, #tpu.memory_space<vmem>>, vector<1024x36xf32>
    %cst = arith.constant dense<0.000000e+00> : vector<8x1024xf32>
    %31 = tpu.matmul %29, %30, %cst {dimension_numbers = #tpu.dot_dimension_numbers<[1], [1], [0], [0], [0, 0, 1, 0], [], []>} : vector<8x36xf32>, vector<1024x36xf32>, vector<8x1024xf32> -> vector<8x1024xf32>
    %c0_17 = arith.constant 0 : index
    %c0_18 = arith.constant 0 : index
    %32 = vector.load %arg3[%c0_17, %c0_18] : memref<8x1xf32, #tpu.memory_space<vmem>>, vector<8x1xf32>
    %33 = vector.broadcast %32 : vector<8x1xf32> to vector<8x1024xf32>
    %34 = arith.addf %31, %33 : vector<8x1024xf32>
    %cst_19 = arith.constant dense<0.000000e+00> : vector<8xf32>
    %35 = vector.multi_reduction <add>, %34, %cst_19 [1] : vector<8x1024xf32> to vector<8xf32>
    %36 = vector.shape_cast %35 : vector<8xf32> to vector<8x1xf32>
    %cst_20 = arith.constant 1.024000e+03 : f32
    %37 = vector.broadcast %cst_20 : f32 to vector<8x1xf32>
    %38 = arith.divf %36, %37 : vector<8x1xf32>
    %39 = vector.broadcast %38 : vector<8x1xf32> to vector<8x1024xf32>
    %40 = arith.subf %34, %39 : vector<8x1024xf32>
    %41 = arith.mulf %40, %40 : vector<8x1024xf32>
    %cst_21 = arith.constant dense<0.000000e+00> : vector<8xf32>
    %42 = vector.multi_reduction <add>, %41, %cst_21 [1] : vector<8x1024xf32> to vector<8xf32>
    %43 = vector.shape_cast %42 : vector<8xf32> to vector<8x1xf32>
    %cst_22 = arith.constant 1.024000e+03 : f32
    %44 = vector.broadcast %cst_22 : f32 to vector<8x1xf32>
    %45 = arith.divf %43, %44 : vector<8x1xf32>
    %c0_23 = arith.constant 0 : index
    %c0_24 = arith.constant 0 : index
    %46 = vector.load %arg4[%c0_23, %c0_24] : memref<8x1xf32, #tpu.memory_space<vmem>>, vector<8x1xf32>
    %cst_25 = arith.constant 9.99999974E-6 : f32
    %47 = vector.broadcast %cst_25 : f32 to vector<8x1xf32>
    %48 = arith.addf %45, %47 : vector<8x1xf32>
    %49 = math.rsqrt %48 : vector<8x1xf32>
    %50 = arith.mulf %46, %49 : vector<8x1xf32>
    %51 = vector.broadcast %50 : vector<8x1xf32> to vector<8x1024xf32>
    %52 = arith.mulf %40, %51 : vector<8x1024xf32>
    %c0_26 = arith.constant 0 : index
    %c0_27 = arith.constant 0 : index
    %53 = vector.load %arg5[%c0_26, %c0_27] : memref<8x1xf32, #tpu.memory_space<vmem>>, vector<8x1xf32>
    %54 = vector.broadcast %53 : vector<8x1xf32> to vector<8x1024xf32>
    %55 = arith.addf %52, %54 : vector<8x1024xf32>
    %c0_28 = arith.constant 0 : index
    %c0_29 = arith.constant 0 : index
    %c0_30 = arith.constant 0 : index
    %56 = vector.load %arg6[%c0_28, %c0_29, %c0_30] : memref<1x8x1024xf32, #tpu.memory_space<vmem>>, vector<1x8x1024xf32>
    %57 = vector.shape_cast %56 : vector<1x8x1024xf32> to vector<8x1024xf32>
    %58 = vector.shape_cast %55 : vector<8x1024xf32> to vector<1x8x1024xf32>
    tpu.vector_store %arg6[%c0_28, %c0_29, %c0_30], %58 {strides = array<i32>} : memref<1x8x1024xf32, #tpu.memory_space<vmem>>, vector<1x8x1024xf32>,
    return
  }
  func.func @transform_0(%arg0: i32) -> (i32, i32, i32, i32) {
    %c0_i32 = arith.constant 0 : i32
    %c0_i32_0 = arith.constant 0 : i32
    %c0_i32_1 = arith.constant 0 : i32
    %c0_i32_2 = arith.constant 0 : i32
    return %arg0, %c0_i32, %c0_i32_0, %c0_i32_1 : i32, i32, i32, i32
  }
  func.func @transform_1(%arg0: i32) -> (i32, i32) {
    %c0_i32 = arith.constant 0 : i32
    %c0_i32_0 = arith.constant 0 : i32
    %c0_i32_1 = arith.constant 0 : i32
    return %c0_i32, %c0_i32_0 : i32, i32
  }
  func.func @transform_2(%arg0: i32) -> (i32, i32) {
    %c0_i32 = arith.constant 0 : i32
    %c0_i32_0 = arith.constant 0 : i32
    %c0_i32_1 = arith.constant 0 : i32
    return %c0_i32, %c0_i32_0 : i32, i32
  }
  func.func @transform_3(%arg0: i32) -> (i32, i32) {
    %c0_i32 = arith.constant 0 : i32
    %c0_i32_0 = arith.constant 0 : i32
    %c0_i32_1 = arith.constant 0 : i32
    return %c0_i32, %c0_i32_0 : i32, i32
  }
  func.func @transform_4(%arg0: i32) -> (i32, i32) {
    %c0_i32 = arith.constant 0 : i32
    %c0_i32_0 = arith.constant 0 : i32
    %c0_i32_1 = arith.constant 0 : i32
    return %c0_i32, %c0_i32_0 : i32, i32
  }
  func.func @transform_5(%arg0: i32) -> (i32, i32, i32) {
    %c0_i32 = arith.constant 0 : i32
    %c0_i32_0 = arith.constant 0 : i32
    %c0_i32_1 = arith.constant 0 : i32
    return %arg0, %c0_i32, %c0_i32_0 : i32, i32, i32
  }
}

</mosaic_0001>

<llo_original>
// kernel: tpu_custom_call.1
$region0: #{tpu_custom_call.1}
  #allocation0 [shape = 'u32[]', space=smem, size = 0x4, offset = 0x4, fixed_abs, tag = 'smem constant byte address 0x4 - core index']
  #allocation1 [shape = 'u32[72,128]{1,0:T(1,128)}', space=vmem, size = 0x9000, scoped, tag = 'internal scratch']
  #allocation2 [shape = 'f32[1024,36]{1,0:T(8,128)}', space=vmem, size = 0x80000, scoped, tag = 'scratch operand']
  %s0 = inlined_call_operand.vmem [shape: f32[2,34,34,4], index: 0, kind: input, shape index: {}]
  %s1 = inlined_call_operand.vmem [shape: f32[8,36], index: 1, kind: input, shape index: {}]
  %s2 = inlined_call_operand.vmem [shape: f32[8,1], index: 2, kind: input, shape index: {}]
  %s3 = inlined_call_operand.vmem [shape: f32[8,1], index: 3, kind: input, shape index: {}]
  %s4 = inlined_call_operand.vmem [shape: f32[8,1], index: 4, kind: input, shape index: {}]
  %s5 = inlined_call_operand.hbm [shape: f32[2,8,1024], index: 5, kind: output, shape index: {}]
  %s6 = sld [smem:[#allocation0]]
  $region53: #{tpu_custom_call.1} parent=0
    _
  %s8 = ssub.s32 1, %s6
  %s9 = scalar_select 0, %s8, %s6
  $region1: #{tpu_custom_call.1} parent=0
    #allocation3 [shape = 'u8[65536]{0}', space=vmem, size = 0x10000, scoped, tag = 'output window, operand 0']
    #allocation4 [shape = 's32[2]{0}', space=sflag, size = 0x8, scoped, tag = 'scoped memory for tpu_custom_call.1']
    %10 = vsyncpa [#allocation4], 0
    %s11 = scalar_lea.sflag [#allocation4], 1
    %12 = vsyncpa %s11, 0
    loop: start=0, step=1, limit=4
    $region2: #{tpu_custom_call.1} parent=1 // loop_pre_header
      _
    $region3: #{tpu_custom_call.1} parent=1 // loop_header
      %s14 = sphi 0, %s18
      %p15 = scmp.ge.s32.totalorder %s14, 4
      %s24 = sphi 0, %s26
      %s27 = sphi 0, %s24
      %s28 = sphi 0, %s27
      %s44 = sphi 0, %s28
      %s48 = sphi 0, %s48
      %s50 = sphi 0, %s48
      %s51 = sphi 0, %s50
      %s65 = sphi 0, %s51
      %s69 = sphi 0, %s69
      %s71 = sphi 0, %s69
      %s72 = sphi 0, %s71
      %s86 = sphi 0, %s72
      %s90 = sphi 0, %s90
      %s92 = sphi 0, %s90
      %s93 = sphi 0, %s92
      %s107 = sphi 0, %s93
      %s111 = sphi 0, %s111
      %s113 = sphi 0, %s111
      %s114 = sphi 0, %s113
      %s128 = sphi 0, %s114
      %s134 = sphi 0, %s136
      %s137 = sphi 0, %s134
      %s138 = sphi 0, %s137
      %s154 = sphi 0, %s138
    $region4: #{tpu_custom_call.1} parent=1 // loop_header_branch
      %17 = sbr.rel (%p15) target = $region8
    $region5: #{tpu_custom_call.1} parent=1 // loop_body
      %s19 = ssub.s32 %s14, 1
      %s20 = ssub.s32 %s14, 2
      %s21 = sadd.s32 %s14, 1
      %s22 = ssub.s32 %s14, %s21
      %p23 = scmp.eq.s32.totalorder %s22, 0
      %s25 = sadd.s32 %s24, 1
      %s26 = scalar_select %p23, %s24, %s25
      %p29 = pneg %p23
      %p30 = scmp.eq.s32.totalorder %s14, 1
      %p31 = por %p29, %p30
      %p32 = scmp.ne.s32.totalorder %s24, %s27
      %p33 = scmp.eq.s32.totalorder %s14, 0
      %p34 = por %p32, %p33
      %p35 = scmp.ne.s32.totalorder %s24, %s27
      %p36 = scmp.eq.s32.totalorder %s19, 1
      %p37 = por %p35, %p36
      %p38 = scmp.ne.s32.totalorder %s27, %s28
      %p39 = scmp.eq.s32.totalorder %s19, 0
      %p40 = por %p38, %p39
      %p41 = scmp.ne.s32.totalorder %s27, %s28
      %p42 = scmp.eq.s32.totalorder %s20, 1
      %p43 = por %p41, %p42
      %p45 = scmp.ne.s32.totalorder %s28, %s44
      %p46 = scmp.eq.s32.totalorder %s20, 0
      %p47 = por %p45, %p46
      %s49 = sadd.s32 %s48, 1
      %p52 = scmp.eq.s32.totalorder %s14, 1
      %p53 = scmp.ne.s32.totalorder %s48, %s50
      %p54 = scmp.eq.s32.totalorder %s14, 0
      %p55 = por %p53, %p54
      %p56 = scmp.ne.s32.totalorder %s48, %s50
      %p57 = scmp.eq.s32.totalorder %s19, 1
      %p58 = por %p56, %p57
      %p59 = scmp.ne.s32.totalorder %s50, %s51
      %p60 = scmp.eq.s32.totalorder %s19, 0
      %p61 = por %p59, %p60
      %p62 = scmp.ne.s32.totalorder %s50, %s51
      %p63 = scmp.eq.s32.totalorder %s20, 1
      %p64 = por %p62, %p63
      %p66 = scmp.ne.s32.totalorder %s51, %s65
      %p67 = scmp.eq.s32.totalorder %s20, 0
      %p68 = por %p66, %p67
      %s70 = sadd.s32 %s69, 1
      %p73 = scmp.eq.s32.totalorder %s14, 1
      %p74 = scmp.ne.s32.totalorder %s69, %s71
      %p75 = scmp.eq.s32.totalorder %s14, 0
      %p76 = por %p74, %p75
      %p77 = scmp.ne.s32.totalorder %s69, %s71
      %p78 = scmp.eq.s32.totalorder %s19, 1
      %p79 = por %p77, %p78
      %p80 = scmp.ne.s32.totalorder %s71, %s72
      %p81 = scmp.eq.s32.totalorder %s19, 0
      %p82 = por %p80, %p81
      %p83 = scmp.ne.s32.totalorder %s71, %s72
      %p84 = scmp.eq.s32.totalorder %s20, 1
      %p85 = por %p83, %p84
      %p87 = scmp.ne.s32.totalorder %s72, %s86
      %p88 = scmp.eq.s32.totalorder %s20, 0
      %p89 = por %p87, %p88
      %s91 = sadd.s32 %s90, 1
      %p94 = scmp.eq.s32.totalorder %s14, 1
      %p95 = scmp.ne.s32.totalorder %s90, %s92
      %p96 = scmp.eq.s32.totalorder %s14, 0
      %p97 = por %p95, %p96
      %p98 = scmp.ne.s32.totalorder %s90, %s92
      %p99 = scmp.eq.s32.totalorder %s19, 1
      %p100 = por %p98, %p99
      %p101 = scmp.ne.s32.totalorder %s92, %s93
      %p102 = scmp.eq.s32.totalorder %s19, 0
      %p103 = por %p101, %p102
      %p104 = scmp.ne.s32.totalorder %s92, %s93
      %p105 = scmp.eq.s32.totalorder %s20, 1
      %p106 = por %p104, %p105
      %p108 = scmp.ne.s32.totalorder %s93, %s107
      %p109 = scmp.eq.s32.totalorder %s20, 0
      %p110 = por %p108, %p109
      %s112 = sadd.s32 %s111, 1
      %p115 = scmp.eq.s32.totalorder %s14, 1
      %p116 = scmp.ne.s32.totalorder %s111, %s113
      %p117 = scmp.eq.s32.totalorder %s14, 0
      %p118 = por %p116, %p117
      %p119 = scmp.ne.s32.totalorder %s111, %s113
      %p120 = scmp.eq.s32.totalorder %s19, 1
      %p121 = por %p119, %p120
      %p122 = scmp.ne.s32.totalorder %s113, %s114
      %p123 = scmp.eq.s32.totalorder %s19, 0
      %p124 = por %p122, %p123
      %p125 = scmp.ne.s32.totalorder %s113, %s114
      %p126 = scmp.eq.s32.totalorder %s20, 1
      %p127 = por %p125, %p126
      %p129 = scmp.ne.s32.totalorder %s114, %s128
      %p130 = scmp.eq.s32.totalorder %s20, 0
      %p131 = por %p129, %p130
      %s132 = ssub.s32 %s14, %s21
      %p133 = scmp.eq.s32.totalorder %s132, 0
      %s135 = sadd.s32 %s134, 1
      %s136 = scalar_select %p133, %s134, %s135
      %p139 = pneg %p133
      %p140 = scmp.eq.s32.totalorder %s14, 1
      %p141 = por %p139, %p140
      %p142 = scmp.ne.s32.totalorder %s134, %s137
      %p143 = scmp.eq.s32.totalorder %s14, 0
      %p144 = por %p142, %p143
      %p145 = scmp.ne.s32.totalorder %s134, %s137
      %p146 = scmp.eq.s32.totalorder %s19, 1
      %p147 = por %p145, %p146
      %p148 = scmp.ne.s32.totalorder %s137, %s138
      %p149 = scmp.eq.s32.totalorder %s19, 0
      %p150 = por %p148, %p149
      %p151 = scmp.ne.s32.totalorder %s137, %s138
      %p152 = scmp.eq.s32.totalorder %s20, 1
      %p153 = por %p151, %p152
      %p155 = scmp.ne.s32.totalorder %s138, %s154
      %p156 = scmp.eq.s32.totalorder %s20, 0
      %p157 = por %p155, %p156
      %p158 = scmp.le.s32.totalorder 1, %s14
      %p159 = scmp.lt.s32.totalorder %s14, 3
      %p160 = pnand %p158, %p159
      %p161 = pneg %p160
      // Predicated region
      $region9: #{tpu_custom_call.1} parent=5 // pred_check
        _
      $region10: #{tpu_custom_call.1} parent=5 // pred_check_branch
        %163 = sbr.rel (%p160) target = $region12
      $region11: #{tpu_custom_call.1} parent=5 // pred_region
        %s164 = ssub.s32 %s14, 1
        // Predicated region
        $region13: #{tpu_custom_call.1} parent=11 // pred_check
          %p165 = pneg %p61
        $region14: #{tpu_custom_call.1} parent=11 // pred_check_branch
          %167 = sbr.rel (%p165) target = $region16
        $region15: #{tpu_custom_call.1} parent=11 // pred_region
          _
        $region16: #{tpu_custom_call.1} parent=11 // pred_fallthru
          _
        // Predicated region
        $region17: #{tpu_custom_call.1} parent=11 // pred_check
          %p168 = pneg %p82
        $region18: #{tpu_custom_call.1} parent=11 // pred_check_branch
          %170 = sbr.rel (%p168) target = $region20
        $region19: #{tpu_custom_call.1} parent=11 // pred_region
          _
        $region20: #{tpu_custom_call.1} parent=11 // pred_fallthru
          _
        // Predicated region
        $region21: #{tpu_custom_call.1} parent=11 // pred_check
          %p171 = pneg %p103
        $region22: #{tpu_custom_call.1} parent=11 // pred_check_branch
          %173 = sbr.rel (%p171) target = $region24
        $region23: #{tpu_custom_call.1} parent=11 // pred_region
          _
        $region24: #{tpu_custom_call.1} parent=11 // pred_fallthru
          _
        // Predicated region
        $region25: #{tpu_custom_call.1} parent=11 // pred_check
          %p174 = pneg %p124
        $region26: #{tpu_custom_call.1} parent=11 // pred_check_branch
          %176 = sbr.rel (%p174) target = $region28
        $region27: #{tpu_custom_call.1} parent=11 // pred_region
          _
        $region28: #{tpu_custom_call.1} parent=11 // pred_fallthru
          _
      $region12: #{tpu_custom_call.1} parent=5 // pred_fallthru
        _
      %p177 = scmp.lt.s32.totalorder %s14, 2
      // Predicated region
      $region29: #{tpu_custom_call.1} parent=5 // pred_check
        %p178 = pneg %p177
      $region30: #{tpu_custom_call.1} parent=5 // pred_check_branch
        %180 = sbr.rel (%p178) target = $region32
      $region31: #{tpu_custom_call.1} parent=5 // pred_region
        // Predicated region
        $region33: #{tpu_custom_call.1} parent=31 // pred_check
          %p181 = pneg %p34
        $region34: #{tpu_custom_call.1} parent=31 // pred_check_branch
          %183 = sbr.rel (%p181) target = $region36
        $region35: #{tpu_custom_call.1} parent=31 // pred_region
          %p184 = scmp.lt.s32.totalorder %s14, 1
          %s185 = scalar_select %p184, %s14, 1
          %s186 = smul.addr %s185, 170
          %s187 = smul.addr %s186, 8
          %s188 = scalar_lea.vmem %s0, %s187
        $region36: #{tpu_custom_call.1} parent=31 // pred_fallthru
          _
      $region32: #{tpu_custom_call.1} parent=5 // pred_fallthru
        _
      %p189 = scmp.le.s32.totalorder 1, %s14
      %p190 = scmp.lt.s32.totalorder %s14, 3
      %p191 = pnand %p189, %p190
      %p192 = pneg %p191
      // Predicated region
      $region37: #{tpu_custom_call.1} parent=5 // pred_check
        _
      $region38: #{tpu_custom_call.1} parent=5 // pred_check_branch
        %194 = sbr.rel (%p191) target = $region40
      $region39: #{tpu_custom_call.1} parent=5 // pred_region
        %s195 = ssub.s32 %s14, 1
        %p196 = scmp.lt.s32.totalorder %s19, 1
        %s197 = scalar_select %p196, %s19, 1
        %s198 = smul.addr %s197, 170
        %s199 = smul.addr %s198, 8
        %s200 = scalar_lea.vmem %s0, %s199
        %p201 = pneg %p40
        %p202 = pneg %p37
        %p203 = pneg %p61
        %p204 = pneg %p58
        %p205 = pneg %p82
        %p206 = pneg %p79
        %p207 = pneg %p103
        %p208 = pneg %p100
        %p209 = pneg %p124
        %p210 = pneg %p121
        %p211 = pneg %p150
        %p212 = pneg %p147
        %s213 = sand.u32 %s137, 1
        %s214 = scalar_lea.sflag [#allocation4], %s213
        %s215 = sand.u32 %s137, 1
        %s216 = smul.addr %s215, 64
        %s217 = scalar_lea.vmem [#allocation3], %s216
        %p218 = scmp.lt.s32.totalorder %s19, 1
        %s219 = scalar_select %p218, %s19, 1
        %s220 = smul.addr %s219, 170
        %s221 = smul.addr %s220, 8
        %s222 = scalar_lea.vmem %s0, %s221
        %v223 = vld [vmem:[%s222] sm:$0xff]
        %v224 = vld [vmem:[%s222 + $0x8] sm:$0xff]
        %v225 = vld [vmem:[%s222 + $0x10] sm:$0xff]
        %v226 = vld [vmem:[%s222 + $0x18] sm:$0xff]
        %v227 = vld [vmem:[%s222 + $0x20] sm:$0x3]
        %v228 = vld [vmem:[%s222 + $0x28] sm:$0xff]
        %v229 = vld [vmem:[%s222 + $0x30] sm:$0xff]
        %v230 = vld [vmem:[%s222 + $0x38] sm:$0xff]
        %v231 = vld [vmem:[%s222 + $0x40] sm:$0xff]
        %v232 = vld [vmem:[%s222 + $0x48] sm:$0x3]
        %v233 = vld [vmem:[%s222 + $0x50] sm:$0xff]
        %v234 = vld [vmem:[%s222 + $0x58] sm:$0xff]
        %v235 = vld [vmem:[%s222 + $0x60] sm:$0xff]
        %v236 = vld [vmem:[%s222 + $0x68] sm:$0xff]
        %v237 = vld [vmem:[%s222 + $0x70] sm:$0x3]
        %v238 = vld [vmem:[%s222 + $0x78] sm:$0xff]
        %v239 = vld [vmem:[%s222 + $0x80] sm:$0xff]
        %v240 = vld [vmem:[%s222 + $0x88] sm:$0xff]
        %v241 = vld [vmem:[%s222 + $0x90] sm:$0xff]
        %v242 = vld [vmem:[%s222 + $0x98] sm:$0x3]
        %v243 = vld [vmem:[%s222 + $0xa0] sm:$0xff]
        %v244 = vld [vmem:[%s222 + $0xa8] sm:$0xff]
        %v245 = vld [vmem:[%s222 + $0xb0] sm:$0xff]
        %v246 = vld [vmem:[%s222 + $0xb8] sm:$0xff]
        %v247 = vld [vmem:[%s222 + $0xc0] sm:$0x3]
        %v248 = vld [vmem:[%s222 + $0xc8] sm:$0xff]
        %v249 = vld [vmem:[%s222 + $0xd0] sm:$0xff]
        %v250 = vld [vmem:[%s222 + $0xd8] sm:$0xff]
        %v251 = vld [vmem:[%s222 + $0xe0] sm:$0xff]
        %v252 = vld [vmem:[%s222 + $0xe8] sm:$0x3]
        %v253 = vld [vmem:[%s222 + $0xf0] sm:$0xff]
        %v254 = vld [vmem:[%s222 + $0xf8] sm:$0xff]
        %v255 = vld [vmem:[%s222 + $0x100] sm:$0xff]
        %v256 = vld [vmem:[%s222 + $0x108] sm:$0xff]
        %v257 = vld [vmem:[%s222 + $0x110] sm:$0x3]
        %v258 = vld [vmem:[%s222 + $0x118] sm:$0xff]
        %v259 = vld [vmem:[%s222 + $0x120] sm:$0xff]
        %v260 = vld [vmem:[%s222 + $0x128] sm:$0xff]
        %v261 = vld [vmem:[%s222 + $0x130] sm:$0xff]
        %v262 = vld [vmem:[%s222 + $0x138] sm:$0x3]
        %v263 = vld [vmem:[%s222 + $0x140] sm:$0xff]
        %v264 = vld [vmem:[%s222 + $0x148] sm:$0xff]
        %v265 = vld [vmem:[%s222 + $0x150] sm:$0xff]
        %v266 = vld [vmem:[%s222 + $0x158] sm:$0xff]
        %v267 = vld [vmem:[%s222 + $0x160] sm:$0x3]
        %v268 = vld [vmem:[%s222 + $0x168] sm:$0xff]
        %v269 = vld [vmem:[%s222 + $0x170] sm:$0xff]
        %v270 = vld [vmem:[%s222 + $0x178] sm:$0xff]
        %v271 = vld [vmem:[%s222 + $0x180] sm:$0xff]
        %v272 = vld [vmem:[%s222 + $0x188] sm:$0x3]
        %v273 = vld [vmem:[%s222 + $0x190] sm:$0xff]
        %v274 = vld [vmem:[%s222 + $0x198] sm:$0xff]
        %v275 = vld [vmem:[%s222 + $0x1a0] sm:$0xff]
        %v276 = vld [vmem:[%s222 + $0x1a8] sm:$0xff]
        %v277 = vld [vmem:[%s222 + $0x1b0] sm:$0x3]
        %v278 = vld [vmem:[%s222 + $0x1b8] sm:$0xff]
        %v279 = vld [vmem:[%s222 + $0x1c0] sm:$0xff]
        %v280 = vld [vmem:[%s222 + $0x1c8] sm:$0xff]
        %v281 = vld [vmem:[%s222 + $0x1d0] sm:$0xff]
        %v282 = vld [vmem:[%s222 + $0x1d8] sm:$0x3]
        %v283 = vld [vmem:[%s222 + $0x1e0] sm:$0xff]
        %v284 = vld [vmem:[%s222 + $0x1e8] sm:$0xff]
        %v285 = vld [vmem:[%s222 + $0x1f0] sm:$0xff]
        %v286 = vld [vmem:[%s222 + $0x1f8] sm:$0xff]
        %v287 = vld [vmem:[%s222 + $0x200] sm:$0x3]
        %v288 = vld [vmem:[%s222 + $0x208] sm:$0xff]
        %v289 = vld [vmem:[%s222 + $0x210] sm:$0xff]
        %v290 = vld [vmem:[%s222 + $0x218] sm:$0xff]
        %v291 = vld [vmem:[%s222 + $0x220] sm:$0xff]
        %v292 = vld [vmem:[%s222 + $0x228] sm:$0x3]
        %v293 = vld [vmem:[%s222 + $0x230] sm:$0xff]
        %v294 = vld [vmem:[%s222 + $0x238] sm:$0xff]
        %v295 = vld [vmem:[%s222 + $0x240] sm:$0xff]
        %v296 = vld [vmem:[%s222 + $0x248] sm:$0xff]
        %v297 = vld [vmem:[%s222 + $0x250] sm:$0x3]
        %v298 = vld [vmem:[%s222 + $0x258] sm:$0xff]
        %v299 = vld [vmem:[%s222 + $0x260] sm:$0xff]
        %v300 = vld [vmem:[%s222 + $0x268] sm:$0xff]
        %v301 = vld [vmem:[%s222 + $0x270] sm:$0xff]
        %v302 = vld [vmem:[%s222 + $0x278] sm:$0x3]
        %v303 = vld [vmem:[%s222 + $0x280] sm:$0xff]
        %v304 = vld [vmem:[%s222 + $0x288] sm:$0xff]
        %v305 = vld [vmem:[%s222 + $0x290] sm:$0xff]
        %v306 = vld [vmem:[%s222 + $0x298] sm:$0xff]
        %v307 = vld [vmem:[%s222 + $0x2a0] sm:$0x3]
        %v308 = vld [vmem:[%s222 + $0x2a8] sm:$0xff]
        %v309 = vld [vmem:[%s222 + $0x2b0] sm:$0xff]
        %v310 = vld [vmem:[%s222 + $0x2b8] sm:$0xff]
        %v311 = vld [vmem:[%s222 + $0x2c0] sm:$0xff]
        %v312 = vld [vmem:[%s222 + $0x2c8] sm:$0x3]
        %v313 = vld [vmem:[%s222 + $0x2d0] sm:$0xff]
        %v314 = vld [vmem:[%s222 + $0x2d8] sm:$0xff]
        %v315 = vld [vmem:[%s222 + $0x2e0] sm:$0xff]
        %v316 = vld [vmem:[%s222 + $0x2e8] sm:$0xff]
        %v317 = vld [vmem:[%s222 + $0x2f0] sm:$0x3]
        %v318 = vld [vmem:[%s222 + $0x2f8] sm:$0xff]
        %v319 = vld [vmem:[%s222 + $0x300] sm:$0xff]
        %v320 = vld [vmem:[%s222 + $0x308] sm:$0xff]
        %v321 = vld [vmem:[%s222 + $0x310] sm:$0xff]
        %v322 = vld [vmem:[%s222 + $0x318] sm:$0x3]
        %v323 = vld [vmem:[%s222 + $0x320] sm:$0xff]
        %v324 = vld [vmem:[%s222 + $0x328] sm:$0xff]
        %v325 = vld [vmem:[%s222 + $0x330] sm:$0xff]
        %v326 = vld [vmem:[%s222 + $0x338] sm:$0xff]
        %v327 = vld [vmem:[%s222 + $0x340] sm:$0x3]
        %v328 = vld [vmem:[%s222 + $0x348] sm:$0xff]
        %v329 = vld [vmem:[%s222 + $0x350] sm:$0xff]
        %v330 = vld [vmem:[%s222 + $0x358] sm:$0xff]
        %v331 = vld [vmem:[%s222 + $0x360] sm:$0xff]
        %v332 = vld [vmem:[%s222 + $0x368] sm:$0x3]
        %v333 = vld [vmem:[%s222 + $0x370] sm:$0xff]
        %v334 = vld [vmem:[%s222 + $0x378] sm:$0xff]
        %v335 = vld [vmem:[%s222 + $0x380] sm:$0xff]
        %v336 = vld [vmem:[%s222 + $0x388] sm:$0xff]
        %v337 = vld [vmem:[%s222 + $0x390] sm:$0x3]
        %v338 = vld [vmem:[%s222 + $0x398] sm:$0xff]
        %v339 = vld [vmem:[%s222 + $0x3a0] sm:$0xff]
        %v340 = vld [vmem:[%s222 + $0x3a8] sm:$0xff]
        %v341 = vld [vmem:[%s222 + $0x3b0] sm:$0xff]
        %v342 = vld [vmem:[%s222 + $0x3b8] sm:$0x3]
        %v343 = vld [vmem:[%s222 + $0x3c0] sm:$0xff]
        %v344 = vld [vmem:[%s222 + $0x3c8] sm:$0xff]
        %v345 = vld [vmem:[%s222 + $0x3d0] sm:$0xff]
        %v346 = vld [vmem:[%s222 + $0x3d8] sm:$0xff]
        %v347 = vld [vmem:[%s222 + $0x3e0] sm:$0x3]
        %v348 = vld [vmem:[%s222 + $0x3e8] sm:$0xff]
        %v349 = vld [vmem:[%s222 + $0x3f0] sm:$0xff]
        %v350 = vld [vmem:[%s222 + $0x3f8] sm:$0xff]
        %v351 = vld [vmem:[%s222 + $0x400] sm:$0xff]
        %v352 = vld [vmem:[%s222 + $0x408] sm:$0x3]
        %v353 = vld [vmem:[%s222 + $0x410] sm:$0xff]
        %v354 = vld [vmem:[%s222 + $0x418] sm:$0xff]
        %v355 = vld [vmem:[%s222 + $0x420] sm:$0xff]
        %v356 = vld [vmem:[%s222 + $0x428] sm:$0xff]
        %v357 = vld [vmem:[%s222 + $0x430] sm:$0x3]
        %v358 = vld [vmem:[%s222 + $0x438] sm:$0xff]
        %v359 = vld [vmem:[%s222 + $0x440] sm:$0xff]
        %v360 = vld [vmem:[%s222 + $0x448] sm:$0xff]
        %v361 = vld [vmem:[%s222 + $0x450] sm:$0xff]
        %v362 = vld [vmem:[%s222 + $0x458] sm:$0x3]
        %v363 = vld [vmem:[%s222 + $0x460] sm:$0xff]
        %v364 = vld [vmem:[%s222 + $0x468] sm:$0xff]
        %v365 = vld [vmem:[%s222 + $0x470] sm:$0xff]
        %v366 = vld [vmem:[%s222 + $0x478] sm:$0xff]
        %v367 = vld [vmem:[%s222 + $0x480] sm:$0x3]
        %v368 = vld [vmem:[%s222 + $0x488] sm:$0xff]
        %v369 = vld [vmem:[%s222 + $0x490] sm:$0xff]
        %v370 = vld [vmem:[%s222 + $0x498] sm:$0xff]
        %v371 = vld [vmem:[%s222 + $0x4a0] sm:$0xff]
        %v372 = vld [vmem:[%s222 + $0x4a8] sm:$0x3]
        %v373 = vld [vmem:[%s222 + $0x4b0] sm:$0xff]
        %v374 = vld [vmem:[%s222 + $0x4b8] sm:$0xff]
        %v375 = vld [vmem:[%s222 + $0x4c0] sm:$0xff]
        %v376 = vld [vmem:[%s222 + $0x4c8] sm:$0xff]
        %v377 = vld [vmem:[%s222 + $0x4d0] sm:$0x3]
        %v378 = vld [vmem:[%s222 + $0x4d8] sm:$0xff]
        %v379 = vld [vmem:[%s222 + $0x4e0] sm:$0xff]
        %v380 = vld [vmem:[%s222 + $0x4e8] sm:$0xff]
        %v381 = vld [vmem:[%s222 + $0x4f0] sm:$0xff]
        %v382 = vld [vmem:[%s222 + $0x4f8] sm:$0x3]
        %v383 = vld [vmem:[%s222 + $0x500] sm:$0xff]
        %v384 = vld [vmem:[%s222 + $0x508] sm:$0xff]
        %v385 = vld [vmem:[%s222 + $0x510] sm:$0xff]
        %v386 = vld [vmem:[%s222 + $0x518] sm:$0xff]
        %v387 = vld [vmem:[%s222 + $0x520] sm:$0x3]
        %v388 = vld [vmem:[%s222 + $0x528] sm:$0xff]
        %v389 = vld [vmem:[%s222 + $0x530] sm:$0xff]
        %v390 = vld [vmem:[%s222 + $0x538] sm:$0xff]
        %v391 = vld [vmem:[%s222 + $0x540] sm:$0xff]
        %v392 = vld [vmem:[%s222 + $0x548] sm:$0x3]
        %vm393 = vcmask 31744
        %394 = vst.msk [vmem:[#allocation2] sm:$0xff] %vm393, %v223
        %395 = vst.msk [vmem:[#allocation2 + $0x8] sm:$0xff] %vm393, %v224
        %396 = vst.msk [vmem:[#allocation2 + $0x10] sm:$0xff] %vm393, %v225
        %397 = vst.msk [vmem:[#allocation2 + $0x18] sm:$0xff] %vm393, %v226
        %398 = vst.msk [vmem:[#allocation2 + $0x20] sm:$0xff] %vm393, %v228
        %399 = vst.msk [vmem:[#allocation2 + $0x28] sm:$0xff] %vm393, %v229
        %400 = vst.msk [vmem:[#allocation2 + $0x30] sm:$0xff] %vm393, %v230
        %401 = vst.msk [vmem:[#allocation2 + $0x38] sm:$0xff] %vm393, %v231
        %402 = vst.msk [vmem:[#allocation2 + $0x40] sm:$0xff] %vm393, %v233
        %403 = vst.msk [vmem:[#allocation2 + $0x48] sm:$0xff] %vm393, %v234
        %404 = vst.msk [vmem:[#allocation2 + $0x50] sm:$0xff] %vm393, %v235
        %405 = vst.msk [vmem:[#allocation2 + $0x58] sm:$0xff] %vm393, %v236
        %406 = vst.msk [vmem:[#allocation2 + $0x60] sm:$0xff] %vm393, %v238
        %407 = vst.msk [vmem:[#allocation2 + $0x68] sm:$0xff] %vm393, %v239
        %408 = vst.msk [vmem:[#allocation2 + $0x70] sm:$0xff] %vm393, %v240
        %409 = vst.msk [vmem:[#allocation2 + $0x78] sm:$0xff] %vm393, %v241
        %410 = vst.msk [vmem:[#allocation2 + $0x80] sm:$0xff] %vm393, %v243
        %411 = vst.msk [vmem:[#allocation2 + $0x88] sm:$0xff] %vm393, %v244
        %412 = vst.msk [vmem:[#allocation2 + $0x90] sm:$0xff] %vm393, %v245
        %413 = vst.msk [vmem:[#allocation2 + $0x98] sm:$0xff] %vm393, %v246
        %414 = vst.msk [vmem:[#allocation2 + $0xa0] sm:$0xff] %vm393, %v248
        %415 = vst.msk [vmem:[#allocation2 + $0xa8] sm:$0xff] %vm393, %v249
        %416 = vst.msk [vmem:[#allocation2 + $0xb0] sm:$0xff] %vm393, %v250
        %417 = vst.msk [vmem:[#allocation2 + $0xb8] sm:$0xff] %vm393, %v251
        %418 = vst.msk [vmem:[#allocation2 + $0xc0] sm:$0xff] %vm393, %v253
        %419 = vst.msk [vmem:[#allocation2 + $0xc8] sm:$0xff] %vm393, %v254
        %420 = vst.msk [vmem:[#allocation2 + $0xd0] sm:$0xff] %vm393, %v255
        %421 = vst.msk [vmem:[#allocation2 + $0xd8] sm:$0xff] %vm393, %v256
        %422 = vst.msk [vmem:[#allocation2 + $0xe0] sm:$0xff] %vm393, %v258
        %423 = vst.msk [vmem:[#allocation2 + $0xe8] sm:$0xff] %vm393, %v259
        %424 = vst.msk [vmem:[#allocation2 + $0xf0] sm:$0xff] %vm393, %v260
        %425 = vst.msk [vmem:[#allocation2 + $0xf8] sm:$0xff] %vm393, %v261
        %426 = vst.msk [vmem:[#allocation2 + $0x100] sm:$0xff] %vm393, %v263
        %427 = vst.msk [vmem:[#allocation2 + $0x108] sm:$0xff] %vm393, %v264
        %428 = vst.msk [vmem:[#allocation2 + $0x110] sm:$0xff] %vm393, %v265
        %429 = vst.msk [vmem:[#allocation2 + $0x118] sm:$0xff] %vm393, %v266
        %430 = vst.msk [vmem:[#allocation2 + $0x120] sm:$0xff] %vm393, %v268
        %431 = vst.msk [vmem:[#allocation2 + $0x128] sm:$0xff] %vm393, %v269
        %432 = vst.msk [vmem:[#allocation2 + $0x130] sm:$0xff] %vm393, %v270
        %433 = vst.msk [vmem:[#allocation2 + $0x138] sm:$0xff] %vm393, %v271
        %434 = vst.msk [vmem:[#allocation2 + $0x140] sm:$0xff] %vm393, %v273
        %435 = vst.msk [vmem:[#allocation2 + $0x148] sm:$0xff] %vm393, %v274
        %436 = vst.msk [vmem:[#allocation2 + $0x150] sm:$0xff] %vm393, %v275
        %437 = vst.msk [vmem:[#allocation2 + $0x158] sm:$0xff] %vm393, %v276
        %438 = vst.msk [vmem:[#allocation2 + $0x160] sm:$0xff] %vm393, %v278
        %439 = vst.msk [vmem:[#allocation2 + $0x168] sm:$0xff] %vm393, %v279
        %440 = vst.msk [vmem:[#allocation2 + $0x170] sm:$0xff] %vm393, %v280
        %441 = vst.msk [vmem:[#allocation2 + $0x178] sm:$0xff] %vm393, %v281
        %442 = vst.msk [vmem:[#allocation2 + $0x180] sm:$0xff] %vm393, %v283
        %443 = vst.msk [vmem:[#allocation2 + $0x188] sm:$0xff] %vm393, %v284
        %444 = vst.msk [vmem:[#allocation2 + $0x190] sm:$0xff] %vm393, %v285
        %445 = vst.msk [vmem:[#allocation2 + $0x198] sm:$0xff] %vm393, %v286
        %446 = vst.msk [vmem:[#allocation2 + $0x1a0] sm:$0xff] %vm393, %v288
        %447 = vst.msk [vmem:[#allocation2 + $0x1a8] sm:$0xff] %vm393, %v289
        %448 = vst.msk [vmem:[#allocation2 + $0x1b0] sm:$0xff] %vm393, %v290
        %449 = vst.msk [vmem:[#allocation2 + $0x1b8] sm:$0xff] %vm393, %v291
        %450 = vst.msk [vmem:[#allocation2 + $0x1c0] sm:$0xff] %vm393, %v293
        %451 = vst.msk [vmem:[#allocation2 + $0x1c8] sm:$0xff] %vm393, %v294
        %452 = vst.msk [vmem:[#allocation2 + $0x1d0] sm:$0xff] %vm393, %v295
        %453 = vst.msk [vmem:[#allocation2 + $0x1d8] sm:$0xff] %vm393, %v296
        %454 = vst.msk [vmem:[#allocation2 + $0x1e0] sm:$0xff] %vm393, %v298
        %455 = vst.msk [vmem:[#allocation2 + $0x1e8] sm:$0xff] %vm393, %v299
        %456 = vst.msk [vmem:[#allocation2 + $0x1f0] sm:$0xff] %vm393, %v300
        %457 = vst.msk [vmem:[#allocation2 + $0x1f8] sm:$0xff] %vm393, %v301
        %458 = vst.msk [vmem:[#allocation2 + $0x200] sm:$0xff] %vm393, %v303
        %459 = vst.msk [vmem:[#allocation2 + $0x208] sm:$0xff] %vm393, %v304
        %460 = vst.msk [vmem:[#allocation2 + $0x210] sm:$0xff] %vm393, %v305
        %461 = vst.msk [vmem:[#allocation2 + $0x218] sm:$0xff] %vm393, %v306
        %462 = vst.msk [vmem:[#allocation2 + $0x220] sm:$0xff] %vm393, %v308
        %463 = vst.msk [vmem:[#allocation2 + $0x228] sm:$0xff] %vm393, %v309
        %464 = vst.msk [vmem:[#allocation2 + $0x230] sm:$0xff] %vm393, %v310
        %465 = vst.msk [vmem:[#allocation2 + $0x238] sm:$0xff] %vm393, %v311
        %466 = vst.msk [vmem:[#allocation2 + $0x240] sm:$0xff] %vm393, %v313
        %467 = vst.msk [vmem:[#allocation2 + $0x248] sm:$0xff] %vm393, %v314
        %468 = vst.msk [vmem:[#allocation2 + $0x250] sm:$0xff] %vm393, %v315
        %469 = vst.msk [vmem:[#allocation2 + $0x258] sm:$0xff] %vm393, %v316
        %470 = vst.msk [vmem:[#allocation2 + $0x260] sm:$0xff] %vm393, %v318
        %471 = vst.msk [vmem:[#allocation2 + $0x268] sm:$0xff] %vm393, %v319
        %472 = vst.msk [vmem:[#allocation2 + $0x270] sm:$0xff] %vm393, %v320
        %473 = vst.msk [vmem:[#allocation2 + $0x278] sm:$0xff] %vm393, %v321
        %474 = vst.msk [vmem:[#allocation2 + $0x280] sm:$0xff] %vm393, %v323
        %475 = vst.msk [vmem:[#allocation2 + $0x288] sm:$0xff] %vm393, %v324
        %476 = vst.msk [vmem:[#allocation2 + $0x290] sm:$0xff] %vm393, %v325
        %477 = vst.msk [vmem:[#allocation2 + $0x298] sm:$0xff] %vm393, %v326
        %478 = vst.msk [vmem:[#allocation2 + $0x2a0] sm:$0xff] %vm393, %v328
        %479 = vst.msk [vmem:[#allocation2 + $0x2a8] sm:$0xff] %vm393, %v329
        %480 = vst.msk [vmem:[#allocation2 + $0x2b0] sm:$0xff] %vm393, %v330
        %481 = vst.msk [vmem:[#allocation2 + $0x2b8] sm:$0xff] %vm393, %v331
        %482 = vst.msk [vmem:[#allocation2 + $0x2c0] sm:$0xff] %vm393, %v333
        %483 = vst.msk [vmem:[#allocation2 + $0x2c8] sm:$0xff] %vm393, %v334
        %484 = vst.msk [vmem:[#allocation2 + $0x2d0] sm:$0xff] %vm393, %v335
        %485 = vst.msk [vmem:[#allocation2 + $0x2d8] sm:$0xff] %vm393, %v336
        %486 = vst.msk [vmem:[#allocation2 + $0x2e0] sm:$0xff] %vm393, %v338
        %487 = vst.msk [vmem:[#allocation2 + $0x2e8] sm:$0xff] %vm393, %v339
        %488 = vst.msk [vmem:[#allocation2 + $0x2f0] sm:$0xff] %vm393, %v340
        %489 = vst.msk [vmem:[#allocation2 + $0x2f8] sm:$0xff] %vm393, %v341
        %490 = vst.msk [vmem:[#allocation2 + $0x300] sm:$0xff] %vm393, %v343
        %491 = vst.msk [vmem:[#allocation2 + $0x308] sm:$0xff] %vm393, %v344
        %492 = vst.msk [vmem:[#allocation2 + $0x310] sm:$0xff] %vm393, %v345
        %493 = vst.msk [vmem:[#allocation2 + $0x318] sm:$0xff] %vm393, %v346
        %494 = vst.msk [vmem:[#allocation2 + $0x320] sm:$0xff] %vm393, %v348
        %495 = vst.msk [vmem:[#allocation2 + $0x328] sm:$0xff] %vm393, %v349
        %496 = vst.msk [vmem:[#allocation2 + $0x330] sm:$0xff] %vm393, %v350
        %497 = vst.msk [vmem:[#allocation2 + $0x338] sm:$0xff] %vm393, %v351
        %498 = vst.msk [vmem:[#allocation2 + $0x340] sm:$0xff] %vm393, %v353
        %499 = vst.msk [vmem:[#allocation2 + $0x348] sm:$0xff] %vm393, %v354
        %500 = vst.msk [vmem:[#allocation2 + $0x350] sm:$0xff] %vm393, %v355
        %501 = vst.msk [vmem:[#allocation2 + $0x358] sm:$0xff] %vm393, %v356
        %502 = vst.msk [vmem:[#allocation2 + $0x360] sm:$0xff] %vm393, %v358
        %503 = vst.msk [vmem:[#allocation2 + $0x368] sm:$0xff] %vm393, %v359
        %504 = vst.msk [vmem:[#allocation2 + $0x370] sm:$0xff] %vm393, %v360
        %505 = vst.msk [vmem:[#allocation2 + $0x378] sm:$0xff] %vm393, %v361
        %506 = vst.msk [vmem:[#allocation2 + $0x380] sm:$0xff] %vm393, %v363
        %507 = vst.msk [vmem:[#allocation2 + $0x388] sm:$0xff] %vm393, %v364
        %508 = vst.msk [vmem:[#allocation2 + $0x390] sm:$0xff] %vm393, %v365
        %509 = vst.msk [vmem:[#allocation2 + $0x398] sm:$0xff] %vm393, %v366
        %510 = vst.msk [vmem:[#allocation2 + $0x3a0] sm:$0xff] %vm393, %v368
        %511 = vst.msk [vmem:[#allocation2 + $0x3a8] sm:$0xff] %vm393, %v369
        %512 = vst.msk [vmem:[#allocation2 + $0x3b0] sm:$0xff] %vm393, %v370
        %513 = vst.msk [vmem:[#allocation2 + $0x3b8] sm:$0xff] %vm393, %v371
        %514 = vst.msk [vmem:[#allocation2 + $0x3c0] sm:$0xff] %vm393, %v373
        %515 = vst.msk [vmem:[#allocation2 + $0x3c8] sm:$0xff] %vm393, %v374
        %516 = vst.msk [vmem:[#allocation2 + $0x3d0] sm:$0xff] %vm393, %v375
        %517 = vst.msk [vmem:[#allocation2 + $0x3d8] sm:$0xff] %vm393, %v376
        %518 = vst.msk [vmem:[#allocation2 + $0x3e0] sm:$0xff] %vm393, %v378
        %519 = vst.msk [vmem:[#allocation2 + $0x3e8] sm:$0xff] %vm393, %v379
        %520 = vst.msk [vmem:[#allocation2 + $0x3f0] sm:$0xff] %vm393, %v380
        %521 = vst.msk [vmem:[#allocation2 + $0x3f8] sm:$0xff] %vm393, %v381
        %vm682 = vcmask 1046528
        %v683 = vrot.slane %v223, 1
        %v684 = vrot.slane %v224, 1
        %v685 = vsel %vm682, %v683, %v684
        %v686 = vrot.slane %v225, 1
        %v687 = vsel %vm682, %v684, %v686
        %v688 = vrot.slane %v226, 1
        %v689 = vsel %vm682, %v686, %v688
        %v690 = vrot.slane %v227, 1
        %v691 = vsel %vm682, %v688, %v690
        %v692 = vrot.slane %v228, 1
        %v693 = vrot.slane %v229, 1
        %v694 = vsel %vm682, %v692, %v693
        %v695 = vrot.slane %v230, 1
        %v696 = vsel %vm682, %v693, %v695
        %v697 = vrot.slane %v231, 1
        %v698 = vsel %vm682, %v695, %v697
        %v699 = vrot.slane %v232, 1
        %v700 = vsel %vm682, %v697, %v699
        %v701 = vrot.slane %v233, 1
        %v702 = vrot.slane %v234, 1
        %v703 = vsel %vm682, %v701, %v702
        %v704 = vrot.slane %v235, 1
        %v705 = vsel %vm682, %v702, %v704
        %v706 = vrot.slane %v236, 1
        %v707 = vsel %vm682, %v704, %v706
        %v708 = vrot.slane %v237, 1
        %v709 = vsel %vm682, %v706, %v708
        %v710 = vrot.slane %v238, 1
        %v711 = vrot.slane %v239, 1
        %v712 = vsel %vm682, %v710, %v711
        %v713 = vrot.slane %v240, 1
        %v714 = vsel %vm682, %v711, %v713
        %v715 = vrot.slane %v241, 1
        %v716 = vsel %vm682, %v713, %v715
        %v717 = vrot.slane %v242, 1
        %v718 = vsel %vm682, %v715, %v717
        %v719 = vrot.slane %v243, 1
        %v720 = vrot.slane %v244, 1
        %v721 = vsel %vm682, %v719, %v720
        %v722 = vrot.slane %v245, 1
        %v723 = vsel %vm682, %v720, %v722
        %v724 = vrot.slane %v246, 1
        %v725 = vsel %vm682, %v722, %v724
        %v726 = vrot.slane %v247, 1
        %v727 = vsel %vm682, %v724, %v726
        %v728 = vrot.slane %v248, 1
        %v729 = vrot.slane %v249, 1
        %v730 = vsel %vm682, %v728, %v729
        %v731 = vrot.slane %v250, 1
        %v732 = vsel %vm682, %v729, %v731
        %v733 = vrot.slane %v251, 1
        %v734 = vsel %vm682, %v731, %v733
        %v735 = vrot.slane %v252, 1
        %v736 = vsel %vm682, %v733, %v735
        %v737 = vrot.slane %v253, 1
        %v738 = vrot.slane %v254, 1
        %v739 = vsel %vm682, %v737, %v738
        %v740 = vrot.slane %v255, 1
        %v741 = vsel %vm682, %v738, %v740
        %v742 = vrot.slane %v256, 1
        %v743 = vsel %vm682, %v740, %v742
        %v744 = vrot.slane %v257, 1
        %v745 = vsel %vm682, %v742, %v744
        %v746 = vrot.slane %v258, 1
        %v747 = vrot.slane %v259, 1
        %v748 = vsel %vm682, %v746, %v747
        %v749 = vrot.slane %v260, 1
        %v750 = vsel %vm682, %v747, %v749
        %v751 = vrot.slane %v261, 1
        %v752 = vsel %vm682, %v749, %v751
        %v753 = vrot.slane %v262, 1
        %v754 = vsel %vm682, %v751, %v753
        %v755 = vrot.slane %v263, 1
        %v756 = vrot.slane %v264, 1
        %v757 = vsel %vm682, %v755, %v756
        %v758 = vrot.slane %v265, 1
        %v759 = vsel %vm682, %v756, %v758
        %v760 = vrot.slane %v266, 1
        %v761 = vsel %vm682, %v758, %v760
        %v762 = vrot.slane %v267, 1
        %v763 = vsel %vm682, %v760, %v762
        %v764 = vrot.slane %v268, 1
        %v765 = vrot.slane %v269, 1
        %v766 = vsel %vm682, %v764, %v765
        %v767 = vrot.slane %v270, 1
        %v768 = vsel %vm682, %v765, %v767
        %v769 = vrot.slane %v271, 1
        %v770 = vsel %vm682, %v767, %v769
        %v771 = vrot.slane %v272, 1
        %v772 = vsel %vm682, %v769, %v771
        %v773 = vrot.slane %v273, 1
        %v774 = vrot.slane %v274, 1
        %v775 = vsel %vm682, %v773, %v774
        %v776 = vrot.slane %v275, 1
        %v777 = vsel %vm682, %v774, %v776
        %v778 = vrot.slane %v276, 1
        %v779 = vsel %vm682, %v776, %v778
        %v780 = vrot.slane %v277, 1
        %v781 = vsel %vm682, %v778, %v780
        %v782 = vrot.slane %v278, 1
        %v783 = vrot.slane %v279, 1
        %v784 = vsel %vm682, %v782, %v783
        %v785 = vrot.slane %v280, 1
        %v786 = vsel %vm682, %v783, %v785
        %v787 = vrot.slane %v281, 1
        %v788 = vsel %vm682, %v785, %v787
        %v789 = vrot.slane %v282, 1
        %v790 = vsel %vm682, %v787, %v789
        %v791 = vrot.slane %v283, 1
        %v792 = vrot.slane %v284, 1
        %v793 = vsel %vm682, %v791, %v792
        %v794 = vrot.slane %v285, 1
        %v795 = vsel %vm682, %v792, %v794
        %v796 = vrot.slane %v286, 1
        %v797 = vsel %vm682, %v794, %v796
        %v798 = vrot.slane %v287, 1
        %v799 = vsel %vm682, %v796, %v798
        %v800 = vrot.slane %v288, 1
        %v801 = vrot.slane %v289, 1
        %v802 = vsel %vm682, %v800, %v801
        %v803 = vrot.slane %v290, 1
        %v804 = vsel %vm682, %v801, %v803
        %v805 = vrot.slane %v291, 1
        %v806 = vsel %vm682, %v803, %v805
        %v807 = vrot.slane %v292, 1
        %v808 = vsel %vm682, %v805, %v807
        %v809 = vrot.slane %v293, 1
        %v810 = vrot.slane %v294, 1
        %v811 = vsel %vm682, %v809, %v810
        %v812 = vrot.slane %v295, 1
        %v813 = vsel %vm682, %v810, %v812
        %v814 = vrot.slane %v296, 1
        %v815 = vsel %vm682, %v812, %v814
        %v816 = vrot.slane %v297, 1
        %v817 = vsel %vm682, %v814, %v816
        %v818 = vrot.slane %v298, 1
        %v819 = vrot.slane %v299, 1
        %v820 = vsel %vm682, %v818, %v819
        %v821 = vrot.slane %v300, 1
        %v822 = vsel %vm682, %v819, %v821
        %v823 = vrot.slane %v301, 1
        %v824 = vsel %vm682, %v821, %v823
        %v825 = vrot.slane %v302, 1
        %v826 = vsel %vm682, %v823, %v825
        %v827 = vrot.slane %v303, 1
        %v828 = vrot.slane %v304, 1
        %v829 = vsel %vm682, %v827, %v828
        %v830 = vrot.slane %v305, 1
        %v831 = vsel %vm682, %v828, %v830
        %v832 = vrot.slane %v306, 1
        %v833 = vsel %vm682, %v830, %v832
        %v834 = vrot.slane %v307, 1
        %v835 = vsel %vm682, %v832, %v834
        %v836 = vrot.slane %v308, 1
        %v837 = vrot.slane %v309, 1
        %v838 = vsel %vm682, %v836, %v837
        %v839 = vrot.slane %v310, 1
        %v840 = vsel %vm682, %v837, %v839
        %v841 = vrot.slane %v311, 1
        %v842 = vsel %vm682, %v839, %v841
        %v843 = vrot.slane %v312, 1
        %v844 = vsel %vm682, %v841, %v843
        %v845 = vrot.slane %v313, 1
        %v846 = vrot.slane %v314, 1
        %v847 = vsel %vm682, %v845, %v846
        %v848 = vrot.slane %v315, 1
        %v849 = vsel %vm682, %v846, %v848
        %v850 = vrot.slane %v316, 1
        %v851 = vsel %vm682, %v848, %v850
        %v852 = vrot.slane %v317, 1
        %v853 = vsel %vm682, %v850, %v852
        %v854 = vrot.slane %v318, 1
        %v855 = vrot.slane %v319, 1
        %v856 = vsel %vm682, %v854, %v855
        %v857 = vrot.slane %v320, 1
        %v858 = vsel %vm682, %v855, %v857
        %v859 = vrot.slane %v321, 1
        %v860 = vsel %vm682, %v857, %v859
        %v861 = vrot.slane %v322, 1
        %v862 = vsel %vm682, %v859, %v861
        %v863 = vrot.slane %v323, 1
        %v864 = vrot.slane %v324, 1
        %v865 = vsel %vm682, %v863, %v864
        %v866 = vrot.slane %v325, 1
        %v867 = vsel %vm682, %v864, %v866
        %v868 = vrot.slane %v326, 1
        %v869 = vsel %vm682, %v866, %v868
        %v870 = vrot.slane %v327, 1
        %v871 = vsel %vm682, %v868, %v870
        %v872 = vrot.slane %v328, 1
        %v873 = vrot.slane %v329, 1
        %v874 = vsel %vm682, %v872, %v873
        %v875 = vrot.slane %v330, 1
        %v876 = vsel %vm682, %v873, %v875
        %v877 = vrot.slane %v331, 1
        %v878 = vsel %vm682, %v875, %v877
        %v879 = vrot.slane %v332, 1
        %v880 = vsel %vm682, %v877, %v879
        %v881 = vrot.slane %v333, 1
        %v882 = vrot.slane %v334, 1
        %v883 = vsel %vm682, %v881, %v882
        %v884 = vrot.slane %v335, 1
        %v885 = vsel %vm682, %v882, %v884
        %v886 = vrot.slane %v336, 1
        %v887 = vsel %vm682, %v884, %v886
        %v888 = vrot.slane %v337, 1
        %v889 = vsel %vm682, %v886, %v888
        %v890 = vrot.slane %v338, 1
        %v891 = vrot.slane %v339, 1
        %v892 = vsel %vm682, %v890, %v891
        %v893 = vrot.slane %v340, 1
        %v894 = vsel %vm682, %v891, %v893
        %v895 = vrot.slane %v341, 1
        %v896 = vsel %vm682, %v893, %v895
        %v897 = vrot.slane %v342, 1
        %v898 = vsel %vm682, %v895, %v897
        %v899 = vrot.slane %v343, 1
        %v900 = vrot.slane %v344, 1
        %v901 = vsel %vm682, %v899, %v900
        %v902 = vrot.slane %v345, 1
        %v903 = vsel %vm682, %v900, %v902
        %v904 = vrot.slane %v346, 1
        %v905 = vsel %vm682, %v902, %v904
        %v906 = vrot.slane %v347, 1
        %v907 = vsel %vm682, %v904, %v906
        %v908 = vrot.slane %v348, 1
        %v909 = vrot.slane %v349, 1
        %v910 = vsel %vm682, %v908, %v909
        %v911 = vrot.slane %v350, 1
        %v912 = vsel %vm682, %v909, %v911
        %v913 = vrot.slane %v351, 1
        %v914 = vsel %vm682, %v911, %v913
        %v915 = vrot.slane %v352, 1
        %v916 = vsel %vm682, %v913, %v915
        %v917 = vrot.slane %v353, 1
        %v918 = vrot.slane %v354, 1
        %v919 = vsel %vm682, %v917, %v918
        %v920 = vrot.slane %v355, 1
        %v921 = vsel %vm682, %v918, %v920
        %v922 = vrot.slane %v356, 1
        %v923 = vsel %vm682, %v920, %v922
        %v924 = vrot.slane %v357, 1
        %v925 = vsel %vm682, %v922, %v924
        %v926 = vrot.slane %v358, 1
        %v927 = vrot.slane %v359, 1
        %v928 = vsel %vm682, %v926, %v927
        %v929 = vrot.slane %v360, 1
        %v930 = vsel %vm682, %v927, %v929
        %v931 = vrot.slane %v361, 1
        %v932 = vsel %vm682, %v929, %v931
        %v933 = vrot.slane %v362, 1
        %v934 = vsel %vm682, %v931, %v933
        %v935 = vrot.slane %v363, 1
        %v936 = vrot.slane %v364, 1
        %v937 = vsel %vm682, %v935, %v936
        %v938 = vrot.slane %v365, 1
        %v939 = vsel %vm682, %v936, %v938
        %v940 = vrot.slane %v366, 1
        %v941 = vsel %vm682, %v938, %v940
        %v942 = vrot.slane %v367, 1
        %v943 = vsel %vm682, %v940, %v942
        %v944 = vrot.slane %v368, 1
        %v945 = vrot.slane %v369, 1
        %v946 = vsel %vm682, %v944, %v945
        %v947 = vrot.slane %v370, 1
        %v948 = vsel %vm682, %v945, %v947
        %v949 = vrot.slane %v371, 1
        %v950 = vsel %vm682, %v947, %v949
        %v951 = vrot.slane %v372, 1
        %v952 = vsel %vm682, %v949, %v951
        %v953 = vrot.slane %v373, 1
        %v954 = vrot.slane %v374, 1
        %v955 = vsel %vm682, %v953, %v954
        %v956 = vrot.slane %v375, 1
        %v957 = vsel %vm682, %v954, %v956
        %v958 = vrot.slane %v376, 1
        %v959 = vsel %vm682, %v956, %v958
        %v960 = vrot.slane %v377, 1
        %v961 = vsel %vm682, %v958, %v960
        %v962 = vrot.slane %v378, 1
        %v963 = vrot.slane %v379, 1
        %v964 = vsel %vm682, %v962, %v963
        %v965 = vrot.slane %v380, 1
        %v966 = vsel %vm682, %v963, %v965
        %v967 = vrot.slane %v381, 1
        %v968 = vsel %vm682, %v965, %v967
        %v969 = vrot.slane %v382, 1
        %v970 = vsel %vm682, %v967, %v969
        %971 = vrot.lane.b32.xlu0 %v685, 4
        %v972 = vpop.permute.xlu0 %971
        %973 = vrot.lane.b32.xlu0 %v687, 4
        %v974 = vpop.permute.xlu0 %973
        %975 = vrot.lane.b32.xlu0 %v689, 4
        %v976 = vpop.permute.xlu0 %975
        %977 = vrot.lane.b32.xlu0 %v691, 4
        %v978 = vpop.permute.xlu0 %977
        %979 = vrot.lane.b32.xlu0 %v694, 4
        %v980 = vpop.permute.xlu0 %979
        %981 = vrot.lane.b32.xlu0 %v696, 4
        %v982 = vpop.permute.xlu0 %981
        %983 = vrot.lane.b32.xlu0 %v698, 4
        %v984 = vpop.permute.xlu0 %983
        %985 = vrot.lane.b32.xlu0 %v700, 4
        %v986 = vpop.permute.xlu0 %985
        %987 = vrot.lane.b32.xlu0 %v703, 4
        %v988 = vpop.permute.xlu0 %987
        %989 = vrot.lane.b32.xlu0 %v705, 4
        %v990 = vpop.permute.xlu0 %989
        %991 = vrot.lane.b32.xlu0 %v707, 4
        %v992 = vpop.permute.xlu0 %991
        %993 = vrot.lane.b32.xlu0 %v709, 4
        %v994 = vpop.permute.xlu0 %993
        %995 = vrot.lane.b32.xlu0 %v712, 4
        %v996 = vpop.permute.xlu0 %995
        %997 = vrot.lane.b32.xlu0 %v714, 4
        %v998 = vpop.permute.xlu0 %997
        %999 = vrot.lane.b32.xlu0 %v716, 4
        %v1000 = vpop.permute.xlu0 %999
        %1001 = vrot.lane.b32.xlu0 %v718, 4
        %v1002 = vpop.permute.xlu0 %1001
        %1003 = vrot.lane.b32.xlu0 %v721, 4
        %v1004 = vpop.permute.xlu0 %1003
        %1005 = vrot.lane.b32.xlu0 %v723, 4
        %v1006 = vpop.permute.xlu0 %1005
        %1007 = vrot.lane.b32.xlu0 %v725, 4
        %v1008 = vpop.permute.xlu0 %1007
        %1009 = vrot.lane.b32.xlu0 %v727, 4
        %v1010 = vpop.permute.xlu0 %1009
        %1011 = vrot.lane.b32.xlu0 %v730, 4
        %v1012 = vpop.permute.xlu0 %1011
        %1013 = vrot.lane.b32.xlu0 %v732, 4
        %v1014 = vpop.permute.xlu0 %1013
        %1015 = vrot.lane.b32.xlu0 %v734, 4
        %v1016 = vpop.permute.xlu0 %1015
        %1017 = vrot.lane.b32.xlu0 %v736, 4
        %v1018 = vpop.permute.xlu0 %1017
        %1019 = vrot.lane.b32.xlu0 %v739, 4
        %v1020 = vpop.permute.xlu0 %1019
        %1021 = vrot.lane.b32.xlu0 %v741, 4
        %v1022 = vpop.permute.xlu0 %1021
        %1023 = vrot.lane.b32.xlu0 %v743, 4
        %v1024 = vpop.permute.xlu0 %1023
        %1025 = vrot.lane.b32.xlu0 %v745, 4
        %v1026 = vpop.permute.xlu0 %1025
        %1027 = vrot.lane.b32.xlu0 %v748, 4
        %v1028 = vpop.permute.xlu0 %1027
        %1029 = vrot.lane.b32.xlu0 %v750, 4
        %v1030 = vpop.permute.xlu0 %1029
        %1031 = vrot.lane.b32.xlu0 %v752, 4
        %v1032 = vpop.permute.xlu0 %1031
        %1033 = vrot.lane.b32.xlu0 %v754, 4
        %v1034 = vpop.permute.xlu0 %1033
        %1035 = vrot.lane.b32.xlu0 %v757, 4
        %v1036 = vpop.permute.xlu0 %1035
        %1037 = vrot.lane.b32.xlu0 %v759, 4
        %v1038 = vpop.permute.xlu0 %1037
        %1039 = vrot.lane.b32.xlu0 %v761, 4
        %v1040 = vpop.permute.xlu0 %1039
        %1041 = vrot.lane.b32.xlu0 %v763, 4
        %v1042 = vpop.permute.xlu0 %1041
        %1043 = vrot.lane.b32.xlu0 %v766, 4
        %v1044 = vpop.permute.xlu0 %1043
        %1045 = vrot.lane.b32.xlu0 %v768, 4
        %v1046 = vpop.permute.xlu0 %1045
        %1047 = vrot.lane.b32.xlu0 %v770, 4
        %v1048 = vpop.permute.xlu0 %1047
        %1049 = vrot.lane.b32.xlu0 %v772, 4
        %v1050 = vpop.permute.xlu0 %1049
        %1051 = vrot.lane.b32.xlu0 %v775, 4
        %v1052 = vpop.permute.xlu0 %1051
        %1053 = vrot.lane.b32.xlu0 %v777, 4
        %v1054 = vpop.permute.xlu0 %1053
        %1055 = vrot.lane.b32.xlu0 %v779, 4
        %v1056 = vpop.permute.xlu0 %1055
        %1057 = vrot.lane.b32.xlu0 %v781, 4
        %v1058 = vpop.permute.xlu0 %1057
        %1059 = vrot.lane.b32.xlu0 %v784, 4
        %v1060 = vpop.permute.xlu0 %1059
        %1061 = vrot.lane.b32.xlu0 %v786, 4
        %v1062 = vpop.permute.xlu0 %1061
        %1063 = vrot.lane.b32.xlu0 %v788, 4
        %v1064 = vpop.permute.xlu0 %1063
        %1065 = vrot.lane.b32.xlu0 %v790, 4
        %v1066 = vpop.permute.xlu0 %1065
        %1067 = vrot.lane.b32.xlu0 %v793, 4
        %v1068 = vpop.permute.xlu0 %1067
        %1069 = vrot.lane.b32.xlu0 %v795, 4
        %v1070 = vpop.permute.xlu0 %1069
        %1071 = vrot.lane.b32.xlu0 %v797, 4
        %v1072 = vpop.permute.xlu0 %1071
        %1073 = vrot.lane.b32.xlu0 %v799, 4
        %v1074 = vpop.permute.xlu0 %1073
        %1075 = vrot.lane.b32.xlu0 %v802, 4
        %v1076 = vpop.permute.xlu0 %1075
        %1077 = vrot.lane.b32.xlu0 %v804, 4
        %v1078 = vpop.permute.xlu0 %1077
        %1079 = vrot.lane.b32.xlu0 %v806, 4
        %v1080 = vpop.permute.xlu0 %1079
        %1081 = vrot.lane.b32.xlu0 %v808, 4
        %v1082 = vpop.permute.xlu0 %1081
        %1083 = vrot.lane.b32.xlu0 %v811, 4
        %v1084 = vpop.permute.xlu0 %1083
        %1085 = vrot.lane.b32.xlu0 %v813, 4
        %v1086 = vpop.permute.xlu0 %1085
        %1087 = vrot.lane.b32.xlu0 %v815, 4
        %v1088 = vpop.permute.xlu0 %1087
        %1089 = vrot.lane.b32.xlu0 %v817, 4
        %v1090 = vpop.permute.xlu0 %1089
        %1091 = vrot.lane.b32.xlu0 %v820, 4
        %v1092 = vpop.permute.xlu0 %1091
        %1093 = vrot.lane.b32.xlu0 %v822, 4
        %v1094 = vpop.permute.xlu0 %1093
        %1095 = vrot.lane.b32.xlu0 %v824, 4
        %v1096 = vpop.permute.xlu0 %1095
        %1097 = vrot.lane.b32.xlu0 %v826, 4
        %v1098 = vpop.permute.xlu0 %1097
        %1099 = vrot.lane.b32.xlu0 %v829, 4
        %v1100 = vpop.permute.xlu0 %1099
        %1101 = vrot.lane.b32.xlu0 %v831, 4
        %v1102 = vpop.permute.xlu0 %1101
        %1103 = vrot.lane.b32.xlu0 %v833, 4
        %v1104 = vpop.permute.xlu0 %1103
        %1105 = vrot.lane.b32.xlu0 %v835, 4
        %v1106 = vpop.permute.xlu0 %1105
        %1107 = vrot.lane.b32.xlu0 %v838, 4
        %v1108 = vpop.permute.xlu0 %1107
        %1109 = vrot.lane.b32.xlu0 %v840, 4
        %v1110 = vpop.permute.xlu0 %1109
        %1111 = vrot.lane.b32.xlu0 %v842, 4
        %v1112 = vpop.permute.xlu0 %1111
        %1113 = vrot.lane.b32.xlu0 %v844, 4
        %v1114 = vpop.permute.xlu0 %1113
        %1115 = vrot.lane.b32.xlu0 %v847, 4
        %v1116 = vpop.permute.xlu0 %1115
        %1117 = vrot.lane.b32.xlu0 %v849, 4
        %v1118 = vpop.permute.xlu0 %1117
        %1119 = vrot.lane.b32.xlu0 %v851, 4
        %v1120 = vpop.permute.xlu0 %1119
        %1121 = vrot.lane.b32.xlu0 %v853, 4
        %v1122 = vpop.permute.xlu0 %1121
        %1123 = vrot.lane.b32.xlu0 %v856, 4
        %v1124 = vpop.permute.xlu0 %1123
        %1125 = vrot.lane.b32.xlu0 %v858, 4
        %v1126 = vpop.permute.xlu0 %1125
        %1127 = vrot.lane.b32.xlu0 %v860, 4
        %v1128 = vpop.permute.xlu0 %1127
        %1129 = vrot.lane.b32.xlu0 %v862, 4
        %v1130 = vpop.permute.xlu0 %1129
        %1131 = vrot.lane.b32.xlu0 %v865, 4
        %v1132 = vpop.permute.xlu0 %1131
        %1133 = vrot.lane.b32.xlu0 %v867, 4
        %v1134 = vpop.permute.xlu0 %1133
        %1135 = vrot.lane.b32.xlu0 %v869, 4
        %v1136 = vpop.permute.xlu0 %1135
        %1137 = vrot.lane.b32.xlu0 %v871, 4
        %v1138 = vpop.permute.xlu0 %1137
        %1139 = vrot.lane.b32.xlu0 %v874, 4
        %v1140 = vpop.permute.xlu0 %1139
        %1141 = vrot.lane.b32.xlu0 %v876, 4
        %v1142 = vpop.permute.xlu0 %1141
        %1143 = vrot.lane.b32.xlu0 %v878, 4
        %v1144 = vpop.permute.xlu0 %1143
        %1145 = vrot.lane.b32.xlu0 %v880, 4
        %v1146 = vpop.permute.xlu0 %1145
        %1147 = vrot.lane.b32.xlu0 %v883, 4
        %v1148 = vpop.permute.xlu0 %1147
        %1149 = vrot.lane.b32.xlu0 %v885, 4
        %v1150 = vpop.permute.xlu0 %1149
        %1151 = vrot.lane.b32.xlu0 %v887, 4
        %v1152 = vpop.permute.xlu0 %1151
        %1153 = vrot.lane.b32.xlu0 %v889, 4
        %v1154 = vpop.permute.xlu0 %1153
        %1155 = vrot.lane.b32.xlu0 %v892, 4
        %v1156 = vpop.permute.xlu0 %1155
        %1157 = vrot.lane.b32.xlu0 %v894, 4
        %v1158 = vpop.permute.xlu0 %1157
        %1159 = vrot.lane.b32.xlu0 %v896, 4
        %v1160 = vpop.permute.xlu0 %1159
        %1161 = vrot.lane.b32.xlu0 %v898, 4
        %v1162 = vpop.permute.xlu0 %1161
        %1163 = vrot.lane.b32.xlu0 %v901, 4
        %v1164 = vpop.permute.xlu0 %1163
        %1165 = vrot.lane.b32.xlu0 %v903, 4
        %v1166 = vpop.permute.xlu0 %1165
        %1167 = vrot.lane.b32.xlu0 %v905, 4
        %v1168 = vpop.permute.xlu0 %1167
        %1169 = vrot.lane.b32.xlu0 %v907, 4
        %v1170 = vpop.permute.xlu0 %1169
        %1171 = vrot.lane.b32.xlu0 %v910, 4
        %v1172 = vpop.permute.xlu0 %1171
        %1173 = vrot.lane.b32.xlu0 %v912, 4
        %v1174 = vpop.permute.xlu0 %1173
        %1175 = vrot.lane.b32.xlu0 %v914, 4
        %v1176 = vpop.permute.xlu0 %1175
        %1177 = vrot.lane.b32.xlu0 %v916, 4
        %v1178 = vpop.permute.xlu0 %1177
        %1179 = vrot.lane.b32.xlu0 %v919, 4
        %v1180 = vpop.permute.xlu0 %1179
        %1181 = vrot.lane.b32.xlu0 %v921, 4
        %v1182 = vpop.permute.xlu0 %1181
        %1183 = vrot.lane.b32.xlu0 %v923, 4
        %v1184 = vpop.permute.xlu0 %1183
        %1185 = vrot.lane.b32.xlu0 %v925, 4
        %v1186 = vpop.permute.xlu0 %1185
        %1187 = vrot.lane.b32.xlu0 %v928, 4
        %v1188 = vpop.permute.xlu0 %1187
        %1189 = vrot.lane.b32.xlu0 %v930, 4
        %v1190 = vpop.permute.xlu0 %1189
        %1191 = vrot.lane.b32.xlu0 %v932, 4
        %v1192 = vpop.permute.xlu0 %1191
        %1193 = vrot.lane.b32.xlu0 %v934, 4
        %v1194 = vpop.permute.xlu0 %1193
        %1195 = vrot.lane.b32.xlu0 %v937, 4
        %v1196 = vpop.permute.xlu0 %1195
        %1197 = vrot.lane.b32.xlu0 %v939, 4
        %v1198 = vpop.permute.xlu0 %1197
        %1199 = vrot.lane.b32.xlu0 %v941, 4
        %v1200 = vpop.permute.xlu0 %1199
        %1201 = vrot.lane.b32.xlu0 %v943, 4
        %v1202 = vpop.permute.xlu0 %1201
        %1203 = vrot.lane.b32.xlu0 %v946, 4
        %v1204 = vpop.permute.xlu0 %1203
        %1205 = vrot.lane.b32.xlu0 %v948, 4
        %v1206 = vpop.permute.xlu0 %1205
        %1207 = vrot.lane.b32.xlu0 %v950, 4
        %v1208 = vpop.permute.xlu0 %1207
        %1209 = vrot.lane.b32.xlu0 %v952, 4
        %v1210 = vpop.permute.xlu0 %1209
        %1211 = vrot.lane.b32.xlu0 %v955, 4
        %v1212 = vpop.permute.xlu0 %1211
        %1213 = vrot.lane.b32.xlu0 %v957, 4
        %v1214 = vpop.permute.xlu0 %1213
        %1215 = vrot.lane.b32.xlu0 %v959, 4
        %v1216 = vpop.permute.xlu0 %1215
        %1217 = vrot.lane.b32.xlu0 %v961, 4
        %v1218 = vpop.permute.xlu0 %1217
        %1219 = vrot.lane.b32.xlu0 %v964, 4
        %v1220 = vpop.permute.xlu0 %1219
        %1221 = vrot.lane.b32.xlu0 %v966, 4
        %v1222 = vpop.permute.xlu0 %1221
        %1223 = vrot.lane.b32.xlu0 %v968, 4
        %v1224 = vpop.permute.xlu0 %1223
        %1225 = vrot.lane.b32.xlu0 %v970, 4
        %v1226 = vpop.permute.xlu0 %1225
        %vm1355 = vcmask 64544
        %1356 = vst.msk [vmem:[#allocation2] sm:$0xff] %vm1355, %v972
        %1357 = vst.msk [vmem:[#allocation2 + $0x8] sm:$0xff] %vm1355, %v974
        %1358 = vst.msk [vmem:[#allocation2 + $0x10] sm:$0xff] %vm1355, %v976
        %1359 = vst.msk [vmem:[#allocation2 + $0x18] sm:$0xff] %vm1355, %v978
        %1360 = vst.msk [vmem:[#allocation2 + $0x20] sm:$0xff] %vm1355, %v980
        %1361 = vst.msk [vmem:[#allocation2 + $0x28] sm:$0xff] %vm1355, %v982
        %1362 = vst.msk [vmem:[#allocation2 + $0x30] sm:$0xff] %vm1355, %v984
        %1363 = vst.msk [vmem:[#allocation2 + $0x38] sm:$0xff] %vm1355, %v986
        %1364 = vst.msk [vmem:[#allocation2 + $0x40] sm:$0xff] %vm1355, %v988
        %1365 = vst.msk [vmem:[#allocation2 + $0x48] sm:$0xff] %vm1355, %v990
        %1366 = vst.msk [vmem:[#allocation2 + $0x50] sm:$0xff] %vm1355, %v992
        %1367 = vst.msk [vmem:[#allocation2 + $0x58] sm:$0xff] %vm1355, %v994
        %1368 = vst.msk [vmem:[#allocation2 + $0x60] sm:$0xff] %vm1355, %v996
        %1369 = vst.msk [vmem:[#allocation2 + $0x68] sm:$0xff] %vm1355, %v998
        %1370 = vst.msk [vmem:[#allocation2 + $0x70] sm:$0xff] %vm1355, %v1000
        %1371 = vst.msk [vmem:[#allocation2 + $0x78] sm:$0xff] %vm1355, %v1002
        %1372 = vst.msk [vmem:[#allocation2 + $0x80] sm:$0xff] %vm1355, %v1004
        %1373 = vst.msk [vmem:[#allocation2 + $0x88] sm:$0xff] %vm1355, %v1006
        %1374 = vst.msk [vmem:[#allocation2 + $0x90] sm:$0xff] %vm1355, %v1008
        %1375 = vst.msk [vmem:[#allocation2 + $0x98] sm:$0xff] %vm1355, %v1010
        %1376 = vst.msk [vmem:[#allocation2 + $0xa0] sm:$0xff] %vm1355, %v1012
        %1377 = vst.msk [vmem:[#allocation2 + $0xa8] sm:$0xff] %vm1355, %v1014
        %1378 = vst.msk [vmem:[#allocation2 + $0xb0] sm:$0xff] %vm1355, %v1016
        %1379 = vst.msk [vmem:[#allocation2 + $0xb8] sm:$0xff] %vm1355, %v1018
        %1380 = vst.msk [vmem:[#allocation2 + $0xc0] sm:$0xff] %vm1355, %v1020
        %1381 = vst.msk [vmem:[#allocation2 + $0xc8] sm:$0xff] %vm1355, %v1022
        %1382 = vst.msk [vmem:[#allocation2 + $0xd0] sm:$0xff] %vm1355, %v1024
        %1383 = vst.msk [vmem:[#allocation2 + $0xd8] sm:$0xff] %vm1355, %v1026
        %1384 = vst.msk [vmem:[#allocation2 + $0xe0] sm:$0xff] %vm1355, %v1028
        %1385 = vst.msk [vmem:[#allocation2 + $0xe8] sm:$0xff] %vm1355, %v1030
        %1386 = vst.msk [vmem:[#allocation2 + $0xf0] sm:$0xff] %vm1355, %v1032
        %1387 = vst.msk [vmem:[#allocation2 + $0xf8] sm:$0xff] %vm1355, %v1034
        %1388 = vst.msk [vmem:[#allocation2 + $0x100] sm:$0xff] %vm1355, %v1036
        %1389 = vst.msk [vmem:[#allocation2 + $0x108] sm:$0xff] %vm1355, %v1038
        %1390 = vst.msk [vmem:[#allocation2 + $0x110] sm:$0xff] %vm1355, %v1040
        %1391 = vst.msk [vmem:[#allocation2 + $0x118] sm:$0xff] %vm1355, %v1042
        %1392 = vst.msk [vmem:[#allocation2 + $0x120] sm:$0xff] %vm1355, %v1044
        %1393 = vst.msk [vmem:[#allocation2 + $0x128] sm:$0xff] %vm1355, %v1046
        %1394 = vst.msk [vmem:[#allocation2 + $0x130] sm:$0xff] %vm1355, %v1048
        %1395 = vst.msk [vmem:[#allocation2 + $0x138] sm:$0xff] %vm1355, %v1050
        %1396 = vst.msk [vmem:[#allocation2 + $0x140] sm:$0xff] %vm1355, %v1052
        %1397 = vst.msk [vmem:[#allocation2 + $0x148] sm:$0xff] %vm1355, %v1054
        %1398 = vst.msk [vmem:[#allocation2 + $0x150] sm:$0xff] %vm1355, %v1056
        %1399 = vst.msk [vmem:[#allocation2 + $0x158] sm:$0xff] %vm1355, %v1058
        %1400 = vst.msk [vmem:[#allocation2 + $0x160] sm:$0xff] %vm1355, %v1060
        %1401 = vst.msk [vmem:[#allocation2 + $0x168] sm:$0xff] %vm1355, %v1062
        %1402 = vst.msk [vmem:[#allocation2 + $0x170] sm:$0xff] %vm1355, %v1064
        %1403 = vst.msk [vmem:[#allocation2 + $0x178] sm:$0xff] %vm1355, %v1066
        %1404 = vst.msk [vmem:[#allocation2 + $0x180] sm:$0xff] %vm1355, %v1068
        %1405 = vst.msk [vmem:[#allocation2 + $0x188] sm:$0xff] %vm1355, %v1070
        %1406 = vst.msk [vmem:[#allocation2 + $0x190] sm:$0xff] %vm1355, %v1072
        %1407 = vst.msk [vmem:[#allocation2 + $0x198] sm:$0xff] %vm1355, %v1074
        %1408 = vst.msk [vmem:[#allocation2 + $0x1a0] sm:$0xff] %vm1355, %v1076
        %1409 = vst.msk [vmem:[#allocation2 + $0x1a8] sm:$0xff] %vm1355, %v1078
        %1410 = vst.msk [vmem:[#allocation2 + $0x1b0] sm:$0xff] %vm1355, %v1080
        %1411 = vst.msk [vmem:[#allocation2 + $0x1b8] sm:$0xff] %vm1355, %v1082
        %1412 = vst.msk [vmem:[#allocation2 + $0x1c0] sm:$0xff] %vm1355, %v1084
        %1413 = vst.msk [vmem:[#allocation2 + $0x1c8] sm:$0xff] %vm1355, %v1086
        %1414 = vst.msk [vmem:[#allocation2 + $0x1d0] sm:$0xff] %vm1355, %v1088
        %1415 = vst.msk [vmem:[#allocation2 + $0x1d8] sm:$0xff] %vm1355, %v1090
        %1416 = vst.msk [vmem:[#allocation2 + $0x1e0] sm:$0xff] %vm1355, %v1092
        %1417 = vst.msk [vmem:[#allocation2 + $0x1e8] sm:$0xff] %vm1355, %v1094
        %1418 = vst.msk [vmem:[#allocation2 + $0x1f0] sm:$0xff] %vm1355, %v1096
        %1419 = vst.msk [vmem:[#allocation2 + $0x1f8] sm:$0xff] %vm1355, %v1098
        %1420 = vst.msk [vmem:[#allocation2 + $0x200] sm:$0xff] %vm1355, %v1100
        %1421 = vst.msk [vmem:[#allocation2 + $0x208] sm:$0xff] %vm1355, %v1102
        %1422 = vst.msk [vmem:[#allocation2 + $0x210] sm:$0xff] %vm1355, %v1104
        %1423 = vst.msk [vmem:[#allocation2 + $0x218] sm:$0xff] %vm1355, %v1106
        %1424 = vst.msk [vmem:[#allocation2 + $0x220] sm:$0xff] %vm1355, %v1108
        %1425 = vst.msk [vmem:[#allocation2 + $0x228] sm:$0xff] %vm1355, %v1110
        %1426 = vst.msk [vmem:[#allocation2 + $0x230] sm:$0xff] %vm1355, %v1112
        %1427 = vst.msk [vmem:[#allocation2 + $0x238] sm:$0xff] %vm1355, %v1114
        %1428 = vst.msk [vmem:[#allocation2 + $0x240] sm:$0xff] %vm1355, %v1116
        %1429 = vst.msk [vmem:[#allocation2 + $0x248] sm:$0xff] %vm1355, %v1118
        %1430 = vst.msk [vmem:[#allocation2 + $0x250] sm:$0xff] %vm1355, %v1120
        %1431 = vst.msk [vmem:[#allocation2 + $0x258] sm:$0xff] %vm1355, %v1122
        %1432 = vst.msk [vmem:[#allocation2 + $0x260] sm:$0xff] %vm1355, %v1124
        %1433 = vst.msk [vmem:[#allocation2 + $0x268] sm:$0xff] %vm1355, %v1126
        %1434 = vst.msk [vmem:[#allocation2 + $0x270] sm:$0xff] %vm1355, %v1128
        %1435 = vst.msk [vmem:[#allocation2 + $0x278] sm:$0xff] %vm1355, %v1130
        %1436 = vst.msk [vmem:[#allocation2 + $0x280] sm:$0xff] %vm1355, %v1132
        %1437 = vst.msk [vmem:[#allocation2 + $0x288] sm:$0xff] %vm1355, %v1134
        %1438 = vst.msk [vmem:[#allocation2 + $0x290] sm:$0xff] %vm1355, %v1136
        %1439 = vst.msk [vmem:[#allocation2 + $0x298] sm:$0xff] %vm1355, %v1138
        %1440 = vst.msk [vmem:[#allocation2 + $0x2a0] sm:$0xff] %vm1355, %v1140
        %1441 = vst.msk [vmem:[#allocation2 + $0x2a8] sm:$0xff] %vm1355, %v1142
        %1442 = vst.msk [vmem:[#allocation2 + $0x2b0] sm:$0xff] %vm1355, %v1144
        %1443 = vst.msk [vmem:[#allocation2 + $0x2b8] sm:$0xff] %vm1355, %v1146
        %1444 = vst.msk [vmem:[#allocation2 + $0x2c0] sm:$0xff] %vm1355, %v1148
        %1445 = vst.msk [vmem:[#allocation2 + $0x2c8] sm:$0xff] %vm1355, %v1150
        %1446 = vst.msk [vmem:[#allocation2 + $0x2d0] sm:$0xff] %vm1355, %v1152
        %1447 = vst.msk [vmem:[#allocation2 + $0x2d8] sm:$0xff] %vm1355, %v1154
        %1448 = vst.msk [vmem:[#allocation2 + $0x2e0] sm:$0xff] %vm1355, %v1156
        %1449 = vst.msk [vmem:[#allocation2 + $0x2e8] sm:$0xff] %vm1355, %v1158
        %1450 = vst.msk [vmem:[#allocation2 + $0x2f0] sm:$0xff] %vm1355, %v1160
        %1451 = vst.msk [vmem:[#allocation2 + $0x2f8] sm:$0xff] %vm1355, %v1162
        %1452 = vst.msk [vmem:[#allocation2 + $0x300] sm:$0xff] %vm1355, %v1164
        %1453 = vst.msk [vmem:[#allocation2 + $0x308] sm:$0xff] %vm1355, %v1166
        %1454 = vst.msk [vmem:[#allocation2 + $0x310] sm:$0xff] %vm1355, %v1168
        %1455 = vst.msk [vmem:[#allocation2 + $0x318] sm:$0xff] %vm1355, %v1170
        %1456 = vst.msk [vmem:[#allocation2 + $0x320] sm:$0xff] %vm1355, %v1172
        %1457 = vst.msk [vmem:[#allocation2 + $0x328] sm:$0xff] %vm1355, %v1174
        %1458 = vst.msk [vmem:[#allocation2 + $0x330] sm:$0xff] %vm1355, %v1176
        %1459 = vst.msk [vmem:[#allocation2 + $0x338] sm:$0xff] %vm1355, %v1178
        %1460 = vst.msk [vmem:[#allocation2 + $0x340] sm:$0xff] %vm1355, %v1180
        %1461 = vst.msk [vmem:[#allocation2 + $0x348] sm:$0xff] %vm1355, %v1182
        %1462 = vst.msk [vmem:[#allocation2 + $0x350] sm:$0xff] %vm1355, %v1184
        %1463 = vst.msk [vmem:[#allocation2 + $0x358] sm:$0xff] %vm1355, %v1186
        %1464 = vst.msk [vmem:[#allocation2 + $0x360] sm:$0xff] %vm1355, %v1188
        %1465 = vst.msk [vmem:[#allocation2 + $0x368] sm:$0xff] %vm1355, %v1190
        %1466 = vst.msk [vmem:[#allocation2 + $0x370] sm:$0xff] %vm1355, %v1192
        %1467 = vst.msk [vmem:[#allocation2 + $0x378] sm:$0xff] %vm1355, %v1194
        %1468 = vst.msk [vmem:[#allocation2 + $0x380] sm:$0xff] %vm1355, %v1196
        %1469 = vst.msk [vmem:[#allocation2 + $0x388] sm:$0xff] %vm1355, %v1198
        %1470 = vst.msk [vmem:[#allocation2 + $0x390] sm:$0xff] %vm1355, %v1200
        %1471 = vst.msk [vmem:[#allocation2 + $0x398] sm:$0xff] %vm1355, %v1202
        %1472 = vst.msk [vmem:[#allocation2 + $0x3a0] sm:$0xff] %vm1355, %v1204
        %1473 = vst.msk [vmem:[#allocation2 + $0x3a8] sm:$0xff] %vm1355, %v1206
        %1474 = vst.msk [vmem:[#allocation2 + $0x3b0] sm:$0xff] %vm1355, %v1208
        %1475 = vst.msk [vmem:[#allocation2 + $0x3b8] sm:$0xff] %vm1355, %v1210
        %1476 = vst.msk [vmem:[#allocation2 + $0x3c0] sm:$0xff] %vm1355, %v1212
        %1477 = vst.msk [vmem:[#allocation2 + $0x3c8] sm:$0xff] %vm1355, %v1214
        %1478 = vst.msk [vmem:[#allocation2 + $0x3d0] sm:$0xff] %vm1355, %v1216
        %1479 = vst.msk [vmem:[#allocation2 + $0x3d8] sm:$0xff] %vm1355, %v1218
        %1480 = vst.msk [vmem:[#allocation2 + $0x3e0] sm:$0xff] %vm1355, %v1220
        %1481 = vst.msk [vmem:[#allocation2 + $0x3e8] sm:$0xff] %vm1355, %v1222
        %1482 = vst.msk [vmem:[#allocation2 + $0x3f0] sm:$0xff] %vm1355, %v1224
        %1483 = vst.msk [vmem:[#allocation2 + $0x3f8] sm:$0xff] %vm1355, %v1226
        %vm1484 = vcmask 1045504
        %v1485 = vrot.slane %v223, 2
        %v1486 = vrot.slane %v224, 2
        %v1487 = vsel %vm1484, %v1485, %v1486
        %v1488 = vrot.slane %v225, 2
        %v1489 = vsel %vm1484, %v1486, %v1488
        %v1490 = vrot.slane %v226, 2
        %v1491 = vsel %vm1484, %v1488, %v1490
        %v1492 = vrot.slane %v227, 2
        %v1493 = vsel %vm1484, %v1490, %v1492
        %v1494 = vrot.slane %v228, 2
        %v1495 = vrot.slane %v229, 2
        %v1496 = vsel %vm1484, %v1494, %v1495
        %v1497 = vrot.slane %v230, 2
        %v1498 = vsel %vm1484, %v1495, %v1497
        %v1499 = vrot.slane %v231, 2
        %v1500 = vsel %vm1484, %v1497, %v1499
        %v1501 = vrot.slane %v232, 2
        %v1502 = vsel %vm1484, %v1499, %v1501
        %v1503 = vrot.slane %v233, 2
        %v1504 = vrot.slane %v234, 2
        %v1505 = vsel %vm1484, %v1503, %v1504
        %v1506 = vrot.slane %v235, 2
        %v1507 = vsel %vm1484, %v1504, %v1506
        %v1508 = vrot.slane %v236, 2
        %v1509 = vsel %vm1484, %v1506, %v1508
        %v1510 = vrot.slane %v237, 2
        %v1511 = vsel %vm1484, %v1508, %v1510
        %v1512 = vrot.slane %v238, 2
        %v1513 = vrot.slane %v239, 2
        %v1514 = vsel %vm1484, %v1512, %v1513
        %v1515 = vrot.slane %v240, 2
        %v1516 = vsel %vm1484, %v1513, %v1515
        %v1517 = vrot.slane %v241, 2
        %v1518 = vsel %vm1484, %v1515, %v1517
        %v1519 = vrot.slane %v242, 2
        %v1520 = vsel %vm1484, %v1517, %v1519
        %v1521 = vrot.slane %v243, 2
        %v1522 = vrot.slane %v244, 2
        %v1523 = vsel %vm1484, %v1521, %v1522
        %v1524 = vrot.slane %v245, 2
        %v1525 = vsel %vm1484, %v1522, %v1524
        %v1526 = vrot.slane %v246, 2
        %v1527 = vsel %vm1484, %v1524, %v1526
        %v1528 = vrot.slane %v247, 2
        %v1529 = vsel %vm1484, %v1526, %v1528
        %v1530 = vrot.slane %v248, 2
        %v1531 = vrot.slane %v249, 2
        %v1532 = vsel %vm1484, %v1530, %v1531
        %v1533 = vrot.slane %v250, 2
        %v1534 = vsel %vm1484, %v1531, %v1533
        %v1535 = vrot.slane %v251, 2
        %v1536 = vsel %vm1484, %v1533, %v1535
        %v1537 = vrot.slane %v252, 2
        %v1538 = vsel %vm1484, %v1535, %v1537
        %v1539 = vrot.slane %v253, 2
        %v1540 = vrot.slane %v254, 2
        %v1541 = vsel %vm1484, %v1539, %v1540
        %v1542 = vrot.slane %v255, 2
        %v1543 = vsel %vm1484, %v1540, %v1542
        %v1544 = vrot.slane %v256, 2
        %v1545 = vsel %vm1484, %v1542, %v1544
        %v1546 = vrot.slane %v257, 2
        %v1547 = vsel %vm1484, %v1544, %v1546
        %v1548 = vrot.slane %v258, 2
        %v1549 = vrot.slane %v259, 2
        %v1550 = vsel %vm1484, %v1548, %v1549
        %v1551 = vrot.slane %v260, 2
        %v1552 = vsel %vm1484, %v1549, %v1551
        %v1553 = vrot.slane %v261, 2
        %v1554 = vsel %vm1484, %v1551, %v1553
        %v1555 = vrot.slane %v262, 2
        %v1556 = vsel %vm1484, %v1553, %v1555
        %v1557 = vrot.slane %v263, 2
        %v1558 = vrot.slane %v264, 2
        %v1559 = vsel %vm1484, %v1557, %v1558
        %v1560 = vrot.slane %v265, 2
        %v1561 = vsel %vm1484, %v1558, %v1560
        %v1562 = vrot.slane %v266, 2
        %v1563 = vsel %vm1484, %v1560, %v1562
        %v1564 = vrot.slane %v267, 2
        %v1565 = vsel %vm1484, %v1562, %v1564
        %v1566 = vrot.slane %v268, 2
        %v1567 = vrot.slane %v269, 2
        %v1568 = vsel %vm1484, %v1566, %v1567
        %v1569 = vrot.slane %v270, 2
        %v1570 = vsel %vm1484, %v1567, %v1569
        %v1571 = vrot.slane %v271, 2
        %v1572 = vsel %vm1484, %v1569, %v1571
        %v1573 = vrot.slane %v272, 2
        %v1574 = vsel %vm1484, %v1571, %v1573
        %v1575 = vrot.slane %v273, 2
        %v1576 = vrot.slane %v274, 2
        %v1577 = vsel %vm1484, %v1575, %v1576
        %v1578 = vrot.slane %v275, 2
        %v1579 = vsel %vm1484, %v1576, %v1578
        %v1580 = vrot.slane %v276, 2
        %v1581 = vsel %vm1484, %v1578, %v1580
        %v1582 = vrot.slane %v277, 2
        %v1583 = vsel %vm1484, %v1580, %v1582
        %v1584 = vrot.slane %v278, 2
        %v1585 = vrot.slane %v279, 2
        %v1586 = vsel %vm1484, %v1584, %v1585
        %v1587 = vrot.slane %v280, 2
        %v1588 = vsel %vm1484, %v1585, %v1587
        %v1589 = vrot.slane %v281, 2
        %v1590 = vsel %vm1484, %v1587, %v1589
        %v1591 = vrot.slane %v282, 2
        %v1592 = vsel %vm1484, %v1589, %v1591
        %v1593 = vrot.slane %v283, 2
        %v1594 = vrot.slane %v284, 2
        %v1595 = vsel %vm1484, %v1593, %v1594
        %v1596 = vrot.slane %v285, 2
        %v1597 = vsel %vm1484, %v1594, %v1596
        %v1598 = vrot.slane %v286, 2
        %v1599 = vsel %vm1484, %v1596, %v1598
        %v1600 = vrot.slane %v287, 2
        %v1601 = vsel %vm1484, %v1598, %v1600
        %v1602 = vrot.slane %v288, 2
        %v1603 = vrot.slane %v289, 2
        %v1604 = vsel %vm1484, %v1602, %v1603
        %v1605 = vrot.slane %v290, 2
        %v1606 = vsel %vm1484, %v1603, %v1605
        %v1607 = vrot.slane %v291, 2
        %v1608 = vsel %vm1484, %v1605, %v1607
        %v1609 = vrot.slane %v292, 2
        %v1610 = vsel %vm1484, %v1607, %v1609
        %v1611 = vrot.slane %v293, 2
        %v1612 = vrot.slane %v294, 2
        %v1613 = vsel %vm1484, %v1611, %v1612
        %v1614 = vrot.slane %v295, 2
        %v1615 = vsel %vm1484, %v1612, %v1614
        %v1616 = vrot.slane %v296, 2
        %v1617 = vsel %vm1484, %v1614, %v1616
        %v1618 = vrot.slane %v297, 2
        %v1619 = vsel %vm1484, %v1616, %v1618
        %v1620 = vrot.slane %v298, 2
        %v1621 = vrot.slane %v299, 2
        %v1622 = vsel %vm1484, %v1620, %v1621
        %v1623 = vrot.slane %v300, 2
        %v1624 = vsel %vm1484, %v1621, %v1623
        %v1625 = vrot.slane %v301, 2
        %v1626 = vsel %vm1484, %v1623, %v1625
        %v1627 = vrot.slane %v302, 2
        %v1628 = vsel %vm1484, %v1625, %v1627
        %v1629 = vrot.slane %v303, 2
        %v1630 = vrot.slane %v304, 2
        %v1631 = vsel %vm1484, %v1629, %v1630
        %v1632 = vrot.slane %v305, 2
        %v1633 = vsel %vm1484, %v1630, %v1632
        %v1634 = vrot.slane %v306, 2
        %v1635 = vsel %vm1484, %v1632, %v1634
        %v1636 = vrot.slane %v307, 2
        %v1637 = vsel %vm1484, %v1634, %v1636
        %v1638 = vrot.slane %v308, 2
        %v1639 = vrot.slane %v309, 2
        %v1640 = vsel %vm1484, %v1638, %v1639
        %v1641 = vrot.slane %v310, 2
        %v1642 = vsel %vm1484, %v1639, %v1641
        %v1643 = vrot.slane %v311, 2
        %v1644 = vsel %vm1484, %v1641, %v1643
        %v1645 = vrot.slane %v312, 2
        %v1646 = vsel %vm1484, %v1643, %v1645
        %v1647 = vrot.slane %v313, 2
        %v1648 = vrot.slane %v314, 2
        %v1649 = vsel %vm1484, %v1647, %v1648
        %v1650 = vrot.slane %v315, 2
        %v1651 = vsel %vm1484, %v1648, %v1650
        %v1652 = vrot.slane %v316, 2
        %v1653 = vsel %vm1484, %v1650, %v1652
        %v1654 = vrot.slane %v317, 2
        %v1655 = vsel %vm1484, %v1652, %v1654
        %v1656 = vrot.slane %v318, 2
        %v1657 = vrot.slane %v319, 2
        %v1658 = vsel %vm1484, %v1656, %v1657
        %v1659 = vrot.slane %v320, 2
        %v1660 = vsel %vm1484, %v1657, %v1659
        %v1661 = vrot.slane %v321, 2
        %v1662 = vsel %vm1484, %v1659, %v1661
        %v1663 = vrot.slane %v322, 2
        %v1664 = vsel %vm1484, %v1661, %v1663
        %v1665 = vrot.slane %v323, 2
        %v1666 = vrot.slane %v324, 2
        %v1667 = vsel %vm1484, %v1665, %v1666
        %v1668 = vrot.slane %v325, 2
        %v1669 = vsel %vm1484, %v1666, %v1668
        %v1670 = vrot.slane %v326, 2
        %v1671 = vsel %vm1484, %v1668, %v1670
        %v1672 = vrot.slane %v327, 2
        %v1673 = vsel %vm1484, %v1670, %v1672
        %v1674 = vrot.slane %v328, 2
        %v1675 = vrot.slane %v329, 2
        %v1676 = vsel %vm1484, %v1674, %v1675
        %v1677 = vrot.slane %v330, 2
        %v1678 = vsel %vm1484, %v1675, %v1677
        %v1679 = vrot.slane %v331, 2
        %v1680 = vsel %vm1484, %v1677, %v1679
        %v1681 = vrot.slane %v332, 2
        %v1682 = vsel %vm1484, %v1679, %v1681
        %v1683 = vrot.slane %v333, 2
        %v1684 = vrot.slane %v334, 2
        %v1685 = vsel %vm1484, %v1683, %v1684
        %v1686 = vrot.slane %v335, 2
        %v1687 = vsel %vm1484, %v1684, %v1686
        %v1688 = vrot.slane %v336, 2
        %v1689 = vsel %vm1484, %v1686, %v1688
        %v1690 = vrot.slane %v337, 2
        %v1691 = vsel %vm1484, %v1688, %v1690
        %v1692 = vrot.slane %v338, 2
        %v1693 = vrot.slane %v339, 2
        %v1694 = vsel %vm1484, %v1692, %v1693
        %v1695 = vrot.slane %v340, 2
        %v1696 = vsel %vm1484, %v1693, %v1695
        %v1697 = vrot.slane %v341, 2
        %v1698 = vsel %vm1484, %v1695, %v1697
        %v1699 = vrot.slane %v342, 2
        %v1700 = vsel %vm1484, %v1697, %v1699
        %v1701 = vrot.slane %v343, 2
        %v1702 = vrot.slane %v344, 2
        %v1703 = vsel %vm1484, %v1701, %v1702
        %v1704 = vrot.slane %v345, 2
        %v1705 = vsel %vm1484, %v1702, %v1704
        %v1706 = vrot.slane %v346, 2
        %v1707 = vsel %vm1484, %v1704, %v1706
        %v1708 = vrot.slane %v347, 2
        %v1709 = vsel %vm1484, %v1706, %v1708
        %v1710 = vrot.slane %v348, 2
        %v1711 = vrot.slane %v349, 2
        %v1712 = vsel %vm1484, %v1710, %v1711
        %v1713 = vrot.slane %v350, 2
        %v1714 = vsel %vm1484, %v1711, %v1713
        %v1715 = vrot.slane %v351, 2
        %v1716 = vsel %vm1484, %v1713, %v1715
        %v1717 = vrot.slane %v352, 2
        %v1718 = vsel %vm1484, %v1715, %v1717
        %v1719 = vrot.slane %v353, 2
        %v1720 = vrot.slane %v354, 2
        %v1721 = vsel %vm1484, %v1719, %v1720
        %v1722 = vrot.slane %v355, 2
        %v1723 = vsel %vm1484, %v1720, %v1722
        %v1724 = vrot.slane %v356, 2
        %v1725 = vsel %vm1484, %v1722, %v1724
        %v1726 = vrot.slane %v357, 2
        %v1727 = vsel %vm1484, %v1724, %v1726
        %v1728 = vrot.slane %v358, 2
        %v1729 = vrot.slane %v359, 2
        %v1730 = vsel %vm1484, %v1728, %v1729
        %v1731 = vrot.slane %v360, 2
        %v1732 = vsel %vm1484, %v1729, %v1731
        %v1733 = vrot.slane %v361, 2
        %v1734 = vsel %vm1484, %v1731, %v1733
        %v1735 = vrot.slane %v362, 2
        %v1736 = vsel %vm1484, %v1733, %v1735
        %v1737 = vrot.slane %v363, 2
        %v1738 = vrot.slane %v364, 2
        %v1739 = vsel %vm1484, %v1737, %v1738
        %v1740 = vrot.slane %v365, 2
        %v1741 = vsel %vm1484, %v1738, %v1740
        %v1742 = vrot.slane %v366, 2
        %v1743 = vsel %vm1484, %v1740, %v1742
        %v1744 = vrot.slane %v367, 2
        %v1745 = vsel %vm1484, %v1742, %v1744
        %v1746 = vrot.slane %v368, 2
        %v1747 = vrot.slane %v369, 2
        %v1748 = vsel %vm1484, %v1746, %v1747
        %v1749 = vrot.slane %v370, 2
        %v1750 = vsel %vm1484, %v1747, %v1749
        %v1751 = vrot.slane %v371, 2
        %v1752 = vsel %vm1484, %v1749, %v1751
        %v1753 = vrot.slane %v372, 2
        %v1754 = vsel %vm1484, %v1751, %v1753
        %v1755 = vrot.slane %v373, 2
        %v1756 = vrot.slane %v374, 2
        %v1757 = vsel %vm1484, %v1755, %v1756
        %v1758 = vrot.slane %v375, 2
        %v1759 = vsel %vm1484, %v1756, %v1758
        %v1760 = vrot.slane %v376, 2
        %v1761 = vsel %vm1484, %v1758, %v1760
        %v1762 = vrot.slane %v377, 2
        %v1763 = vsel %vm1484, %v1760, %v1762
        %v1764 = vrot.slane %v378, 2
        %v1765 = vrot.slane %v379, 2
        %v1766 = vsel %vm1484, %v1764, %v1765
        %v1767 = vrot.slane %v380, 2
        %v1768 = vsel %vm1484, %v1765, %v1767
        %v1769 = vrot.slane %v381, 2
        %v1770 = vsel %vm1484, %v1767, %v1769
        %v1771 = vrot.slane %v382, 2
        %v1772 = vsel %vm1484, %v1769, %v1771
        %1773 = vrot.lane.b32.xlu0 %v1487, 8
        %v1774 = vpop.permute.xlu0 %1773
        %1775 = vrot.lane.b32.xlu0 %v1489, 8
        %v1776 = vpop.permute.xlu0 %1775
        %1777 = vrot.lane.b32.xlu0 %v1491, 8
        %v1778 = vpop.permute.xlu0 %1777
        %1779 = vrot.lane.b32.xlu0 %v1493, 8
        %v1780 = vpop.permute.xlu0 %1779
        %1781 = vrot.lane.b32.xlu0 %v1496, 8
        %v1782 = vpop.permute.xlu0 %1781
        %1783 = vrot.lane.b32.xlu0 %v1498, 8
        %v1784 = vpop.permute.xlu0 %1783
        %1785 = vrot.lane.b32.xlu0 %v1500, 8
        %v1786 = vpop.permute.xlu0 %1785
        %1787 = vrot.lane.b32.xlu0 %v1502, 8
        %v1788 = vpop.permute.xlu0 %1787
        %1789 = vrot.lane.b32.xlu0 %v1505, 8
        %v1790 = vpop.permute.xlu0 %1789
        %1791 = vrot.lane.b32.xlu0 %v1507, 8
        %v1792 = vpop.permute.xlu0 %1791
        %1793 = vrot.lane.b32.xlu0 %v1509, 8
        %v1794 = vpop.permute.xlu0 %1793
        %1795 = vrot.lane.b32.xlu0 %v1511, 8
        %v1796 = vpop.permute.xlu0 %1795
        %1797 = vrot.lane.b32.xlu0 %v1514, 8
        %v1798 = vpop.permute.xlu0 %1797
        %1799 = vrot.lane.b32.xlu0 %v1516, 8
        %v1800 = vpop.permute.xlu0 %1799
        %1801 = vrot.lane.b32.xlu0 %v1518, 8
        %v1802 = vpop.permute.xlu0 %1801
        %1803 = vrot.lane.b32.xlu0 %v1520, 8
        %v1804 = vpop.permute.xlu0 %1803
        %1805 = vrot.lane.b32.xlu0 %v1523, 8
        %v1806 = vpop.permute.xlu0 %1805
        %1807 = vrot.lane.b32.xlu0 %v1525, 8
        %v1808 = vpop.permute.xlu0 %1807
        %1809 = vrot.lane.b32.xlu0 %v1527, 8
        %v1810 = vpop.permute.xlu0 %1809
        %1811 = vrot.lane.b32.xlu0 %v1529, 8
        %v1812 = vpop.permute.xlu0 %1811
        %1813 = vrot.lane.b32.xlu0 %v1532, 8
        %v1814 = vpop.permute.xlu0 %1813
        %1815 = vrot.lane.b32.xlu0 %v1534, 8
        %v1816 = vpop.permute.xlu0 %1815
        %1817 = vrot.lane.b32.xlu0 %v1536, 8
        %v1818 = vpop.permute.xlu0 %1817
        %1819 = vrot.lane.b32.xlu0 %v1538, 8
        %v1820 = vpop.permute.xlu0 %1819
        %1821 = vrot.lane.b32.xlu0 %v1541, 8
        %v1822 = vpop.permute.xlu0 %1821
        %1823 = vrot.lane.b32.xlu0 %v1543, 8
        %v1824 = vpop.permute.xlu0 %1823
        %1825 = vrot.lane.b32.xlu0 %v1545, 8
        %v1826 = vpop.permute.xlu0 %1825
        %1827 = vrot.lane.b32.xlu0 %v1547, 8
        %v1828 = vpop.permute.xlu0 %1827
        %1829 = vrot.lane.b32.xlu0 %v1550, 8
        %v1830 = vpop.permute.xlu0 %1829
        %1831 = vrot.lane.b32.xlu0 %v1552, 8
        %v1832 = vpop.permute.xlu0 %1831
        %1833 = vrot.lane.b32.xlu0 %v1554, 8
        %v1834 = vpop.permute.xlu0 %1833
        %1835 = vrot.lane.b32.xlu0 %v1556, 8
        %v1836 = vpop.permute.xlu0 %1835
        %1837 = vrot.lane.b32.xlu0 %v1559, 8
        %v1838 = vpop.permute.xlu0 %1837
        %1839 = vrot.lane.b32.xlu0 %v1561, 8
        %v1840 = vpop.permute.xlu0 %1839
        %1841 = vrot.lane.b32.xlu0 %v1563, 8
        %v1842 = vpop.permute.xlu0 %1841
        %1843 = vrot.lane.b32.xlu0 %v1565, 8
        %v1844 = vpop.permute.xlu0 %1843
        %1845 = vrot.lane.b32.xlu0 %v1568, 8
        %v1846 = vpop.permute.xlu0 %1845
        %1847 = vrot.lane.b32.xlu0 %v1570, 8
        %v1848 = vpop.permute.xlu0 %1847
        %1849 = vrot.lane.b32.xlu0 %v1572, 8
        %v1850 = vpop.permute.xlu0 %1849
        %1851 = vrot.lane.b32.xlu0 %v1574, 8
        %v1852 = vpop.permute.xlu0 %1851
        %1853 = vrot.lane.b32.xlu0 %v1577, 8
        %v1854 = vpop.permute.xlu0 %1853
        %1855 = vrot.lane.b32.xlu0 %v1579, 8
        %v1856 = vpop.permute.xlu0 %1855
        %1857 = vrot.lane.b32.xlu0 %v1581, 8
        %v1858 = vpop.permute.xlu0 %1857
        %1859 = vrot.lane.b32.xlu0 %v1583, 8
        %v1860 = vpop.permute.xlu0 %1859
        %1861 = vrot.lane.b32.xlu0 %v1586, 8
        %v1862 = vpop.permute.xlu0 %1861
        %1863 = vrot.lane.b32.xlu0 %v1588, 8
        %v1864 = vpop.permute.xlu0 %1863
        %1865 = vrot.lane.b32.xlu0 %v1590, 8
        %v1866 = vpop.permute.xlu0 %1865
        %1867 = vrot.lane.b32.xlu0 %v1592, 8
        %v1868 = vpop.permute.xlu0 %1867
        %1869 = vrot.lane.b32.xlu0 %v1595, 8
        %v1870 = vpop.permute.xlu0 %1869
        %1871 = vrot.lane.b32.xlu0 %v1597, 8
        %v1872 = vpop.permute.xlu0 %1871
        %1873 = vrot.lane.b32.xlu0 %v1599, 8
        %v1874 = vpop.permute.xlu0 %1873
        %1875 = vrot.lane.b32.xlu0 %v1601, 8
        %v1876 = vpop.permute.xlu0 %1875
        %1877 = vrot.lane.b32.xlu0 %v1604, 8
        %v1878 = vpop.permute.xlu0 %1877
        %1879 = vrot.lane.b32.xlu0 %v1606, 8
        %v1880 = vpop.permute.xlu0 %1879
        %1881 = vrot.lane.b32.xlu0 %v1608, 8
        %v1882 = vpop.permute.xlu0 %1881
        %1883 = vrot.lane.b32.xlu0 %v1610, 8
        %v1884 = vpop.permute.xlu0 %1883
        %1885 = vrot.lane.b32.xlu0 %v1613, 8
        %v1886 = vpop.permute.xlu0 %1885
        %1887 = vrot.lane.b32.xlu0 %v1615, 8
        %v1888 = vpop.permute.xlu0 %1887
        %1889 = vrot.lane.b32.xlu0 %v1617, 8
        %v1890 = vpop.permute.xlu0 %1889
        %1891 = vrot.lane.b32.xlu0 %v1619, 8
        %v1892 = vpop.permute.xlu0 %1891
        %1893 = vrot.lane.b32.xlu0 %v1622, 8
        %v1894 = vpop.permute.xlu0 %1893
        %1895 = vrot.lane.b32.xlu0 %v1624, 8
        %v1896 = vpop.permute.xlu0 %1895
        %1897 = vrot.lane.b32.xlu0 %v1626, 8
        %v1898 = vpop.permute.xlu0 %1897
        %1899 = vrot.lane.b32.xlu0 %v1628, 8
        %v1900 = vpop.permute.xlu0 %1899
        %1901 = vrot.lane.b32.xlu0 %v1631, 8
        %v1902 = vpop.permute.xlu0 %1901
        %1903 = vrot.lane.b32.xlu0 %v1633, 8
        %v1904 = vpop.permute.xlu0 %1903
        %1905 = vrot.lane.b32.xlu0 %v1635, 8
        %v1906 = vpop.permute.xlu0 %1905
        %1907 = vrot.lane.b32.xlu0 %v1637, 8
        %v1908 = vpop.permute.xlu0 %1907
        %1909 = vrot.lane.b32.xlu0 %v1640, 8
        %v1910 = vpop.permute.xlu0 %1909
        %1911 = vrot.lane.b32.xlu0 %v1642, 8
        %v1912 = vpop.permute.xlu0 %1911
        %1913 = vrot.lane.b32.xlu0 %v1644, 8
        %v1914 = vpop.permute.xlu0 %1913
        %1915 = vrot.lane.b32.xlu0 %v1646, 8
        %v1916 = vpop.permute.xlu0 %1915
        %1917 = vrot.lane.b32.xlu0 %v1649, 8
        %v1918 = vpop.permute.xlu0 %1917
        %1919 = vrot.lane.b32.xlu0 %v1651, 8
        %v1920 = vpop.permute.xlu0 %1919
        %1921 = vrot.lane.b32.xlu0 %v1653, 8
        %v1922 = vpop.permute.xlu0 %1921
        %1923 = vrot.lane.b32.xlu0 %v1655, 8
        %v1924 = vpop.permute.xlu0 %1923
        %1925 = vrot.lane.b32.xlu0 %v1658, 8
        %v1926 = vpop.permute.xlu0 %1925
        %1927 = vrot.lane.b32.xlu0 %v1660, 8
        %v1928 = vpop.permute.xlu0 %1927
        %1929 = vrot.lane.b32.xlu0 %v1662, 8
        %v1930 = vpop.permute.xlu0 %1929
        %1931 = vrot.lane.b32.xlu0 %v1664, 8
        %v1932 = vpop.permute.xlu0 %1931
        %1933 = vrot.lane.b32.xlu0 %v1667, 8
        %v1934 = vpop.permute.xlu0 %1933
        %1935 = vrot.lane.b32.xlu0 %v1669, 8
        %v1936 = vpop.permute.xlu0 %1935
        %1937 = vrot.lane.b32.xlu0 %v1671, 8
        %v1938 = vpop.permute.xlu0 %1937
        %1939 = vrot.lane.b32.xlu0 %v1673, 8
        %v1940 = vpop.permute.xlu0 %1939
        %1941 = vrot.lane.b32.xlu0 %v1676, 8
        %v1942 = vpop.permute.xlu0 %1941
        %1943 = vrot.lane.b32.xlu0 %v1678, 8
        %v1944 = vpop.permute.xlu0 %1943
        %1945 = vrot.lane.b32.xlu0 %v1680, 8
        %v1946 = vpop.permute.xlu0 %1945
        %1947 = vrot.lane.b32.xlu0 %v1682, 8
        %v1948 = vpop.permute.xlu0 %1947
        %1949 = vrot.lane.b32.xlu0 %v1685, 8
        %v1950 = vpop.permute.xlu0 %1949
        %1951 = vrot.lane.b32.xlu0 %v1687, 8
        %v1952 = vpop.permute.xlu0 %1951
        %1953 = vrot.lane.b32.xlu0 %v1689, 8
        %v1954 = vpop.permute.xlu0 %1953
        %1955 = vrot.lane.b32.xlu0 %v1691, 8
        %v1956 = vpop.permute.xlu0 %1955
        %1957 = vrot.lane.b32.xlu0 %v1694, 8
        %v1958 = vpop.permute.xlu0 %1957
        %1959 = vrot.lane.b32.xlu0 %v1696, 8
        %v1960 = vpop.permute.xlu0 %1959
        %1961 = vrot.lane.b32.xlu0 %v1698, 8
        %v1962 = vpop.permute.xlu0 %1961
        %1963 = vrot.lane.b32.xlu0 %v1700, 8
        %v1964 = vpop.permute.xlu0 %1963
        %1965 = vrot.lane.b32.xlu0 %v1703, 8
        %v1966 = vpop.permute.xlu0 %1965
        %1967 = vrot.lane.b32.xlu0 %v1705, 8
        %v1968 = vpop.permute.xlu0 %1967
        %1969 = vrot.lane.b32.xlu0 %v1707, 8
        %v1970 = vpop.permute.xlu0 %1969
        %1971 = vrot.lane.b32.xlu0 %v1709, 8
        %v1972 = vpop.permute.xlu0 %1971
        %1973 = vrot.lane.b32.xlu0 %v1712, 8
        %v1974 = vpop.permute.xlu0 %1973
        %1975 = vrot.lane.b32.xlu0 %v1714, 8
        %v1976 = vpop.permute.xlu0 %1975
        %1977 = vrot.lane.b32.xlu0 %v1716, 8
        %v1978 = vpop.permute.xlu0 %1977
        %1979 = vrot.lane.b32.xlu0 %v1718, 8
        %v1980 = vpop.permute.xlu0 %1979
        %1981 = vrot.lane.b32.xlu0 %v1721, 8
        %v1982 = vpop.permute.xlu0 %1981
        %1983 = vrot.lane.b32.xlu0 %v1723, 8
        %v1984 = vpop.permute.xlu0 %1983
        %1985 = vrot.lane.b32.xlu0 %v1725, 8
        %v1986 = vpop.permute.xlu0 %1985
        %1987 = vrot.lane.b32.xlu0 %v1727, 8
        %v1988 = vpop.permute.xlu0 %1987
        %1989 = vrot.lane.b32.xlu0 %v1730, 8
        %v1990 = vpop.permute.xlu0 %1989
        %1991 = vrot.lane.b32.xlu0 %v1732, 8
        %v1992 = vpop.permute.xlu0 %1991
        %1993 = vrot.lane.b32.xlu0 %v1734, 8
        %v1994 = vpop.permute.xlu0 %1993
        %1995 = vrot.lane.b32.xlu0 %v1736, 8
        %v1996 = vpop.permute.xlu0 %1995
        %1997 = vrot.lane.b32.xlu0 %v1739, 8
        %v1998 = vpop.permute.xlu0 %1997
        %1999 = vrot.lane.b32.xlu0 %v1741, 8
        %v2000 = vpop.permute.xlu0 %1999
        %2001 = vrot.lane.b32.xlu0 %v1743, 8
        %v2002 = vpop.permute.xlu0 %2001
        %2003 = vrot.lane.b32.xlu0 %v1745, 8
        %v2004 = vpop.permute.xlu0 %2003
        %2005 = vrot.lane.b32.xlu0 %v1748, 8
        %v2006 = vpop.permute.xlu0 %2005
        %2007 = vrot.lane.b32.xlu0 %v1750, 8
        %v2008 = vpop.permute.xlu0 %2007
        %2009 = vrot.lane.b32.xlu0 %v1752, 8
        %v2010 = vpop.permute.xlu0 %2009
        %2011 = vrot.lane.b32.xlu0 %v1754, 8
        %v2012 = vpop.permute.xlu0 %2011
        %2013 = vrot.lane.b32.xlu0 %v1757, 8
        %v2014 = vpop.permute.xlu0 %2013
        %2015 = vrot.lane.b32.xlu0 %v1759, 8
        %v2016 = vpop.permute.xlu0 %2015
        %2017 = vrot.lane.b32.xlu0 %v1761, 8
        %v2018 = vpop.permute.xlu0 %2017
        %2019 = vrot.lane.b32.xlu0 %v1763, 8
        %v2020 = vpop.permute.xlu0 %2019
        %2021 = vrot.lane.b32.xlu0 %v1766, 8
        %v2022 = vpop.permute.xlu0 %2021
        %2023 = vrot.lane.b32.xlu0 %v1768, 8
        %v2024 = vpop.permute.xlu0 %2023
        %2025 = vrot.lane.b32.xlu0 %v1770, 8
        %v2026 = vpop.permute.xlu0 %2025
        %2027 = vrot.lane.b32.xlu0 %v1772, 8
        %v2028 = vpop.permute.xlu0 %2027
        %vm2157 = vcmask 97344
        %2158 = vst.msk [vmem:[#allocation2] sm:$0xff] %vm2157, %v1774
        %2159 = vst.msk [vmem:[#allocation2 + $0x8] sm:$0xff] %vm2157, %v1776
        %2160 = vst.msk [vmem:[#allocation2 + $0x10] sm:$0xff] %vm2157, %v1778
        %2161 = vst.msk [vmem:[#allocation2 + $0x18] sm:$0xff] %vm2157, %v1780
        %2162 = vst.msk [vmem:[#allocation2 + $0x20] sm:$0xff] %vm2157, %v1782
        %2163 = vst.msk [vmem:[#allocation2 + $0x28] sm:$0xff] %vm2157, %v1784
        %2164 = vst.msk [vmem:[#allocation2 + $0x30] sm:$0xff] %vm2157, %v1786
        %2165 = vst.msk [vmem:[#allocation2 + $0x38] sm:$0xff] %vm2157, %v1788
        %2166 = vst.msk [vmem:[#allocation2 + $0x40] sm:$0xff] %vm2157, %v1790
        %2167 = vst.msk [vmem:[#allocation2 + $0x48] sm:$0xff] %vm2157, %v1792
        %2168 = vst.msk [vmem:[#allocation2 + $0x50] sm:$0xff] %vm2157, %v1794
        %2169 = vst.msk [vmem:[#allocation2 + $0x58] sm:$0xff] %vm2157, %v1796
        %2170 = vst.msk [vmem:[#allocation2 + $0x60] sm:$0xff] %vm2157, %v1798
        %2171 = vst.msk [vmem:[#allocation2 + $0x68] sm:$0xff] %vm2157, %v1800
        %2172 = vst.msk [vmem:[#allocation2 + $0x70] sm:$0xff] %vm2157, %v1802
        %2173 = vst.msk [vmem:[#allocation2 + $0x78] sm:$0xff] %vm2157, %v1804
        %2174 = vst.msk [vmem:[#allocation2 + $0x80] sm:$0xff] %vm2157, %v1806
        %2175 = vst.msk [vmem:[#allocation2 + $0x88] sm:$0xff] %vm2157, %v1808
        %2176 = vst.msk [vmem:[#allocation2 + $0x90] sm:$0xff] %vm2157, %v1810
        %2177 = vst.msk [vmem:[#allocation2 + $0x98] sm:$0xff] %vm2157, %v1812
        %2178 = vst.msk [vmem:[#allocation2 + $0xa0] sm:$0xff] %vm2157, %v1814
        %2179 = vst.msk [vmem:[#allocation2 + $0xa8] sm:$0xff] %vm2157, %v1816
        %2180 = vst.msk [vmem:[#allocation2 + $0xb0] sm:$0xff] %vm2157, %v1818
        %2181 = vst.msk [vmem:[#allocation2 + $0xb8] sm:$0xff] %vm2157, %v1820
        %2182 = vst.msk [vmem:[#allocation2 + $0xc0] sm:$0xff] %vm2157, %v1822
        %2183 = vst.msk [vmem:[#allocation2 + $0xc8] sm:$0xff] %vm2157, %v1824
        %2184 = vst.msk [vmem:[#allocation2 + $0xd0] sm:$0xff] %vm2157, %v1826
        %2185 = vst.msk [vmem:[#allocation2 + $0xd8] sm:$0xff] %vm2157, %v1828
        %2186 = vst.msk [vmem:[#allocation2 + $0xe0] sm:$0xff] %vm2157, %v1830
        %2187 = vst.msk [vmem:[#allocation2 + $0xe8] sm:$0xff] %vm2157, %v1832
        %2188 = vst.msk [vmem:[#allocation2 + $0xf0] sm:$0xff] %vm2157, %v1834
        %2189 = vst.msk [vmem:[#allocation2 + $0xf8] sm:$0xff] %vm2157, %v1836
        %2190 = vst.msk [vmem:[#allocation2 + $0x100] sm:$0xff] %vm2157, %v1838
        %2191 = vst.msk [vmem:[#allocation2 + $0x108] sm:$0xff] %vm2157, %v1840
        %2192 = vst.msk [vmem:[#allocation2 + $0x110] sm:$0xff] %vm2157, %v1842
        %2193 = vst.msk [vmem:[#allocation2 + $0x118] sm:$0xff] %vm2157, %v1844
        %2194 = vst.msk [vmem:[#allocation2 + $0x120] sm:$0xff] %vm2157, %v1846
        %2195 = vst.msk [vmem:[#allocation2 + $0x128] sm:$0xff] %vm2157, %v1848
        %2196 = vst.msk [vmem:[#allocation2 + $0x130] sm:$0xff] %vm2157, %v1850
        %2197 = vst.msk [vmem:[#allocation2 + $0x138] sm:$0xff] %vm2157, %v1852
        %2198 = vst.msk [vmem:[#allocation2 + $0x140] sm:$0xff] %vm2157, %v1854
        %2199 = vst.msk [vmem:[#allocation2 + $0x148] sm:$0xff] %vm2157, %v1856
        %2200 = vst.msk [vmem:[#allocation2 + $0x150] sm:$0xff] %vm2157, %v1858
        %2201 = vst.msk [vmem:[#allocation2 + $0x158] sm:$0xff] %vm2157, %v1860
        %2202 = vst.msk [vmem:[#allocation2 + $0x160] sm:$0xff] %vm2157, %v1862
        %2203 = vst.msk [vmem:[#allocation2 + $0x168] sm:$0xff] %vm2157, %v1864
        %2204 = vst.msk [vmem:[#allocation2 + $0x170] sm:$0xff] %vm2157, %v1866
        %2205 = vst.msk [vmem:[#allocation2 + $0x178] sm:$0xff] %vm2157, %v1868
        %2206 = vst.msk [vmem:[#allocation2 + $0x180] sm:$0xff] %vm2157, %v1870
        %2207 = vst.msk [vmem:[#allocation2 + $0x188] sm:$0xff] %vm2157, %v1872
        %2208 = vst.msk [vmem:[#allocation2 + $0x190] sm:$0xff] %vm2157, %v1874
        %2209 = vst.msk [vmem:[#allocation2 + $0x198] sm:$0xff] %vm2157, %v1876
        %2210 = vst.msk [vmem:[#allocation2 + $0x1a0] sm:$0xff] %vm2157, %v1878
        %2211 = vst.msk [vmem:[#allocation2 + $0x1a8] sm:$0xff] %vm2157, %v1880
        %2212 = vst.msk [vmem:[#allocation2 + $0x1b0] sm:$0xff] %vm2157, %v1882
        %2213 = vst.msk [vmem:[#allocation2 + $0x1b8] sm:$0xff] %vm2157, %v1884
        %2214 = vst.msk [vmem:[#allocation2 + $0x1c0] sm:$0xff] %vm2157, %v1886
        %2215 = vst.msk [vmem:[#allocation2 + $0x1c8] sm:$0xff] %vm2157, %v1888
        %2216 = vst.msk [vmem:[#allocation2 + $0x1d0] sm:$0xff] %vm2157, %v1890
        %2217 = vst.msk [vmem:[#allocation2 + $0x1d8] sm:$0xff] %vm2157, %v1892
        %2218 = vst.msk [vmem:[#allocation2 + $0x1e0] sm:$0xff] %vm2157, %v1894
        %2219 = vst.msk [vmem:[#allocation2 + $0x1e8] sm:$0xff] %vm2157, %v1896
        %2220 = vst.msk [vmem:[#allocation2 + $0x1f0] sm:$0xff] %vm2157, %v1898
        %2221 = vst.msk [vmem:[#allocation2 + $0x1f8] sm:$0xff] %vm2157, %v1900
        %2222 = vst.msk [vmem:[#allocation2 + $0x200] sm:$0xff] %vm2157, %v1902
        %2223 = vst.msk [vmem:[#allocation2 + $0x208] sm:$0xff] %vm2157, %v1904
        %2224 = vst.msk [vmem:[#allocation2 + $0x210] sm:$0xff] %vm2157, %v1906
        %2225 = vst.msk [vmem:[#allocation2 + $0x218] sm:$0xff] %vm2157, %v1908
        %2226 = vst.msk [vmem:[#allocation2 + $0x220] sm:$0xff] %vm2157, %v1910
        %2227 = vst.msk [vmem:[#allocation2 + $0x228] sm:$0xff] %vm2157, %v1912
        %2228 = vst.msk [vmem:[#allocation2 + $0x230] sm:$0xff] %vm2157, %v1914
        %2229 = vst.msk [vmem:[#allocation2 + $0x238] sm:$0xff] %vm2157, %v1916
        %2230 = vst.msk [vmem:[#allocation2 + $0x240] sm:$0xff] %vm2157, %v1918
        %2231 = vst.msk [vmem:[#allocation2 + $0x248] sm:$0xff] %vm2157, %v1920
        %2232 = vst.msk [vmem:[#allocation2 + $0x250] sm:$0xff] %vm2157, %v1922
        %2233 = vst.msk [vmem:[#allocation2 + $0x258] sm:$0xff] %vm2157, %v1924
        %2234 = vst.msk [vmem:[#allocation2 + $0x260] sm:$0xff] %vm2157, %v1926
        %2235 = vst.msk [vmem:[#allocation2 + $0x268] sm:$0xff] %vm2157, %v1928
        %2236 = vst.msk [vmem:[#allocation2 + $0x270] sm:$0xff] %vm2157, %v1930
        %2237 = vst.msk [vmem:[#allocation2 + $0x278] sm:$0xff] %vm2157, %v1932
        %2238 = vst.msk [vmem:[#allocation2 + $0x280] sm:$0xff] %vm2157, %v1934
        %2239 = vst.msk [vmem:[#allocation2 + $0x288] sm:$0xff] %vm2157, %v1936
        %2240 = vst.msk [vmem:[#allocation2 + $0x290] sm:$0xff] %vm2157, %v1938
        %2241 = vst.msk [vmem:[#allocation2 + $0x298] sm:$0xff] %vm2157, %v1940
        %2242 = vst.msk [vmem:[#allocation2 + $0x2a0] sm:$0xff] %vm2157, %v1942
        %2243 = vst.msk [vmem:[#allocation2 + $0x2a8] sm:$0xff] %vm2157, %v1944
        %2244 = vst.msk [vmem:[#allocation2 + $0x2b0] sm:$0xff] %vm2157, %v1946
        %2245 = vst.msk [vmem:[#allocation2 + $0x2b8] sm:$0xff] %vm2157, %v1948
        %2246 = vst.msk [vmem:[#allocation2 + $0x2c0] sm:$0xff] %vm2157, %v1950
        %2247 = vst.msk [vmem:[#allocation2 + $0x2c8] sm:$0xff] %vm2157, %v1952
        %2248 = vst.msk [vmem:[#allocation2 + $0x2d0] sm:$0xff] %vm2157, %v1954
        %2249 = vst.msk [vmem:[#allocation2 + $0x2d8] sm:$0xff] %vm2157, %v1956
        %2250 = vst.msk [vmem:[#allocation2 + $0x2e0] sm:$0xff] %vm2157, %v1958
        %2251 = vst.msk [vmem:[#allocation2 + $0x2e8] sm:$0xff] %vm2157, %v1960
        %2252 = vst.msk [vmem:[#allocation2 + $0x2f0] sm:$0xff] %vm2157, %v1962
        %2253 = vst.msk [vmem:[#allocation2 + $0x2f8] sm:$0xff] %vm2157, %v1964
        %2254 = vst.msk [vmem:[#allocation2 + $0x300] sm:$0xff] %vm2157, %v1966
        %2255 = vst.msk [vmem:[#allocation2 + $0x308] sm:$0xff] %vm2157, %v1968
        %2256 = vst.msk [vmem:[#allocation2 + $0x310] sm:$0xff] %vm2157, %v1970
        %2257 = vst.msk [vmem:[#allocation2 + $0x318] sm:$0xff] %vm2157, %v1972
        %2258 = vst.msk [vmem:[#allocation2 + $0x320] sm:$0xff] %vm2157, %v1974
        %2259 = vst.msk [vmem:[#allocation2 + $0x328] sm:$0xff] %vm2157, %v1976
        %2260 = vst.msk [vmem:[#allocation2 + $0x330] sm:$0xff] %vm2157, %v1978
        %2261 = vst.msk [vmem:[#allocation2 + $0x338] sm:$0xff] %vm2157, %v1980
        %2262 = vst.msk [vmem:[#allocation2 + $0x340] sm:$0xff] %vm2157, %v1982
        %2263 = vst.msk [vmem:[#allocation2 + $0x348] sm:$0xff] %vm2157, %v1984
        %2264 = vst.msk [vmem:[#allocation2 + $0x350] sm:$0xff] %vm2157, %v1986
        %2265 = vst.msk [vmem:[#allocation2 + $0x358] sm:$0xff] %vm2157, %v1988
        %2266 = vst.msk [vmem:[#allocation2 + $0x360] sm:$0xff] %vm2157, %v1990
        %2267 = vst.msk [vmem:[#allocation2 + $0x368] sm:$0xff] %vm2157, %v1992
        %2268 = vst.msk [vmem:[#allocation2 + $0x370] sm:$0xff] %vm2157, %v1994
        %2269 = vst.msk [vmem:[#allocation2 + $0x378] sm:$0xff] %vm2157, %v1996
        %2270 = vst.msk [vmem:[#allocation2 + $0x380] sm:$0xff] %vm2157, %v1998
        %2271 = vst.msk [vmem:[#allocation2 + $0x388] sm:$0xff] %vm2157, %v2000
        %2272 = vst.msk [vmem:[#allocation2 + $0x390] sm:$0xff] %vm2157, %v2002
        %2273 = vst.msk [vmem:[#allocation2 + $0x398] sm:$0xff] %vm2157, %v2004
        %2274 = vst.msk [vmem:[#allocation2 + $0x3a0] sm:$0xff] %vm2157, %v2006
        %2275 = vst.msk [vmem:[#allocation2 + $0x3a8] sm:$0xff] %vm2157, %v2008
        %2276 = vst.msk [vmem:[#allocation2 + $0x3b0] sm:$0xff] %vm2157, %v2010
        %2277 = vst.msk [vmem:[#allocation2 + $0x3b8] sm:$0xff] %vm2157, %v2012
        %2278 = vst.msk [vmem:[#allocation2 + $0x3c0] sm:$0xff] %vm2157, %v2014
        %2279 = vst.msk [vmem:[#allocation2 + $0x3c8] sm:$0xff] %vm2157, %v2016
        %2280 = vst.msk [vmem:[#allocation2 + $0x3d0] sm:$0xff] %vm2157, %v2018
        %2281 = vst.msk [vmem:[#allocation2 + $0x3d8] sm:$0xff] %vm2157, %v2020
        %2282 = vst.msk [vmem:[#allocation2 + $0x3e0] sm:$0xff] %vm2157, %v2022
        %2283 = vst.msk [vmem:[#allocation2 + $0x3e8] sm:$0xff] %vm2157, %v2024
        %2284 = vst.msk [vmem:[#allocation2 + $0x3f0] sm:$0xff] %vm2157, %v2026
        %2285 = vst.msk [vmem:[#allocation2 + $0x3f8] sm:$0xff] %vm2157, %v2028
        %2290 = vrot.lane.b32.xlu0 %v228, 12
        %v2291 = vpop.permute.xlu0 %2290
        %2292 = vrot.lane.b32.xlu0 %v229, 12
        %v2293 = vpop.permute.xlu0 %2292
        %2294 = vrot.lane.b32.xlu0 %v230, 12
        %v2295 = vpop.permute.xlu0 %2294
        %2296 = vrot.lane.b32.xlu0 %v231, 12
        %v2297 = vpop.permute.xlu0 %2296
        %2298 = vrot.lane.b32.xlu0 %v233, 12
        %v2299 = vpop.permute.xlu0 %2298
        %2300 = vrot.lane.b32.xlu0 %v234, 12
        %v2301 = vpop.permute.xlu0 %2300
        %2302 = vrot.lane.b32.xlu0 %v235, 12
        %v2303 = vpop.permute.xlu0 %2302
        %2304 = vrot.lane.b32.xlu0 %v236, 12
        %v2305 = vpop.permute.xlu0 %2304
        %2306 = vrot.lane.b32.xlu0 %v238, 12
        %v2307 = vpop.permute.xlu0 %2306
        %2308 = vrot.lane.b32.xlu0 %v239, 12
        %v2309 = vpop.permute.xlu0 %2308
        %2310 = vrot.lane.b32.xlu0 %v240, 12
        %v2311 = vpop.permute.xlu0 %2310
        %2312 = vrot.lane.b32.xlu0 %v241, 12
        %v2313 = vpop.permute.xlu0 %2312
        %2314 = vrot.lane.b32.xlu0 %v243, 12
        %v2315 = vpop.permute.xlu0 %2314
        %2316 = vrot.lane.b32.xlu0 %v244, 12
        %v2317 = vpop.permute.xlu0 %2316
        %2318 = vrot.lane.b32.xlu0 %v245, 12
        %v2319 = vpop.permute.xlu0 %2318
        %2320 = vrot.lane.b32.xlu0 %v246, 12
        %v2321 = vpop.permute.xlu0 %2320
        %2322 = vrot.lane.b32.xlu0 %v248, 12
        %v2323 = vpop.permute.xlu0 %2322
        %2324 = vrot.lane.b32.xlu0 %v249, 12
        %v2325 = vpop.permute.xlu0 %2324
        %2326 = vrot.lane.b32.xlu0 %v250, 12
        %v2327 = vpop.permute.xlu0 %2326
        %2328 = vrot.lane.b32.xlu0 %v251, 12
        %v2329 = vpop.permute.xlu0 %2328
        %2330 = vrot.lane.b32.xlu0 %v253, 12
        %v2331 = vpop.permute.xlu0 %2330
        %2332 = vrot.lane.b32.xlu0 %v254, 12
        %v2333 = vpop.permute.xlu0 %2332
        %2334 = vrot.lane.b32.xlu0 %v255, 12
        %v2335 = vpop.permute.xlu0 %2334
        %2336 = vrot.lane.b32.xlu0 %v256, 12
        %v2337 = vpop.permute.xlu0 %2336
        %2338 = vrot.lane.b32.xlu0 %v258, 12
        %v2339 = vpop.permute.xlu0 %2338
        %2340 = vrot.lane.b32.xlu0 %v259, 12
        %v2341 = vpop.permute.xlu0 %2340
        %2342 = vrot.lane.b32.xlu0 %v260, 12
        %v2343 = vpop.permute.xlu0 %2342
        %2344 = vrot.lane.b32.xlu0 %v261, 12
        %v2345 = vpop.permute.xlu0 %2344
        %2346 = vrot.lane.b32.xlu0 %v263, 12
        %v2347 = vpop.permute.xlu0 %2346
        %2348 = vrot.lane.b32.xlu0 %v264, 12
        %v2349 = vpop.permute.xlu0 %2348
        %2350 = vrot.lane.b32.xlu0 %v265, 12
        %v2351 = vpop.permute.xlu0 %2350
        %2352 = vrot.lane.b32.xlu0 %v266, 12
        %v2353 = vpop.permute.xlu0 %2352
        %2354 = vrot.lane.b32.xlu0 %v268, 12
        %v2355 = vpop.permute.xlu0 %2354
        %2356 = vrot.lane.b32.xlu0 %v269, 12
        %v2357 = vpop.permute.xlu0 %2356
        %2358 = vrot.lane.b32.xlu0 %v270, 12
        %v2359 = vpop.permute.xlu0 %2358
        %2360 = vrot.lane.b32.xlu0 %v271, 12
        %v2361 = vpop.permute.xlu0 %2360
        %2362 = vrot.lane.b32.xlu0 %v273, 12
        %v2363 = vpop.permute.xlu0 %2362
        %2364 = vrot.lane.b32.xlu0 %v274, 12
        %v2365 = vpop.permute.xlu0 %2364
        %2366 = vrot.lane.b32.xlu0 %v275, 12
        %v2367 = vpop.permute.xlu0 %2366
        %2368 = vrot.lane.b32.xlu0 %v276, 12
        %v2369 = vpop.permute.xlu0 %2368
        %2370 = vrot.lane.b32.xlu0 %v278, 12
        %v2371 = vpop.permute.xlu0 %2370
        %2372 = vrot.lane.b32.xlu0 %v279, 12
        %v2373 = vpop.permute.xlu0 %2372
        %2374 = vrot.lane.b32.xlu0 %v280, 12
        %v2375 = vpop.permute.xlu0 %2374
        %2376 = vrot.lane.b32.xlu0 %v281, 12
        %v2377 = vpop.permute.xlu0 %2376
        %2378 = vrot.lane.b32.xlu0 %v283, 12
        %v2379 = vpop.permute.xlu0 %2378
        %2380 = vrot.lane.b32.xlu0 %v284, 12
        %v2381 = vpop.permute.xlu0 %2380
        %2382 = vrot.lane.b32.xlu0 %v285, 12
        %v2383 = vpop.permute.xlu0 %2382
        %2384 = vrot.lane.b32.xlu0 %v286, 12
        %v2385 = vpop.permute.xlu0 %2384
        %2386 = vrot.lane.b32.xlu0 %v288, 12
        %v2387 = vpop.permute.xlu0 %2386
        %2388 = vrot.lane.b32.xlu0 %v289, 12
        %v2389 = vpop.permute.xlu0 %2388
        %2390 = vrot.lane.b32.xlu0 %v290, 12
        %v2391 = vpop.permute.xlu0 %2390
        %2392 = vrot.lane.b32.xlu0 %v291, 12
        %v2393 = vpop.permute.xlu0 %2392
        %2394 = vrot.lane.b32.xlu0 %v293, 12
        %v2395 = vpop.permute.xlu0 %2394
        %2396 = vrot.lane.b32.xlu0 %v294, 12
        %v2397 = vpop.permute.xlu0 %2396
        %2398 = vrot.lane.b32.xlu0 %v295, 12
        %v2399 = vpop.permute.xlu0 %2398
        %2400 = vrot.lane.b32.xlu0 %v296, 12
        %v2401 = vpop.permute.xlu0 %2400
        %2402 = vrot.lane.b32.xlu0 %v298, 12
        %v2403 = vpop.permute.xlu0 %2402
        %2404 = vrot.lane.b32.xlu0 %v299, 12
        %v2405 = vpop.permute.xlu0 %2404
        %2406 = vrot.lane.b32.xlu0 %v300, 12
        %v2407 = vpop.permute.xlu0 %2406
        %2408 = vrot.lane.b32.xlu0 %v301, 12
        %v2409 = vpop.permute.xlu0 %2408
        %2410 = vrot.lane.b32.xlu0 %v303, 12
        %v2411 = vpop.permute.xlu0 %2410
        %2412 = vrot.lane.b32.xlu0 %v304, 12
        %v2413 = vpop.permute.xlu0 %2412
        %2414 = vrot.lane.b32.xlu0 %v305, 12
        %v2415 = vpop.permute.xlu0 %2414
        %2416 = vrot.lane.b32.xlu0 %v306, 12
        %v2417 = vpop.permute.xlu0 %2416
        %2418 = vrot.lane.b32.xlu0 %v308, 12
        %v2419 = vpop.permute.xlu0 %2418
        %2420 = vrot.lane.b32.xlu0 %v309, 12
        %v2421 = vpop.permute.xlu0 %2420
        %2422 = vrot.lane.b32.xlu0 %v310, 12
        %v2423 = vpop.permute.xlu0 %2422
        %2424 = vrot.lane.b32.xlu0 %v311, 12
        %v2425 = vpop.permute.xlu0 %2424
        %2426 = vrot.lane.b32.xlu0 %v313, 12
        %v2427 = vpop.permute.xlu0 %2426
        %2428 = vrot.lane.b32.xlu0 %v314, 12
        %v2429 = vpop.permute.xlu0 %2428
        %2430 = vrot.lane.b32.xlu0 %v315, 12
        %v2431 = vpop.permute.xlu0 %2430
        %2432 = vrot.lane.b32.xlu0 %v316, 12
        %v2433 = vpop.permute.xlu0 %2432
        %2434 = vrot.lane.b32.xlu0 %v318, 12
        %v2435 = vpop.permute.xlu0 %2434
        %2436 = vrot.lane.b32.xlu0 %v319, 12
        %v2437 = vpop.permute.xlu0 %2436
        %2438 = vrot.lane.b32.xlu0 %v320, 12
        %v2439 = vpop.permute.xlu0 %2438
        %2440 = vrot.lane.b32.xlu0 %v321, 12
        %v2441 = vpop.permute.xlu0 %2440
        %2442 = vrot.lane.b32.xlu0 %v323, 12
        %v2443 = vpop.permute.xlu0 %2442
        %2444 = vrot.lane.b32.xlu0 %v324, 12
        %v2445 = vpop.permute.xlu0 %2444
        %2446 = vrot.lane.b32.xlu0 %v325, 12
        %v2447 = vpop.permute.xlu0 %2446
        %2448 = vrot.lane.b32.xlu0 %v326, 12
        %v2449 = vpop.permute.xlu0 %2448
        %2450 = vrot.lane.b32.xlu0 %v328, 12
        %v2451 = vpop.permute.xlu0 %2450
        %2452 = vrot.lane.b32.xlu0 %v329, 12
        %v2453 = vpop.permute.xlu0 %2452
        %2454 = vrot.lane.b32.xlu0 %v330, 12
        %v2455 = vpop.permute.xlu0 %2454
        %2456 = vrot.lane.b32.xlu0 %v331, 12
        %v2457 = vpop.permute.xlu0 %2456
        %2458 = vrot.lane.b32.xlu0 %v333, 12
        %v2459 = vpop.permute.xlu0 %2458
        %2460 = vrot.lane.b32.xlu0 %v334, 12
        %v2461 = vpop.permute.xlu0 %2460
        %2462 = vrot.lane.b32.xlu0 %v335, 12
        %v2463 = vpop.permute.xlu0 %2462
        %2464 = vrot.lane.b32.xlu0 %v336, 12
        %v2465 = vpop.permute.xlu0 %2464
        %2466 = vrot.lane.b32.xlu0 %v338, 12
        %v2467 = vpop.permute.xlu0 %2466
        %2468 = vrot.lane.b32.xlu0 %v339, 12
        %v2469 = vpop.permute.xlu0 %2468
        %2470 = vrot.lane.b32.xlu0 %v340, 12
        %v2471 = vpop.permute.xlu0 %2470
        %2472 = vrot.lane.b32.xlu0 %v341, 12
        %v2473 = vpop.permute.xlu0 %2472
        %2474 = vrot.lane.b32.xlu0 %v343, 12
        %v2475 = vpop.permute.xlu0 %2474
        %2476 = vrot.lane.b32.xlu0 %v344, 12
        %v2477 = vpop.permute.xlu0 %2476
        %2478 = vrot.lane.b32.xlu0 %v345, 12
        %v2479 = vpop.permute.xlu0 %2478
        %2480 = vrot.lane.b32.xlu0 %v346, 12
        %v2481 = vpop.permute.xlu0 %2480
        %2482 = vrot.lane.b32.xlu0 %v348, 12
        %v2483 = vpop.permute.xlu0 %2482
        %2484 = vrot.lane.b32.xlu0 %v349, 12
        %v2485 = vpop.permute.xlu0 %2484
        %2486 = vrot.lane.b32.xlu0 %v350, 12
        %v2487 = vpop.permute.xlu0 %2486
        %2488 = vrot.lane.b32.xlu0 %v351, 12
        %v2489 = vpop.permute.xlu0 %2488
        %2490 = vrot.lane.b32.xlu0 %v353, 12
        %v2491 = vpop.permute.xlu0 %2490
        %2492 = vrot.lane.b32.xlu0 %v354, 12
        %v2493 = vpop.permute.xlu0 %2492
        %2494 = vrot.lane.b32.xlu0 %v355, 12
        %v2495 = vpop.permute.xlu0 %2494
        %2496 = vrot.lane.b32.xlu0 %v356, 12
        %v2497 = vpop.permute.xlu0 %2496
        %2498 = vrot.lane.b32.xlu0 %v358, 12
        %v2499 = vpop.permute.xlu0 %2498
        %2500 = vrot.lane.b32.xlu0 %v359, 12
        %v2501 = vpop.permute.xlu0 %2500
        %2502 = vrot.lane.b32.xlu0 %v360, 12
        %v2503 = vpop.permute.xlu0 %2502
        %2504 = vrot.lane.b32.xlu0 %v361, 12
        %v2505 = vpop.permute.xlu0 %2504
        %2506 = vrot.lane.b32.xlu0 %v363, 12
        %v2507 = vpop.permute.xlu0 %2506
        %2508 = vrot.lane.b32.xlu0 %v364, 12
        %v2509 = vpop.permute.xlu0 %2508
        %2510 = vrot.lane.b32.xlu0 %v365, 12
        %v2511 = vpop.permute.xlu0 %2510
        %2512 = vrot.lane.b32.xlu0 %v366, 12
        %v2513 = vpop.permute.xlu0 %2512
        %2514 = vrot.lane.b32.xlu0 %v368, 12
        %v2515 = vpop.permute.xlu0 %2514
        %2516 = vrot.lane.b32.xlu0 %v369, 12
        %v2517 = vpop.permute.xlu0 %2516
        %2518 = vrot.lane.b32.xlu0 %v370, 12
        %v2519 = vpop.permute.xlu0 %2518
        %2520 = vrot.lane.b32.xlu0 %v371, 12
        %v2521 = vpop.permute.xlu0 %2520
        %2522 = vrot.lane.b32.xlu0 %v373, 12
        %v2523 = vpop.permute.xlu0 %2522
        %2524 = vrot.lane.b32.xlu0 %v374, 12
        %v2525 = vpop.permute.xlu0 %2524
        %2526 = vrot.lane.b32.xlu0 %v375, 12
        %v2527 = vpop.permute.xlu0 %2526
        %2528 = vrot.lane.b32.xlu0 %v376, 12
        %v2529 = vpop.permute.xlu0 %2528
        %2530 = vrot.lane.b32.xlu0 %v378, 12
        %v2531 = vpop.permute.xlu0 %2530
        %2532 = vrot.lane.b32.xlu0 %v379, 12
        %v2533 = vpop.permute.xlu0 %2532
        %2534 = vrot.lane.b32.xlu0 %v380, 12
        %v2535 = vpop.permute.xlu0 %2534
        %2536 = vrot.lane.b32.xlu0 %v381, 12
        %v2537 = vpop.permute.xlu0 %2536
        %2538 = vrot.lane.b32.xlu0 %v383, 12
        %v2539 = vpop.permute.xlu0 %2538
        %2540 = vrot.lane.b32.xlu0 %v384, 12
        %v2541 = vpop.permute.xlu0 %2540
        %2542 = vrot.lane.b32.xlu0 %v385, 12
        %v2543 = vpop.permute.xlu0 %2542
        %2544 = vrot.lane.b32.xlu0 %v386, 12
        %v2545 = vpop.permute.xlu0 %2544
        %vm2674 = vcmask 130144
        %2675 = vst.msk [vmem:[#allocation2] sm:$0xff] %vm2674, %v2291
        %2676 = vst.msk [vmem:[#allocation2 + $0x8] sm:$0xff] %vm2674, %v2293
        %2677 = vst.msk [vmem:[#allocation2 + $0x10] sm:$0xff] %vm2674, %v2295
        %2678 = vst.msk [vmem:[#allocation2 + $0x18] sm:$0xff] %vm2674, %v2297
        %2679 = vst.msk [vmem:[#allocation2 + $0x20] sm:$0xff] %vm2674, %v2299
        %2680 = vst.msk [vmem:[#allocation2 + $0x28] sm:$0xff] %vm2674, %v2301
        %2681 = vst.msk [vmem:[#allocation2 + $0x30] sm:$0xff] %vm2674, %v2303
        %2682 = vst.msk [vmem:[#allocation2 + $0x38] sm:$0xff] %vm2674, %v2305
        %2683 = vst.msk [vmem:[#allocation2 + $0x40] sm:$0xff] %vm2674, %v2307
        %2684 = vst.msk [vmem:[#allocation2 + $0x48] sm:$0xff] %vm2674, %v2309
        %2685 = vst.msk [vmem:[#allocation2 + $0x50] sm:$0xff] %vm2674, %v2311
        %2686 = vst.msk [vmem:[#allocation2 + $0x58] sm:$0xff] %vm2674, %v2313
        %2687 = vst.msk [vmem:[#allocation2 + $0x60] sm:$0xff] %vm2674, %v2315
        %2688 = vst.msk [vmem:[#allocation2 + $0x68] sm:$0xff] %vm2674, %v2317
        %2689 = vst.msk [vmem:[#allocation2 + $0x70] sm:$0xff] %vm2674, %v2319
        %2690 = vst.msk [vmem:[#allocation2 + $0x78] sm:$0xff] %vm2674, %v2321
        %2691 = vst.msk [vmem:[#allocation2 + $0x80] sm:$0xff] %vm2674, %v2323
        %2692 = vst.msk [vmem:[#allocation2 + $0x88] sm:$0xff] %vm2674, %v2325
        %2693 = vst.msk [vmem:[#allocation2 + $0x90] sm:$0xff] %vm2674, %v2327
        %2694 = vst.msk [vmem:[#allocation2 + $0x98] sm:$0xff] %vm2674, %v2329
        %2695 = vst.msk [vmem:[#allocation2 + $0xa0] sm:$0xff] %vm2674, %v2331
        %2696 = vst.msk [vmem:[#allocation2 + $0xa8] sm:$0xff] %vm2674, %v2333
        %2697 = vst.msk [vmem:[#allocation2 + $0xb0] sm:$0xff] %vm2674, %v2335
        %2698 = vst.msk [vmem:[#allocation2 + $0xb8] sm:$0xff] %vm2674, %v2337
        %2699 = vst.msk [vmem:[#allocation2 + $0xc0] sm:$0xff] %vm2674, %v2339
        %2700 = vst.msk [vmem:[#allocation2 + $0xc8] sm:$0xff] %vm2674, %v2341
        %2701 = vst.msk [vmem:[#allocation2 + $0xd0] sm:$0xff] %vm2674, %v2343
        %2702 = vst.msk [vmem:[#allocation2 + $0xd8] sm:$0xff] %vm2674, %v2345
        %2703 = vst.msk [vmem:[#allocation2 + $0xe0] sm:$0xff] %vm2674, %v2347
        %2704 = vst.msk [vmem:[#allocation2 + $0xe8] sm:$0xff] %vm2674, %v2349
        %2705 = vst.msk [vmem:[#allocation2 + $0xf0] sm:$0xff] %vm2674, %v2351
        %2706 = vst.msk [vmem:[#allocation2 + $0xf8] sm:$0xff] %vm2674, %v2353
        %2707 = vst.msk [vmem:[#allocation2 + $0x100] sm:$0xff] %vm2674, %v2355
        %2708 = vst.msk [vmem:[#allocation2 + $0x108] sm:$0xff] %vm2674, %v2357
        %2709 = vst.msk [vmem:[#allocation2 + $0x110] sm:$0xff] %vm2674, %v2359
        %2710 = vst.msk [vmem:[#allocation2 + $0x118] sm:$0xff] %vm2674, %v2361
        %2711 = vst.msk [vmem:[#allocation2 + $0x120] sm:$0xff] %vm2674, %v2363
        %2712 = vst.msk [vmem:[#allocation2 + $0x128] sm:$0xff] %vm2674, %v2365
        %2713 = vst.msk [vmem:[#allocation2 + $0x130] sm:$0xff] %vm2674, %v2367
        %2714 = vst.msk [vmem:[#allocation2 + $0x138] sm:$0xff] %vm2674, %v2369
        %2715 = vst.msk [vmem:[#allocation2 + $0x140] sm:$0xff] %vm2674, %v2371
        %2716 = vst.msk [vmem:[#allocation2 + $0x148] sm:$0xff] %vm2674, %v2373
        %2717 = vst.msk [vmem:[#allocation2 + $0x150] sm:$0xff] %vm2674, %v2375
        %2718 = vst.msk [vmem:[#allocation2 + $0x158] sm:$0xff] %vm2674, %v2377
        %2719 = vst.msk [vmem:[#allocation2 + $0x160] sm:$0xff] %vm2674, %v2379
        %2720 = vst.msk [vmem:[#allocation2 + $0x168] sm:$0xff] %vm2674, %v2381
        %2721 = vst.msk [vmem:[#allocation2 + $0x170] sm:$0xff] %vm2674, %v2383
        %2722 = vst.msk [vmem:[#allocation2 + $0x178] sm:$0xff] %vm2674, %v2385
        %2723 = vst.msk [vmem:[#allocation2 + $0x180] sm:$0xff] %vm2674, %v2387
        %2724 = vst.msk [vmem:[#allocation2 + $0x188] sm:$0xff] %vm2674, %v2389
        %2725 = vst.msk [vmem:[#allocation2 + $0x190] sm:$0xff] %vm2674, %v2391
        %2726 = vst.msk [vmem:[#allocation2 + $0x198] sm:$0xff] %vm2674, %v2393
        %2727 = vst.msk [vmem:[#allocation2 + $0x1a0] sm:$0xff] %vm2674, %v2395
        %2728 = vst.msk [vmem:[#allocation2 + $0x1a8] sm:$0xff] %vm2674, %v2397
        %2729 = vst.msk [vmem:[#allocation2 + $0x1b0] sm:$0xff] %vm2674, %v2399
        %2730 = vst.msk [vmem:[#allocation2 + $0x1b8] sm:$0xff] %vm2674, %v2401
        %2731 = vst.msk [vmem:[#allocation2 + $0x1c0] sm:$0xff] %vm2674, %v2403
        %2732 = vst.msk [vmem:[#allocation2 + $0x1c8] sm:$0xff] %vm2674, %v2405
        %2733 = vst.msk [vmem:[#allocation2 + $0x1d0] sm:$0xff] %vm2674, %v2407
        %2734 = vst.msk [vmem:[#allocation2 + $0x1d8] sm:$0xff] %vm2674, %v2409
        %2735 = vst.msk [vmem:[#allocation2 + $0x1e0] sm:$0xff] %vm2674, %v2411
        %2736 = vst.msk [vmem:[#allocation2 + $0x1e8] sm:$0xff] %vm2674, %v2413
        %2737 = vst.msk [vmem:[#allocation2 + $0x1f0] sm:$0xff] %vm2674, %v2415
        %2738 = vst.msk [vmem:[#allocation2 + $0x1f8] sm:$0xff] %vm2674, %v2417
        %2739 = vst.msk [vmem:[#allocation2 + $0x200] sm:$0xff] %vm2674, %v2419
        %2740 = vst.msk [vmem:[#allocation2 + $0x208] sm:$0xff] %vm2674, %v2421
        %2741 = vst.msk [vmem:[#allocation2 + $0x210] sm:$0xff] %vm2674, %v2423
        %2742 = vst.msk [vmem:[#allocation2 + $0x218] sm:$0xff] %vm2674, %v2425
        %2743 = vst.msk [vmem:[#allocation2 + $0x220] sm:$0xff] %vm2674, %v2427
        %2744 = vst.msk [vmem:[#allocation2 + $0x228] sm:$0xff] %vm2674, %v2429
        %2745 = vst.msk [vmem:[#allocation2 + $0x230] sm:$0xff] %vm2674, %v2431
        %2746 = vst.msk [vmem:[#allocation2 + $0x238] sm:$0xff] %vm2674, %v2433
        %2747 = vst.msk [vmem:[#allocation2 + $0x240] sm:$0xff] %vm2674, %v2435
        %2748 = vst.msk [vmem:[#allocation2 + $0x248] sm:$0xff] %vm2674, %v2437
        %2749 = vst.msk [vmem:[#allocation2 + $0x250] sm:$0xff] %vm2674, %v2439
        %2750 = vst.msk [vmem:[#allocation2 + $0x258] sm:$0xff] %vm2674, %v2441
        %2751 = vst.msk [vmem:[#allocation2 + $0x260] sm:$0xff] %vm2674, %v2443
        %2752 = vst.msk [vmem:[#allocation2 + $0x268] sm:$0xff] %vm2674, %v2445
        %2753 = vst.msk [vmem:[#allocation2 + $0x270] sm:$0xff] %vm2674, %v2447
        %2754 = vst.msk [vmem:[#allocation2 + $0x278] sm:$0xff] %vm2674, %v2449
        %2755 = vst.msk [vmem:[#allocation2 + $0x280] sm:$0xff] %vm2674, %v2451
        %2756 = vst.msk [vmem:[#allocation2 + $0x288] sm:$0xff] %vm2674, %v2453
        %2757 = vst.msk [vmem:[#allocation2 + $0x290] sm:$0xff] %vm2674, %v2455
        %2758 = vst.msk [vmem:[#allocation2 + $0x298] sm:$0xff] %vm2674, %v2457
        %2759 = vst.msk [vmem:[#allocation2 + $0x2a0] sm:$0xff] %vm2674, %v2459
        %2760 = vst.msk [vmem:[#allocation2 + $0x2a8] sm:$0xff] %vm2674, %v2461
        %2761 = vst.msk [vmem:[#allocation2 + $0x2b0] sm:$0xff] %vm2674, %v2463
        %2762 = vst.msk [vmem:[#allocation2 + $0x2b8] sm:$0xff] %vm2674, %v2465
        %2763 = vst.msk [vmem:[#allocation2 + $0x2c0] sm:$0xff] %vm2674, %v2467
        %2764 = vst.msk [vmem:[#allocation2 + $0x2c8] sm:$0xff] %vm2674, %v2469
        %2765 = vst.msk [vmem:[#allocation2 + $0x2d0] sm:$0xff] %vm2674, %v2471
        %2766 = vst.msk [vmem:[#allocation2 + $0x2d8] sm:$0xff] %vm2674, %v2473
        %2767 = vst.msk [vmem:[#allocation2 + $0x2e0] sm:$0xff] %vm2674, %v2475
        %2768 = vst.msk [vmem:[#allocation2 + $0x2e8] sm:$0xff] %vm2674, %v2477
        %2769 = vst.msk [vmem:[#allocation2 + $0x2f0] sm:$0xff] %vm2674, %v2479
        %2770 = vst.msk [vmem:[#allocation2 + $0x2f8] sm:$0xff] %vm2674, %v2481
        %2771 = vst.msk [vmem:[#allocation2 + $0x300] sm:$0xff] %vm2674, %v2483
        %2772 = vst.msk [vmem:[#allocation2 + $0x308] sm:$0xff] %vm2674, %v2485
        %2773 = vst.msk [vmem:[#allocation2 + $0x310] sm:$0xff] %vm2674, %v2487
        %2774 = vst.msk [vmem:[#allocation2 + $0x318] sm:$0xff] %vm2674, %v2489
        %2775 = vst.msk [vmem:[#allocation2 + $0x320] sm:$0xff] %vm2674, %v2491
        %2776 = vst.msk [vmem:[#allocation2 + $0x328] sm:$0xff] %vm2674, %v2493
        %2777 = vst.msk [vmem:[#allocation2 + $0x330] sm:$0xff] %vm2674, %v2495
        %2778 = vst.msk [vmem:[#allocation2 + $0x338] sm:$0xff] %vm2674, %v2497
        %2779 = vst.msk [vmem:[#allocation2 + $0x340] sm:$0xff] %vm2674, %v2499
        %2780 = vst.msk [vmem:[#allocation2 + $0x348] sm:$0xff] %vm2674, %v2501
        %2781 = vst.msk [vmem:[#allocation2 + $0x350] sm:$0xff] %vm2674, %v2503
        %2782 = vst.msk [vmem:[#allocation2 + $0x358] sm:$0xff] %vm2674, %v2505
        %2783 = vst.msk [vmem:[#allocation2 + $0x360] sm:$0xff] %vm2674, %v2507
        %2784 = vst.msk [vmem:[#allocation2 + $0x368] sm:$0xff] %vm2674, %v2509
        %2785 = vst.msk [vmem:[#allocation2 + $0x370] sm:$0xff] %vm2674, %v2511
        %2786 = vst.msk [vmem:[#allocation2 + $0x378] sm:$0xff] %vm2674, %v2513
        %2787 = vst.msk [vmem:[#allocation2 + $0x380] sm:$0xff] %vm2674, %v2515
        %2788 = vst.msk [vmem:[#allocation2 + $0x388] sm:$0xff] %vm2674, %v2517
        %2789 = vst.msk [vmem:[#allocation2 + $0x390] sm:$0xff] %vm2674, %v2519
        %2790 = vst.msk [vmem:[#allocation2 + $0x398] sm:$0xff] %vm2674, %v2521
        %2791 = vst.msk [vmem:[#allocation2 + $0x3a0] sm:$0xff] %vm2674, %v2523
        %2792 = vst.msk [vmem:[#allocation2 + $0x3a8] sm:$0xff] %vm2674, %v2525
        %2793 = vst.msk [vmem:[#allocation2 + $0x3b0] sm:$0xff] %vm2674, %v2527
        %2794 = vst.msk [vmem:[#allocation2 + $0x3b8] sm:$0xff] %vm2674, %v2529
        %2795 = vst.msk [vmem:[#allocation2 + $0x3c0] sm:$0xff] %vm2674, %v2531
        %2796 = vst.msk [vmem:[#allocation2 + $0x3c8] sm:$0xff] %vm2674, %v2533
        %2797 = vst.msk [vmem:[#allocation2 + $0x3d0] sm:$0xff] %vm2674, %v2535
        %2798 = vst.msk [vmem:[#allocation2 + $0x3d8] sm:$0xff] %vm2674, %v2537
        %2799 = vst.msk [vmem:[#allocation2 + $0x3e0] sm:$0xff] %vm2674, %v2539
        %2800 = vst.msk [vmem:[#allocation2 + $0x3e8] sm:$0xff] %vm2674, %v2541
        %2801 = vst.msk [vmem:[#allocation2 + $0x3f0] sm:$0xff] %vm2674, %v2543
        %2802 = vst.msk [vmem:[#allocation2 + $0x3f8] sm:$0xff] %vm2674, %v2545
        %v2804 = vrot.slane %v383, 1
        %v2805 = vrot.slane %v384, 1
        %v2806 = vsel %vm682, %v2804, %v2805
        %v2807 = vrot.slane %v385, 1
        %v2808 = vsel %vm682, %v2805, %v2807
        %v2809 = vrot.slane %v386, 1
        %v2810 = vsel %vm682, %v2807, %v2809
        %v2811 = vrot.slane %v387, 1
        %v2812 = vsel %vm682, %v2809, %v2811
        %2813 = vrot.lane.b32.xlu0 %v694, 16
        %v2814 = vpop.permute.xlu0 %2813
        %2815 = vrot.lane.b32.xlu0 %v696, 16
        %v2816 = vpop.permute.xlu0 %2815
        %2817 = vrot.lane.b32.xlu0 %v698, 16
        %v2818 = vpop.permute.xlu0 %2817
        %2819 = vrot.lane.b32.xlu0 %v700, 16
        %v2820 = vpop.permute.xlu0 %2819
        %2821 = vrot.lane.b32.xlu0 %v703, 16
        %v2822 = vpop.permute.xlu0 %2821
        %2823 = vrot.lane.b32.xlu0 %v705, 16
        %v2824 = vpop.permute.xlu0 %2823
        %2825 = vrot.lane.b32.xlu0 %v707, 16
        %v2826 = vpop.permute.xlu0 %2825
        %2827 = vrot.lane.b32.xlu0 %v709, 16
        %v2828 = vpop.permute.xlu0 %2827
        %2829 = vrot.lane.b32.xlu0 %v712, 16
        %v2830 = vpop.permute.xlu0 %2829
        %2831 = vrot.lane.b32.xlu0 %v714, 16
        %v2832 = vpop.permute.xlu0 %2831
        %2833 = vrot.lane.b32.xlu0 %v716, 16
        %v2834 = vpop.permute.xlu0 %2833
        %2835 = vrot.lane.b32.xlu0 %v718, 16
        %v2836 = vpop.permute.xlu0 %2835
        %2837 = vrot.lane.b32.xlu0 %v721, 16
        %v2838 = vpop.permute.xlu0 %2837
        %2839 = vrot.lane.b32.xlu0 %v723, 16
        %v2840 = vpop.permute.xlu0 %2839
        %2841 = vrot.lane.b32.xlu0 %v725, 16
        %v2842 = vpop.permute.xlu0 %2841
        %2843 = vrot.lane.b32.xlu0 %v727, 16
        %v2844 = vpop.permute.xlu0 %2843
        %2845 = vrot.lane.b32.xlu0 %v730, 16
        %v2846 = vpop.permute.xlu0 %2845
        %2847 = vrot.lane.b32.xlu0 %v732, 16
        %v2848 = vpop.permute.xlu0 %2847
        %2849 = vrot.lane.b32.xlu0 %v734, 16
        %v2850 = vpop.permute.xlu0 %2849
        %2851 = vrot.lane.b32.xlu0 %v736, 16
        %v2852 = vpop.permute.xlu0 %2851
        %2853 = vrot.lane.b32.xlu0 %v739, 16
        %v2854 = vpop.permute.xlu0 %2853
        %2855 = vrot.lane.b32.xlu0 %v741, 16
        %v2856 = vpop.permute.xlu0 %2855
        %2857 = vrot.lane.b32.xlu0 %v743, 16
        %v2858 = vpop.permute.xlu0 %2857
        %2859 = vrot.lane.b32.xlu0 %v745, 16
        %v2860 = vpop.permute.xlu0 %2859
        %2861 = vrot.lane.b32.xlu0 %v748, 16
        %v2862 = vpop.permute.xlu0 %2861
        %2863 = vrot.lane.b32.xlu0 %v750, 16
        %v2864 = vpop.permute.xlu0 %2863
        %2865 = vrot.lane.b32.xlu0 %v752, 16
        %v2866 = vpop.permute.xlu0 %2865
        %2867 = vrot.lane.b32.xlu0 %v754, 16
        %v2868 = vpop.permute.xlu0 %2867
        %2869 = vrot.lane.b32.xlu0 %v757, 16
        %v2870 = vpop.permute.xlu0 %2869
        %2871 = vrot.lane.b32.xlu0 %v759, 16
        %v2872 = vpop.permute.xlu0 %2871
        %2873 = vrot.lane.b32.xlu0 %v761, 16
        %v2874 = vpop.permute.xlu0 %2873
        %2875 = vrot.lane.b32.xlu0 %v763, 16
        %v2876 = vpop.permute.xlu0 %2875
        %2877 = vrot.lane.b32.xlu0 %v766, 16
        %v2878 = vpop.permute.xlu0 %2877
        %2879 = vrot.lane.b32.xlu0 %v768, 16
        %v2880 = vpop.permute.xlu0 %2879
        %2881 = vrot.lane.b32.xlu0 %v770, 16
        %v2882 = vpop.permute.xlu0 %2881
        %2883 = vrot.lane.b32.xlu0 %v772, 16
        %v2884 = vpop.permute.xlu0 %2883
        %2885 = vrot.lane.b32.xlu0 %v775, 16
        %v2886 = vpop.permute.xlu0 %2885
        %2887 = vrot.lane.b32.xlu0 %v777, 16
        %v2888 = vpop.permute.xlu0 %2887
        %2889 = vrot.lane.b32.xlu0 %v779, 16
        %v2890 = vpop.permute.xlu0 %2889
        %2891 = vrot.lane.b32.xlu0 %v781, 16
        %v2892 = vpop.permute.xlu0 %2891
        %2893 = vrot.lane.b32.xlu0 %v784, 16
        %v2894 = vpop.permute.xlu0 %2893
        %2895 = vrot.lane.b32.xlu0 %v786, 16
        %v2896 = vpop.permute.xlu0 %2895
        %2897 = vrot.lane.b32.xlu0 %v788, 16
        %v2898 = vpop.permute.xlu0 %2897
        %2899 = vrot.lane.b32.xlu0 %v790, 16
        %v2900 = vpop.permute.xlu0 %2899
        %2901 = vrot.lane.b32.xlu0 %v793, 16
        %v2902 = vpop.permute.xlu0 %2901
        %2903 = vrot.lane.b32.xlu0 %v795, 16
        %v2904 = vpop.permute.xlu0 %2903
        %2905 = vrot.lane.b32.xlu0 %v797, 16
        %v2906 = vpop.permute.xlu0 %2905
        %2907 = vrot.lane.b32.xlu0 %v799, 16
        %v2908 = vpop.permute.xlu0 %2907
        %2909 = vrot.lane.b32.xlu0 %v802, 16
        %v2910 = vpop.permute.xlu0 %2909
        %2911 = vrot.lane.b32.xlu0 %v804, 16
        %v2912 = vpop.permute.xlu0 %2911
        %2913 = vrot.lane.b32.xlu0 %v806, 16
        %v2914 = vpop.permute.xlu0 %2913
        %2915 = vrot.lane.b32.xlu0 %v808, 16
        %v2916 = vpop.permute.xlu0 %2915
        %2917 = vrot.lane.b32.xlu0 %v811, 16
        %v2918 = vpop.permute.xlu0 %2917
        %2919 = vrot.lane.b32.xlu0 %v813, 16
        %v2920 = vpop.permute.xlu0 %2919
        %2921 = vrot.lane.b32.xlu0 %v815, 16
        %v2922 = vpop.permute.xlu0 %2921
        %2923 = vrot.lane.b32.xlu0 %v817, 16
        %v2924 = vpop.permute.xlu0 %2923
        %2925 = vrot.lane.b32.xlu0 %v820, 16
        %v2926 = vpop.permute.xlu0 %2925
        %2927 = vrot.lane.b32.xlu0 %v822, 16
        %v2928 = vpop.permute.xlu0 %2927
        %2929 = vrot.lane.b32.xlu0 %v824, 16
        %v2930 = vpop.permute.xlu0 %2929
        %2931 = vrot.lane.b32.xlu0 %v826, 16
        %v2932 = vpop.permute.xlu0 %2931
        %2933 = vrot.lane.b32.xlu0 %v829, 16
        %v2934 = vpop.permute.xlu0 %2933
        %2935 = vrot.lane.b32.xlu0 %v831, 16
        %v2936 = vpop.permute.xlu0 %2935
        %2937 = vrot.lane.b32.xlu0 %v833, 16
        %v2938 = vpop.permute.xlu0 %2937
        %2939 = vrot.lane.b32.xlu0 %v835, 16
        %v2940 = vpop.permute.xlu0 %2939
        %2941 = vrot.lane.b32.xlu0 %v838, 16
        %v2942 = vpop.permute.xlu0 %2941
        %2943 = vrot.lane.b32.xlu0 %v840, 16
        %v2944 = vpop.permute.xlu0 %2943
        %2945 = vrot.lane.b32.xlu0 %v842, 16
        %v2946 = vpop.permute.xlu0 %2945
        %2947 = vrot.lane.b32.xlu0 %v844, 16
        %v2948 = vpop.permute.xlu0 %2947
        %2949 = vrot.lane.b32.xlu0 %v847, 16
        %v2950 = vpop.permute.xlu0 %2949
        %2951 = vrot.lane.b32.xlu0 %v849, 16
        %v2952 = vpop.permute.xlu0 %2951
        %2953 = vrot.lane.b32.xlu0 %v851, 16
        %v2954 = vpop.permute.xlu0 %2953
        %2955 = vrot.lane.b32.xlu0 %v853, 16
        %v2956 = vpop.permute.xlu0 %2955
        %2957 = vrot.lane.b32.xlu0 %v856, 16
        %v2958 = vpop.permute.xlu0 %2957
        %2959 = vrot.lane.b32.xlu0 %v858, 16
        %v2960 = vpop.permute.xlu0 %2959
        %2961 = vrot.lane.b32.xlu0 %v860, 16
        %v2962 = vpop.permute.xlu0 %2961
        %2963 = vrot.lane.b32.xlu0 %v862, 16
        %v2964 = vpop.permute.xlu0 %2963
        %2965 = vrot.lane.b32.xlu0 %v865, 16
        %v2966 = vpop.permute.xlu0 %2965
        %2967 = vrot.lane.b32.xlu0 %v867, 16
        %v2968 = vpop.permute.xlu0 %2967
        %2969 = vrot.lane.b32.xlu0 %v869, 16
        %v2970 = vpop.permute.xlu0 %2969
        %2971 = vrot.lane.b32.xlu0 %v871, 16
        %v2972 = vpop.permute.xlu0 %2971
        %2973 = vrot.lane.b32.xlu0 %v874, 16
        %v2974 = vpop.permute.xlu0 %2973
        %2975 = vrot.lane.b32.xlu0 %v876, 16
        %v2976 = vpop.permute.xlu0 %2975
        %2977 = vrot.lane.b32.xlu0 %v878, 16
        %v2978 = vpop.permute.xlu0 %2977
        %2979 = vrot.lane.b32.xlu0 %v880, 16
        %v2980 = vpop.permute.xlu0 %2979
        %2981 = vrot.lane.b32.xlu0 %v883, 16
        %v2982 = vpop.permute.xlu0 %2981
        %2983 = vrot.lane.b32.xlu0 %v885, 16
        %v2984 = vpop.permute.xlu0 %2983
        %2985 = vrot.lane.b32.xlu0 %v887, 16
        %v2986 = vpop.permute.xlu0 %2985
        %2987 = vrot.lane.b32.xlu0 %v889, 16
        %v2988 = vpop.permute.xlu0 %2987
        %2989 = vrot.lane.b32.xlu0 %v892, 16
        %v2990 = vpop.permute.xlu0 %2989
        %2991 = vrot.lane.b32.xlu0 %v894, 16
        %v2992 = vpop.permute.xlu0 %2991
        %2993 = vrot.lane.b32.xlu0 %v896, 16
        %v2994 = vpop.permute.xlu0 %2993
        %2995 = vrot.lane.b32.xlu0 %v898, 16
        %v2996 = vpop.permute.xlu0 %2995
        %2997 = vrot.lane.b32.xlu0 %v901, 16
        %v2998 = vpop.permute.xlu0 %2997
        %2999 = vrot.lane.b32.xlu0 %v903, 16
        %v3000 = vpop.permute.xlu0 %2999
        %3001 = vrot.lane.b32.xlu0 %v905, 16
        %v3002 = vpop.permute.xlu0 %3001
        %3003 = vrot.lane.b32.xlu0 %v907, 16
        %v3004 = vpop.permute.xlu0 %3003
        %3005 = vrot.lane.b32.xlu0 %v910, 16
        %v3006 = vpop.permute.xlu0 %3005
        %3007 = vrot.lane.b32.xlu0 %v912, 16
        %v3008 = vpop.permute.xlu0 %3007
        %3009 = vrot.lane.b32.xlu0 %v914, 16
        %v3010 = vpop.permute.xlu0 %3009
        %3011 = vrot.lane.b32.xlu0 %v916, 16
        %v3012 = vpop.permute.xlu0 %3011
        %3013 = vrot.lane.b32.xlu0 %v919, 16
        %v3014 = vpop.permute.xlu0 %3013
        %3015 = vrot.lane.b32.xlu0 %v921, 16
        %v3016 = vpop.permute.xlu0 %3015
        %3017 = vrot.lane.b32.xlu0 %v923, 16
        %v3018 = vpop.permute.xlu0 %3017
        %3019 = vrot.lane.b32.xlu0 %v925, 16
        %v3020 = vpop.permute.xlu0 %3019
        %3021 = vrot.lane.b32.xlu0 %v928, 16
        %v3022 = vpop.permute.xlu0 %3021
        %3023 = vrot.lane.b32.xlu0 %v930, 16
        %v3024 = vpop.permute.xlu0 %3023
        %3025 = vrot.lane.b32.xlu0 %v932, 16
        %v3026 = vpop.permute.xlu0 %3025
        %3027 = vrot.lane.b32.xlu0 %v934, 16
        %v3028 = vpop.permute.xlu0 %3027
        %3029 = vrot.lane.b32.xlu0 %v937, 16
        %v3030 = vpop.permute.xlu0 %3029
        %3031 = vrot.lane.b32.xlu0 %v939, 16
        %v3032 = vpop.permute.xlu0 %3031
        %3033 = vrot.lane.b32.xlu0 %v941, 16
        %v3034 = vpop.permute.xlu0 %3033
        %3035 = vrot.lane.b32.xlu0 %v943, 16
        %v3036 = vpop.permute.xlu0 %3035
        %3037 = vrot.lane.b32.xlu0 %v946, 16
        %v3038 = vpop.permute.xlu0 %3037
        %3039 = vrot.lane.b32.xlu0 %v948, 16
        %v3040 = vpop.permute.xlu0 %3039
        %3041 = vrot.lane.b32.xlu0 %v950, 16
        %v3042 = vpop.permute.xlu0 %3041
        %3043 = vrot.lane.b32.xlu0 %v952, 16
        %v3044 = vpop.permute.xlu0 %3043
        %3045 = vrot.lane.b32.xlu0 %v955, 16
        %v3046 = vpop.permute.xlu0 %3045
        %3047 = vrot.lane.b32.xlu0 %v957, 16
        %v3048 = vpop.permute.xlu0 %3047
        %3049 = vrot.lane.b32.xlu0 %v959, 16
        %v3050 = vpop.permute.xlu0 %3049
        %3051 = vrot.lane.b32.xlu0 %v961, 16
        %v3052 = vpop.permute.xlu0 %3051
        %3053 = vrot.lane.b32.xlu0 %v964, 16
        %v3054 = vpop.permute.xlu0 %3053
        %3055 = vrot.lane.b32.xlu0 %v966, 16
        %v3056 = vpop.permute.xlu0 %3055
        %3057 = vrot.lane.b32.xlu0 %v968, 16
        %v3058 = vpop.permute.xlu0 %3057
        %3059 = vrot.lane.b32.xlu0 %v970, 16
        %v3060 = vpop.permute.xlu0 %3059
        %3061 = vrot.lane.b32.xlu0 %v2806, 16
        %v3062 = vpop.permute.xlu0 %3061
        %3063 = vrot.lane.b32.xlu0 %v2808, 16
        %v3064 = vpop.permute.xlu0 %3063
        %3065 = vrot.lane.b32.xlu0 %v2810, 16
        %v3066 = vpop.permute.xlu0 %3065
        %3067 = vrot.lane.b32.xlu0 %v2812, 16
        %v3068 = vpop.permute.xlu0 %3067
        %vm3197 = vcmask 162944
        %3198 = vst.msk [vmem:[#allocation2] sm:$0xff] %vm3197, %v2814
        %3199 = vst.msk [vmem:[#allocation2 + $0x8] sm:$0xff] %vm3197, %v2816
        %3200 = vst.msk [vmem:[#allocation2 + $0x10] sm:$0xff] %vm3197, %v2818
        %3201 = vst.msk [vmem:[#allocation2 + $0x18] sm:$0xff] %vm3197, %v2820
        %3202 = vst.msk [vmem:[#allocation2 + $0x20] sm:$0xff] %vm3197, %v2822
        %3203 = vst.msk [vmem:[#allocation2 + $0x28] sm:$0xff] %vm3197, %v2824
        %3204 = vst.msk [vmem:[#allocation2 + $0x30] sm:$0xff] %vm3197, %v2826
        %3205 = vst.msk [vmem:[#allocation2 + $0x38] sm:$0xff] %vm3197, %v2828
        %3206 = vst.msk [vmem:[#allocation2 + $0x40] sm:$0xff] %vm3197, %v2830
        %3207 = vst.msk [vmem:[#allocation2 + $0x48] sm:$0xff] %vm3197, %v2832
        %3208 = vst.msk [vmem:[#allocation2 + $0x50] sm:$0xff] %vm3197, %v2834
        %3209 = vst.msk [vmem:[#allocation2 + $0x58] sm:$0xff] %vm3197, %v2836
        %3210 = vst.msk [vmem:[#allocation2 + $0x60] sm:$0xff] %vm3197, %v2838
        %3211 = vst.msk [vmem:[#allocation2 + $0x68] sm:$0xff] %vm3197, %v2840
        %3212 = vst.msk [vmem:[#allocation2 + $0x70] sm:$0xff] %vm3197, %v2842
        %3213 = vst.msk [vmem:[#allocation2 + $0x78] sm:$0xff] %vm3197, %v2844
        %3214 = vst.msk [vmem:[#allocation2 + $0x80] sm:$0xff] %vm3197, %v2846
        %3215 = vst.msk [vmem:[#allocation2 + $0x88] sm:$0xff] %vm3197, %v2848
        %3216 = vst.msk [vmem:[#allocation2 + $0x90] sm:$0xff] %vm3197, %v2850
        %3217 = vst.msk [vmem:[#allocation2 + $0x98] sm:$0xff] %vm3197, %v2852
        %3218 = vst.msk [vmem:[#allocation2 + $0xa0] sm:$0xff] %vm3197, %v2854
        %3219 = vst.msk [vmem:[#allocation2 + $0xa8] sm:$0xff] %vm3197, %v2856
        %3220 = vst.msk [vmem:[#allocation2 + $0xb0] sm:$0xff] %vm3197, %v2858
        %3221 = vst.msk [vmem:[#allocation2 + $0xb8] sm:$0xff] %vm3197, %v2860
        %3222 = vst.msk [vmem:[#allocation2 + $0xc0] sm:$0xff] %vm3197, %v2862
        %3223 = vst.msk [vmem:[#allocation2 + $0xc8] sm:$0xff] %vm3197, %v2864
        %3224 = vst.msk [vmem:[#allocation2 + $0xd0] sm:$0xff] %vm3197, %v2866
        %3225 = vst.msk [vmem:[#allocation2 + $0xd8] sm:$0xff] %vm3197, %v2868
        %3226 = vst.msk [vmem:[#allocation2 + $0xe0] sm:$0xff] %vm3197, %v2870
        %3227 = vst.msk [vmem:[#allocation2 + $0xe8] sm:$0xff] %vm3197, %v2872
        %3228 = vst.msk [vmem:[#allocation2 + $0xf0] sm:$0xff] %vm3197, %v2874
        %3229 = vst.msk [vmem:[#allocation2 + $0xf8] sm:$0xff] %vm3197, %v2876
        %3230 = vst.msk [vmem:[#allocation2 + $0x100] sm:$0xff] %vm3197, %v2878
        %3231 = vst.msk [vmem:[#allocation2 + $0x108] sm:$0xff] %vm3197, %v2880
        %3232 = vst.msk [vmem:[#allocation2 + $0x110] sm:$0xff] %vm3197, %v2882
        %3233 = vst.msk [vmem:[#allocation2 + $0x118] sm:$0xff] %vm3197, %v2884
        %3234 = vst.msk [vmem:[#allocation2 + $0x120] sm:$0xff] %vm3197, %v2886
        %3235 = vst.msk [vmem:[#allocation2 + $0x128] sm:$0xff] %vm3197, %v2888
        %3236 = vst.msk [vmem:[#allocation2 + $0x130] sm:$0xff] %vm3197, %v2890
        %3237 = vst.msk [vmem:[#allocation2 + $0x138] sm:$0xff] %vm3197, %v2892
        %3238 = vst.msk [vmem:[#allocation2 + $0x140] sm:$0xff] %vm3197, %v2894
        %3239 = vst.msk [vmem:[#allocation2 + $0x148] sm:$0xff] %vm3197, %v2896
        %3240 = vst.msk [vmem:[#allocation2 + $0x150] sm:$0xff] %vm3197, %v2898
        %3241 = vst.msk [vmem:[#allocation2 + $0x158] sm:$0xff] %vm3197, %v2900
        %3242 = vst.msk [vmem:[#allocation2 + $0x160] sm:$0xff] %vm3197, %v2902
        %3243 = vst.msk [vmem:[#allocation2 + $0x168] sm:$0xff] %vm3197, %v2904
        %3244 = vst.msk [vmem:[#allocation2 + $0x170] sm:$0xff] %vm3197, %v2906
        %3245 = vst.msk [vmem:[#allocation2 + $0x178] sm:$0xff] %vm3197, %v2908
        %3246 = vst.msk [vmem:[#allocation2 + $0x180] sm:$0xff] %vm3197, %v2910
        %3247 = vst.msk [vmem:[#allocation2 + $0x188] sm:$0xff] %vm3197, %v2912
        %3248 = vst.msk [vmem:[#allocation2 + $0x190] sm:$0xff] %vm3197, %v2914
        %3249 = vst.msk [vmem:[#allocation2 + $0x198] sm:$0xff] %vm3197, %v2916
        %3250 = vst.msk [vmem:[#allocation2 + $0x1a0] sm:$0xff] %vm3197, %v2918
        %3251 = vst.msk [vmem:[#allocation2 + $0x1a8] sm:$0xff] %vm3197, %v2920
        %3252 = vst.msk [vmem:[#allocation2 + $0x1b0] sm:$0xff] %vm3197, %v2922
        %3253 = vst.msk [vmem:[#allocation2 + $0x1b8] sm:$0xff] %vm3197, %v2924
        %3254 = vst.msk [vmem:[#allocation2 + $0x1c0] sm:$0xff] %vm3197, %v2926
        %3255 = vst.msk [vmem:[#allocation2 + $0x1c8] sm:$0xff] %vm3197, %v2928
        %3256 = vst.msk [vmem:[#allocation2 + $0x1d0] sm:$0xff] %vm3197, %v2930
        %3257 = vst.msk [vmem:[#allocation2 + $0x1d8] sm:$0xff] %vm3197, %v2932
        %3258 = vst.msk [vmem:[#allocation2 + $0x1e0] sm:$0xff] %vm3197, %v2934
        %3259 = vst.msk [vmem:[#allocation2 + $0x1e8] sm:$0xff] %vm3197, %v2936
        %3260 = vst.msk [vmem:[#allocation2 + $0x1f0] sm:$0xff] %vm3197, %v2938
        %3261 = vst.msk [vmem:[#allocation2 + $0x1f8] sm:$0xff] %vm3197, %v2940
        %3262 = vst.msk [vmem:[#allocation2 + $0x200] sm:$0xff] %vm3197, %v2942
        %3263 = vst.msk [vmem:[#allocation2 + $0x208] sm:$0xff] %vm3197, %v2944
        %3264 = vst.msk [vmem:[#allocation2 + $0x210] sm:$0xff] %vm3197, %v2946
        %3265 = vst.msk [vmem:[#allocation2 + $0x218] sm:$0xff] %vm3197, %v2948
        %3266 = vst.msk [vmem:[#allocation2 + $0x220] sm:$0xff] %vm3197, %v2950
        %3267 = vst.msk [vmem:[#allocation2 + $0x228] sm:$0xff] %vm3197, %v2952
        %3268 = vst.msk [vmem:[#allocation2 + $0x230] sm:$0xff] %vm3197, %v2954
        %3269 = vst.msk [vmem:[#allocation2 + $0x238] sm:$0xff] %vm3197, %v2956
        %3270 = vst.msk [vmem:[#allocation2 + $0x240] sm:$0xff] %vm3197, %v2958
        %3271 = vst.msk [vmem:[#allocation2 + $0x248] sm:$0xff] %vm3197, %v2960
        %3272 = vst.msk [vmem:[#allocation2 + $0x250] sm:$0xff] %vm3197, %v2962
        %3273 = vst.msk [vmem:[#allocation2 + $0x258] sm:$0xff] %vm3197, %v2964
        %3274 = vst.msk [vmem:[#allocation2 + $0x260] sm:$0xff] %vm3197, %v2966
        %3275 = vst.msk [vmem:[#allocation2 + $0x268] sm:$0xff] %vm3197, %v2968
        %3276 = vst.msk [vmem:[#allocation2 + $0x270] sm:$0xff] %vm3197, %v2970
        %3277 = vst.msk [vmem:[#allocation2 + $0x278] sm:$0xff] %vm3197, %v2972
        %3278 = vst.msk [vmem:[#allocation2 + $0x280] sm:$0xff] %vm3197, %v2974
        %3279 = vst.msk [vmem:[#allocation2 + $0x288] sm:$0xff] %vm3197, %v2976
        %3280 = vst.msk [vmem:[#allocation2 + $0x290] sm:$0xff] %vm3197, %v2978
        %3281 = vst.msk [vmem:[#allocation2 + $0x298] sm:$0xff] %vm3197, %v2980
        %3282 = vst.msk [vmem:[#allocation2 + $0x2a0] sm:$0xff] %vm3197, %v2982
        %3283 = vst.msk [vmem:[#allocation2 + $0x2a8] sm:$0xff] %vm3197, %v2984
        %3284 = vst.msk [vmem:[#allocation2 + $0x2b0] sm:$0xff] %vm3197, %v2986
        %3285 = vst.msk [vmem:[#allocation2 + $0x2b8] sm:$0xff] %vm3197, %v2988
        %3286 = vst.msk [vmem:[#allocation2 + $0x2c0] sm:$0xff] %vm3197, %v2990
        %3287 = vst.msk [vmem:[#allocation2 + $0x2c8] sm:$0xff] %vm3197, %v2992
        %3288 = vst.msk [vmem:[#allocation2 + $0x2d0] sm:$0xff] %vm3197, %v2994
        %3289 = vst.msk [vmem:[#allocation2 + $0x2d8] sm:$0xff] %vm3197, %v2996
        %3290 = vst.msk [vmem:[#allocation2 + $0x2e0] sm:$0xff] %vm3197, %v2998
        %3291 = vst.msk [vmem:[#allocation2 + $0x2e8] sm:$0xff] %vm3197, %v3000
        %3292 = vst.msk [vmem:[#allocation2 + $0x2f0] sm:$0xff] %vm3197, %v3002
        %3293 = vst.msk [vmem:[#allocation2 + $0x2f8] sm:$0xff] %vm3197, %v3004
        %3294 = vst.msk [vmem:[#allocation2 + $0x300] sm:$0xff] %vm3197, %v3006
        %3295 = vst.msk [vmem:[#allocation2 + $0x308] sm:$0xff] %vm3197, %v3008
        %3296 = vst.msk [vmem:[#allocation2 + $0x310] sm:$0xff] %vm3197, %v3010
        %3297 = vst.msk [vmem:[#allocation2 + $0x318] sm:$0xff] %vm3197, %v3012
        %3298 = vst.msk [vmem:[#allocation2 + $0x320] sm:$0xff] %vm3197, %v3014
        %3299 = vst.msk [vmem:[#allocation2 + $0x328] sm:$0xff] %vm3197, %v3016
        %3300 = vst.msk [vmem:[#allocation2 + $0x330] sm:$0xff] %vm3197, %v3018
        %3301 = vst.msk [vmem:[#allocation2 + $0x338] sm:$0xff] %vm3197, %v3020
        %3302 = vst.msk [vmem:[#allocation2 + $0x340] sm:$0xff] %vm3197, %v3022
        %3303 = vst.msk [vmem:[#allocation2 + $0x348] sm:$0xff] %vm3197, %v3024
        %3304 = vst.msk [vmem:[#allocation2 + $0x350] sm:$0xff] %vm3197, %v3026
        %3305 = vst.msk [vmem:[#allocation2 + $0x358] sm:$0xff] %vm3197, %v3028
        %3306 = vst.msk [vmem:[#allocation2 + $0x360] sm:$0xff] %vm3197, %v3030
        %3307 = vst.msk [vmem:[#allocation2 + $0x368] sm:$0xff] %vm3197, %v3032
        %3308 = vst.msk [vmem:[#allocation2 + $0x370] sm:$0xff] %vm3197, %v3034
        %3309 = vst.msk [vmem:[#allocation2 + $0x378] sm:$0xff] %vm3197, %v3036
        %3310 = vst.msk [vmem:[#allocation2 + $0x380] sm:$0xff] %vm3197, %v3038
        %3311 = vst.msk [vmem:[#allocation2 + $0x388] sm:$0xff] %vm3197, %v3040
        %3312 = vst.msk [vmem:[#allocation2 + $0x390] sm:$0xff] %vm3197, %v3042
        %3313 = vst.msk [vmem:[#allocation2 + $0x398] sm:$0xff] %vm3197, %v3044
        %3314 = vst.msk [vmem:[#allocation2 + $0x3a0] sm:$0xff] %vm3197, %v3046
        %3315 = vst.msk [vmem:[#allocation2 + $0x3a8] sm:$0xff] %vm3197, %v3048
        %3316 = vst.msk [vmem:[#allocation2 + $0x3b0] sm:$0xff] %vm3197, %v3050
        %3317 = vst.msk [vmem:[#allocation2 + $0x3b8] sm:$0xff] %vm3197, %v3052
        %3318 = vst.msk [vmem:[#allocation2 + $0x3c0] sm:$0xff] %vm3197, %v3054
        %3319 = vst.msk [vmem:[#allocation2 + $0x3c8] sm:$0xff] %vm3197, %v3056
        %3320 = vst.msk [vmem:[#allocation2 + $0x3d0] sm:$0xff] %vm3197, %v3058
        %3321 = vst.msk [vmem:[#allocation2 + $0x3d8] sm:$0xff] %vm3197, %v3060
        %3322 = vst.msk [vmem:[#allocation2 + $0x3e0] sm:$0xff] %vm3197, %v3062
        %3323 = vst.msk [vmem:[#allocation2 + $0x3e8] sm:$0xff] %vm3197, %v3064
        %3324 = vst.msk [vmem:[#allocation2 + $0x3f0] sm:$0xff] %vm3197, %v3066
        %3325 = vst.msk [vmem:[#allocation2 + $0x3f8] sm:$0xff] %vm3197, %v3068
        %v3326 = vrot.slane %v383, 2
        %v3327 = vrot.slane %v384, 2
        %v3328 = vsel %vm1484, %v3326, %v3327
        %v3329 = vrot.slane %v385, 2
        %v3330 = vsel %vm1484, %v3327, %v3329
        %v3331 = vrot.slane %v386, 2
        %v3332 = vsel %vm1484, %v3329, %v3331
        %v3333 = vrot.slane %v387, 2
        %v3334 = vsel %vm1484, %v3331, %v3333
        %3335 = vrot.lane.b32.xlu0 %v1496, 20
        %v3336 = vpop.permute.xlu0 %3335
        %3337 = vrot.lane.b32.xlu0 %v1498, 20
        %v3338 = vpop.permute.xlu0 %3337
        %3339 = vrot.lane.b32.xlu0 %v1500, 20
        %v3340 = vpop.permute.xlu0 %3339
        %3341 = vrot.lane.b32.xlu0 %v1502, 20
        %v3342 = vpop.permute.xlu0 %3341
        %3343 = vrot.lane.b32.xlu0 %v1505, 20
        %v3344 = vpop.permute.xlu0 %3343
        %3345 = vrot.lane.b32.xlu0 %v1507, 20
        %v3346 = vpop.permute.xlu0 %3345
        %3347 = vrot.lane.b32.xlu0 %v1509, 20
        %v3348 = vpop.permute.xlu0 %3347
        %3349 = vrot.lane.b32.xlu0 %v1511, 20
        %v3350 = vpop.permute.xlu0 %3349
        %3351 = vrot.lane.b32.xlu0 %v1514, 20
        %v3352 = vpop.permute.xlu0 %3351
        %3353 = vrot.lane.b32.xlu0 %v1516, 20
        %v3354 = vpop.permute.xlu0 %3353
        %3355 = vrot.lane.b32.xlu0 %v1518, 20
        %v3356 = vpop.permute.xlu0 %3355
        %3357 = vrot.lane.b32.xlu0 %v1520, 20
        %v3358 = vpop.permute.xlu0 %3357
        %3359 = vrot.lane.b32.xlu0 %v1523, 20
        %v3360 = vpop.permute.xlu0 %3359
        %3361 = vrot.lane.b32.xlu0 %v1525, 20
        %v3362 = vpop.permute.xlu0 %3361
        %3363 = vrot.lane.b32.xlu0 %v1527, 20
        %v3364 = vpop.permute.xlu0 %3363
        %3365 = vrot.lane.b32.xlu0 %v1529, 20
        %v3366 = vpop.permute.xlu0 %3365
        %3367 = vrot.lane.b32.xlu0 %v1532, 20
        %v3368 = vpop.permute.xlu0 %3367
        %3369 = vrot.lane.b32.xlu0 %v1534, 20
        %v3370 = vpop.permute.xlu0 %3369
        %3371 = vrot.lane.b32.xlu0 %v1536, 20
        %v3372 = vpop.permute.xlu0 %3371
        %3373 = vrot.lane.b32.xlu0 %v1538, 20
        %v3374 = vpop.permute.xlu0 %3373
        %3375 = vrot.lane.b32.xlu0 %v1541, 20
        %v3376 = vpop.permute.xlu0 %3375
        %3377 = vrot.lane.b32.xlu0 %v1543, 20
        %v3378 = vpop.permute.xlu0 %3377
        %3379 = vrot.lane.b32.xlu0 %v1545, 20
        %v3380 = vpop.permute.xlu0 %3379
        %3381 = vrot.lane.b32.xlu0 %v1547, 20
        %v3382 = vpop.permute.xlu0 %3381
        %3383 = vrot.lane.b32.xlu0 %v1550, 20
        %v3384 = vpop.permute.xlu0 %3383
        %3385 = vrot.lane.b32.xlu0 %v1552, 20
        %v3386 = vpop.permute.xlu0 %3385
        %3387 = vrot.lane.b32.xlu0 %v1554, 20
        %v3388 = vpop.permute.xlu0 %3387
        %3389 = vrot.lane.b32.xlu0 %v1556, 20
        %v3390 = vpop.permute.xlu0 %3389
        %3391 = vrot.lane.b32.xlu0 %v1559, 20
        %v3392 = vpop.permute.xlu0 %3391
        %3393 = vrot.lane.b32.xlu0 %v1561, 20
        %v3394 = vpop.permute.xlu0 %3393
        %3395 = vrot.lane.b32.xlu0 %v1563, 20
        %v3396 = vpop.permute.xlu0 %3395
        %3397 = vrot.lane.b32.xlu0 %v1565, 20
        %v3398 = vpop.permute.xlu0 %3397
        %3399 = vrot.lane.b32.xlu0 %v1568, 20
        %v3400 = vpop.permute.xlu0 %3399
        %3401 = vrot.lane.b32.xlu0 %v1570, 20
        %v3402 = vpop.permute.xlu0 %3401
        %3403 = vrot.lane.b32.xlu0 %v1572, 20
        %v3404 = vpop.permute.xlu0 %3403
        %3405 = vrot.lane.b32.xlu0 %v1574, 20
        %v3406 = vpop.permute.xlu0 %3405
        %3407 = vrot.lane.b32.xlu0 %v1577, 20
        %v3408 = vpop.permute.xlu0 %3407
        %3409 = vrot.lane.b32.xlu0 %v1579, 20
        %v3410 = vpop.permute.xlu0 %3409
        %3411 = vrot.lane.b32.xlu0 %v1581, 20
        %v3412 = vpop.permute.xlu0 %3411
        %3413 = vrot.lane.b32.xlu0 %v1583, 20
        %v3414 = vpop.permute.xlu0 %3413
        %3415 = vrot.lane.b32.xlu0 %v1586, 20
        %v3416 = vpop.permute.xlu0 %3415
        %3417 = vrot.lane.b32.xlu0 %v1588, 20
        %v3418 = vpop.permute.xlu0 %3417
        %3419 = vrot.lane.b32.xlu0 %v1590, 20
        %v3420 = vpop.permute.xlu0 %3419
        %3421 = vrot.lane.b32.xlu0 %v1592, 20
        %v3422 = vpop.permute.xlu0 %3421
        %3423 = vrot.lane.b32.xlu0 %v1595, 20
        %v3424 = vpop.permute.xlu0 %3423
        %3425 = vrot.lane.b32.xlu0 %v1597, 20
        %v3426 = vpop.permute.xlu0 %3425
        %3427 = vrot.lane.b32.xlu0 %v1599, 20
        %v3428 = vpop.permute.xlu0 %3427
        %3429 = vrot.lane.b32.xlu0 %v1601, 20
        %v3430 = vpop.permute.xlu0 %3429
        %3431 = vrot.lane.b32.xlu0 %v1604, 20
        %v3432 = vpop.permute.xlu0 %3431
        %3433 = vrot.lane.b32.xlu0 %v1606, 20
        %v3434 = vpop.permute.xlu0 %3433
        %3435 = vrot.lane.b32.xlu0 %v1608, 20
        %v3436 = vpop.permute.xlu0 %3435
        %3437 = vrot.lane.b32.xlu0 %v1610, 20
        %v3438 = vpop.permute.xlu0 %3437
        %3439 = vrot.lane.b32.xlu0 %v1613, 20
        %v3440 = vpop.permute.xlu0 %3439
        %3441 = vrot.lane.b32.xlu0 %v1615, 20
        %v3442 = vpop.permute.xlu0 %3441
        %3443 = vrot.lane.b32.xlu0 %v1617, 20
        %v3444 = vpop.permute.xlu0 %3443
        %3445 = vrot.lane.b32.xlu0 %v1619, 20
        %v3446 = vpop.permute.xlu0 %3445
        %3447 = vrot.lane.b32.xlu0 %v1622, 20
        %v3448 = vpop.permute.xlu0 %3447
        %3449 = vrot.lane.b32.xlu0 %v1624, 20
        %v3450 = vpop.permute.xlu0 %3449
        %3451 = vrot.lane.b32.xlu0 %v1626, 20
        %v3452 = vpop.permute.xlu0 %3451
        %3453 = vrot.lane.b32.xlu0 %v1628, 20
        %v3454 = vpop.permute.xlu0 %3453
        %3455 = vrot.lane.b32.xlu0 %v1631, 20
        %v3456 = vpop.permute.xlu0 %3455
        %3457 = vrot.lane.b32.xlu0 %v1633, 20
        %v3458 = vpop.permute.xlu0 %3457
        %3459 = vrot.lane.b32.xlu0 %v1635, 20
        %v3460 = vpop.permute.xlu0 %3459
        %3461 = vrot.lane.b32.xlu0 %v1637, 20
        %v3462 = vpop.permute.xlu0 %3461
        %3463 = vrot.lane.b32.xlu0 %v1640, 20
        %v3464 = vpop.permute.xlu0 %3463
        %3465 = vrot.lane.b32.xlu0 %v1642, 20
        %v3466 = vpop.permute.xlu0 %3465
        %3467 = vrot.lane.b32.xlu0 %v1644, 20
        %v3468 = vpop.permute.xlu0 %3467
        %3469 = vrot.lane.b32.xlu0 %v1646, 20
        %v3470 = vpop.permute.xlu0 %3469
        %3471 = vrot.lane.b32.xlu0 %v1649, 20
        %v3472 = vpop.permute.xlu0 %3471
        %3473 = vrot.lane.b32.xlu0 %v1651, 20
        %v3474 = vpop.permute.xlu0 %3473
        %3475 = vrot.lane.b32.xlu0 %v1653, 20
        %v3476 = vpop.permute.xlu0 %3475
        %3477 = vrot.lane.b32.xlu0 %v1655, 20
        %v3478 = vpop.permute.xlu0 %3477
        %3479 = vrot.lane.b32.xlu0 %v1658, 20
        %v3480 = vpop.permute.xlu0 %3479
        %3481 = vrot.lane.b32.xlu0 %v1660, 20
        %v3482 = vpop.permute.xlu0 %3481
        %3483 = vrot.lane.b32.xlu0 %v1662, 20
        %v3484 = vpop.permute.xlu0 %3483
        %3485 = vrot.lane.b32.xlu0 %v1664, 20
        %v3486 = vpop.permute.xlu0 %3485
        %3487 = vrot.lane.b32.xlu0 %v1667, 20
        %v3488 = vpop.permute.xlu0 %3487
        %3489 = vrot.lane.b32.xlu0 %v1669, 20
        %v3490 = vpop.permute.xlu0 %3489
        %3491 = vrot.lane.b32.xlu0 %v1671, 20
        %v3492 = vpop.permute.xlu0 %3491
        %3493 = vrot.lane.b32.xlu0 %v1673, 20
        %v3494 = vpop.permute.xlu0 %3493
        %3495 = vrot.lane.b32.xlu0 %v1676, 20
        %v3496 = vpop.permute.xlu0 %3495
        %3497 = vrot.lane.b32.xlu0 %v1678, 20
        %v3498 = vpop.permute.xlu0 %3497
        %3499 = vrot.lane.b32.xlu0 %v1680, 20
        %v3500 = vpop.permute.xlu0 %3499
        %3501 = vrot.lane.b32.xlu0 %v1682, 20
        %v3502 = vpop.permute.xlu0 %3501
        %3503 = vrot.lane.b32.xlu0 %v1685, 20
        %v3504 = vpop.permute.xlu0 %3503
        %3505 = vrot.lane.b32.xlu0 %v1687, 20
        %v3506 = vpop.permute.xlu0 %3505
        %3507 = vrot.lane.b32.xlu0 %v1689, 20
        %v3508 = vpop.permute.xlu0 %3507
        %3509 = vrot.lane.b32.xlu0 %v1691, 20
        %v3510 = vpop.permute.xlu0 %3509
        %3511 = vrot.lane.b32.xlu0 %v1694, 20
        %v3512 = vpop.permute.xlu0 %3511
        %3513 = vrot.lane.b32.xlu0 %v1696, 20
        %v3514 = vpop.permute.xlu0 %3513
        %3515 = vrot.lane.b32.xlu0 %v1698, 20
        %v3516 = vpop.permute.xlu0 %3515
        %3517 = vrot.lane.b32.xlu0 %v1700, 20
        %v3518 = vpop.permute.xlu0 %3517
        %3519 = vrot.lane.b32.xlu0 %v1703, 20
        %v3520 = vpop.permute.xlu0 %3519
        %3521 = vrot.lane.b32.xlu0 %v1705, 20
        %v3522 = vpop.permute.xlu0 %3521
        %3523 = vrot.lane.b32.xlu0 %v1707, 20
        %v3524 = vpop.permute.xlu0 %3523
        %3525 = vrot.lane.b32.xlu0 %v1709, 20
        %v3526 = vpop.permute.xlu0 %3525
        %3527 = vrot.lane.b32.xlu0 %v1712, 20
        %v3528 = vpop.permute.xlu0 %3527
        %3529 = vrot.lane.b32.xlu0 %v1714, 20
        %v3530 = vpop.permute.xlu0 %3529
        %3531 = vrot.lane.b32.xlu0 %v1716, 20
        %v3532 = vpop.permute.xlu0 %3531
        %3533 = vrot.lane.b32.xlu0 %v1718, 20
        %v3534 = vpop.permute.xlu0 %3533
        %3535 = vrot.lane.b32.xlu0 %v1721, 20
        %v3536 = vpop.permute.xlu0 %3535
        %3537 = vrot.lane.b32.xlu0 %v1723, 20
        %v3538 = vpop.permute.xlu0 %3537
        %3539 = vrot.lane.b32.xlu0 %v1725, 20
        %v3540 = vpop.permute.xlu0 %3539
        %3541 = vrot.lane.b32.xlu0 %v1727, 20
        %v3542 = vpop.permute.xlu0 %3541
        %3543 = vrot.lane.b32.xlu0 %v1730, 20
        %v3544 = vpop.permute.xlu0 %3543
        %3545 = vrot.lane.b32.xlu0 %v1732, 20
        %v3546 = vpop.permute.xlu0 %3545
        %3547 = vrot.lane.b32.xlu0 %v1734, 20
        %v3548 = vpop.permute.xlu0 %3547
        %3549 = vrot.lane.b32.xlu0 %v1736, 20
        %v3550 = vpop.permute.xlu0 %3549
        %3551 = vrot.lane.b32.xlu0 %v1739, 20
        %v3552 = vpop.permute.xlu0 %3551
        %3553 = vrot.lane.b32.xlu0 %v1741, 20
        %v3554 = vpop.permute.xlu0 %3553
        %3555 = vrot.lane.b32.xlu0 %v1743, 20
        %v3556 = vpop.permute.xlu0 %3555
        %3557 = vrot.lane.b32.xlu0 %v1745, 20
        %v3558 = vpop.permute.xlu0 %3557
        %3559 = vrot.lane.b32.xlu0 %v1748, 20
        %v3560 = vpop.permute.xlu0 %3559
        %3561 = vrot.lane.b32.xlu0 %v1750, 20
        %v3562 = vpop.permute.xlu0 %3561
        %3563 = vrot.lane.b32.xlu0 %v1752, 20
        %v3564 = vpop.permute.xlu0 %3563
        %3565 = vrot.lane.b32.xlu0 %v1754, 20
        %v3566 = vpop.permute.xlu0 %3565
        %3567 = vrot.lane.b32.xlu0 %v1757, 20
        %v3568 = vpop.permute.xlu0 %3567
        %3569 = vrot.lane.b32.xlu0 %v1759, 20
        %v3570 = vpop.permute.xlu0 %3569
        %3571 = vrot.lane.b32.xlu0 %v1761, 20
        %v3572 = vpop.permute.xlu0 %3571
        %3573 = vrot.lane.b32.xlu0 %v1763, 20
        %v3574 = vpop.permute.xlu0 %3573
        %3575 = vrot.lane.b32.xlu0 %v1766, 20
        %v3576 = vpop.permute.xlu0 %3575
        %3577 = vrot.lane.b32.xlu0 %v1768, 20
        %v3578 = vpop.permute.xlu0 %3577
        %3579 = vrot.lane.b32.xlu0 %v1770, 20
        %v3580 = vpop.permute.xlu0 %3579
        %3581 = vrot.lane.b32.xlu0 %v1772, 20
        %v3582 = vpop.permute.xlu0 %3581
        %3583 = vrot.lane.b32.xlu0 %v3328, 20
        %v3584 = vpop.permute.xlu0 %3583
        %3585 = vrot.lane.b32.xlu0 %v3330, 20
        %v3586 = vpop.permute.xlu0 %3585
        %3587 = vrot.lane.b32.xlu0 %v3332, 20
        %v3588 = vpop.permute.xlu0 %3587
        %3589 = vrot.lane.b32.xlu0 %v3334, 20
        %v3590 = vpop.permute.xlu0 %3589
        %vm3719 = vcmask 195744
        %3720 = vst.msk [vmem:[#allocation2] sm:$0xff] %vm3719, %v3336
        %3721 = vst.msk [vmem:[#allocation2 + $0x8] sm:$0xff] %vm3719, %v3338
        %3722 = vst.msk [vmem:[#allocation2 + $0x10] sm:$0xff] %vm3719, %v3340
        %3723 = vst.msk [vmem:[#allocation2 + $0x18] sm:$0xff] %vm3719, %v3342
        %3724 = vst.msk [vmem:[#allocation2 + $0x20] sm:$0xff] %vm3719, %v3344
        %3725 = vst.msk [vmem:[#allocation2 + $0x28] sm:$0xff] %vm3719, %v3346
        %3726 = vst.msk [vmem:[#allocation2 + $0x30] sm:$0xff] %vm3719, %v3348
        %3727 = vst.msk [vmem:[#allocation2 + $0x38] sm:$0xff] %vm3719, %v3350
        %3728 = vst.msk [vmem:[#allocation2 + $0x40] sm:$0xff] %vm3719, %v3352
        %3729 = vst.msk [vmem:[#allocation2 + $0x48] sm:$0xff] %vm3719, %v3354
        %3730 = vst.msk [vmem:[#allocation2 + $0x50] sm:$0xff] %vm3719, %v3356
        %3731 = vst.msk [vmem:[#allocation2 + $0x58] sm:$0xff] %vm3719, %v3358
        %3732 = vst.msk [vmem:[#allocation2 + $0x60] sm:$0xff] %vm3719, %v3360
        %3733 = vst.msk [vmem:[#allocation2 + $0x68] sm:$0xff] %vm3719, %v3362
        %3734 = vst.msk [vmem:[#allocation2 + $0x70] sm:$0xff] %vm3719, %v3364
        %3735 = vst.msk [vmem:[#allocation2 + $0x78] sm:$0xff] %vm3719, %v3366
        %3736 = vst.msk [vmem:[#allocation2 + $0x80] sm:$0xff] %vm3719, %v3368
        %3737 = vst.msk [vmem:[#allocation2 + $0x88] sm:$0xff] %vm3719, %v3370
        %3738 = vst.msk [vmem:[#allocation2 + $0x90] sm:$0xff] %vm3719, %v3372
        %3739 = vst.msk [vmem:[#allocation2 + $0x98] sm:$0xff] %vm3719, %v3374
        %3740 = vst.msk [vmem:[#allocation2 + $0xa0] sm:$0xff] %vm3719, %v3376
        %3741 = vst.msk [vmem:[#allocation2 + $0xa8] sm:$0xff] %vm3719, %v3378
        %3742 = vst.msk [vmem:[#allocation2 + $0xb0] sm:$0xff] %vm3719, %v3380
        %3743 = vst.msk [vmem:[#allocation2 + $0xb8] sm:$0xff] %vm3719, %v3382
        %3744 = vst.msk [vmem:[#allocation2 + $0xc0] sm:$0xff] %vm3719, %v3384
        %3745 = vst.msk [vmem:[#allocation2 + $0xc8] sm:$0xff] %vm3719, %v3386
        %3746 = vst.msk [vmem:[#allocation2 + $0xd0] sm:$0xff] %vm3719, %v3388
        %3747 = vst.msk [vmem:[#allocation2 + $0xd8] sm:$0xff] %vm3719, %v3390
        %3748 = vst.msk [vmem:[#allocation2 + $0xe0] sm:$0xff] %vm3719, %v3392
        %3749 = vst.msk [vmem:[#allocation2 + $0xe8] sm:$0xff] %vm3719, %v3394
        %3750 = vst.msk [vmem:[#allocation2 + $0xf0] sm:$0xff] %vm3719, %v3396
        %3751 = vst.msk [vmem:[#allocation2 + $0xf8] sm:$0xff] %vm3719, %v3398
        %3752 = vst.msk [vmem:[#allocation2 + $0x100] sm:$0xff] %vm3719, %v3400
        %3753 = vst.msk [vmem:[#allocation2 + $0x108] sm:$0xff] %vm3719, %v3402
        %3754 = vst.msk [vmem:[#allocation2 + $0x110] sm:$0xff] %vm3719, %v3404
        %3755 = vst.msk [vmem:[#allocation2 + $0x118] sm:$0xff] %vm3719, %v3406
        %3756 = vst.msk [vmem:[#allocation2 + $0x120] sm:$0xff] %vm3719, %v3408
        %3757 = vst.msk [vmem:[#allocation2 + $0x128] sm:$0xff] %vm3719, %v3410
        %3758 = vst.msk [vmem:[#allocation2 + $0x130] sm:$0xff] %vm3719, %v3412
        %3759 = vst.msk [vmem:[#allocation2 + $0x138] sm:$0xff] %vm3719, %v3414
        %3760 = vst.msk [vmem:[#allocation2 + $0x140] sm:$0xff] %vm3719, %v3416
        %3761 = vst.msk [vmem:[#allocation2 + $0x148] sm:$0xff] %vm3719, %v3418
        %3762 = vst.msk [vmem:[#allocation2 + $0x150] sm:$0xff] %vm3719, %v3420
        %3763 = vst.msk [vmem:[#allocation2 + $0x158] sm:$0xff] %vm3719, %v3422
        %3764 = vst.msk [vmem:[#allocation2 + $0x160] sm:$0xff] %vm3719, %v3424
        %3765 = vst.msk [vmem:[#allocation2 + $0x168] sm:$0xff] %vm3719, %v3426
        %3766 = vst.msk [vmem:[#allocation2 + $0x170] sm:$0xff] %vm3719, %v3428
        %3767 = vst.msk [vmem:[#allocation2 + $0x178] sm:$0xff] %vm3719, %v3430
        %3768 = vst.msk [vmem:[#allocation2 + $0x180] sm:$0xff] %vm3719, %v3432
        %3769 = vst.msk [vmem:[#allocation2 + $0x188] sm:$0xff] %vm3719, %v3434
        %3770 = vst.msk [vmem:[#allocation2 + $0x190] sm:$0xff] %vm3719, %v3436
        %3771 = vst.msk [vmem:[#allocation2 + $0x198] sm:$0xff] %vm3719, %v3438
        %3772 = vst.msk [vmem:[#allocation2 + $0x1a0] sm:$0xff] %vm3719, %v3440
        %3773 = vst.msk [vmem:[#allocation2 + $0x1a8] sm:$0xff] %vm3719, %v3442
        %3774 = vst.msk [vmem:[#allocation2 + $0x1b0] sm:$0xff] %vm3719, %v3444
        %3775 = vst.msk [vmem:[#allocation2 + $0x1b8] sm:$0xff] %vm3719, %v3446
        %3776 = vst.msk [vmem:[#allocation2 + $0x1c0] sm:$0xff] %vm3719, %v3448
        %3777 = vst.msk [vmem:[#allocation2 + $0x1c8] sm:$0xff] %vm3719, %v3450
        %3778 = vst.msk [vmem:[#allocation2 + $0x1d0] sm:$0xff] %vm3719, %v3452
        %3779 = vst.msk [vmem:[#allocation2 + $0x1d8] sm:$0xff] %vm3719, %v3454
        %3780 = vst.msk [vmem:[#allocation2 + $0x1e0] sm:$0xff] %vm3719, %v3456
        %3781 = vst.msk [vmem:[#allocation2 + $0x1e8] sm:$0xff] %vm3719, %v3458
        %3782 = vst.msk [vmem:[#allocation2 + $0x1f0] sm:$0xff] %vm3719, %v3460
        %3783 = vst.msk [vmem:[#allocation2 + $0x1f8] sm:$0xff] %vm3719, %v3462
        %3784 = vst.msk [vmem:[#allocation2 + $0x200] sm:$0xff] %vm3719, %v3464
        %3785 = vst.msk [vmem:[#allocation2 + $0x208] sm:$0xff] %vm3719, %v3466
        %3786 = vst.msk [vmem:[#allocation2 + $0x210] sm:$0xff] %vm3719, %v3468
        %3787 = vst.msk [vmem:[#allocation2 + $0x218] sm:$0xff] %vm3719, %v3470
        %3788 = vst.msk [vmem:[#allocation2 + $0x220] sm:$0xff] %vm3719, %v3472
        %3789 = vst.msk [vmem:[#allocation2 + $0x228] sm:$0xff] %vm3719, %v3474
        %3790 = vst.msk [vmem:[#allocation2 + $0x230] sm:$0xff] %vm3719, %v3476
        %3791 = vst.msk [vmem:[#allocation2 + $0x238] sm:$0xff] %vm3719, %v3478
        %3792 = vst.msk [vmem:[#allocation2 + $0x240] sm:$0xff] %vm3719, %v3480
        %3793 = vst.msk [vmem:[#allocation2 + $0x248] sm:$0xff] %vm3719, %v3482
        %3794 = vst.msk [vmem:[#allocation2 + $0x250] sm:$0xff] %vm3719, %v3484
        %3795 = vst.msk [vmem:[#allocation2 + $0x258] sm:$0xff] %vm3719, %v3486
        %3796 = vst.msk [vmem:[#allocation2 + $0x260] sm:$0xff] %vm3719, %v3488
        %3797 = vst.msk [vmem:[#allocation2 + $0x268] sm:$0xff] %vm3719, %v3490
        %3798 = vst.msk [vmem:[#allocation2 + $0x270] sm:$0xff] %vm3719, %v3492
        %3799 = vst.msk [vmem:[#allocation2 + $0x278] sm:$0xff] %vm3719, %v3494
        %3800 = vst.msk [vmem:[#allocation2 + $0x280] sm:$0xff] %vm3719, %v3496
        %3801 = vst.msk [vmem:[#allocation2 + $0x288] sm:$0xff] %vm3719, %v3498
        %3802 = vst.msk [vmem:[#allocation2 + $0x290] sm:$0xff] %vm3719, %v3500
        %3803 = vst.msk [vmem:[#allocation2 + $0x298] sm:$0xff] %vm3719, %v3502
        %3804 = vst.msk [vmem:[#allocation2 + $0x2a0] sm:$0xff] %vm3719, %v3504
        %3805 = vst.msk [vmem:[#allocation2 + $0x2a8] sm:$0xff] %vm3719, %v3506
        %3806 = vst.msk [vmem:[#allocation2 + $0x2b0] sm:$0xff] %vm3719, %v3508
        %3807 = vst.msk [vmem:[#allocation2 + $0x2b8] sm:$0xff] %vm3719, %v3510
        %3808 = vst.msk [vmem:[#allocation2 + $0x2c0] sm:$0xff] %vm3719, %v3512
        %3809 = vst.msk [vmem:[#allocation2 + $0x2c8] sm:$0xff] %vm3719, %v3514
        %3810 = vst.msk [vmem:[#allocation2 + $0x2d0] sm:$0xff] %vm3719, %v3516
        %3811 = vst.msk [vmem:[#allocation2 + $0x2d8] sm:$0xff] %vm3719, %v3518
        %3812 = vst.msk [vmem:[#allocation2 + $0x2e0] sm:$0xff] %vm3719, %v3520
        %3813 = vst.msk [vmem:[#allocation2 + $0x2e8] sm:$0xff] %vm3719, %v3522
        %3814 = vst.msk [vmem:[#allocation2 + $0x2f0] sm:$0xff] %vm3719, %v3524
        %3815 = vst.msk [vmem:[#allocation2 + $0x2f8] sm:$0xff] %vm3719, %v3526
        %3816 = vst.msk [vmem:[#allocation2 + $0x300] sm:$0xff] %vm3719, %v3528
        %3817 = vst.msk [vmem:[#allocation2 + $0x308] sm:$0xff] %vm3719, %v3530
        %3818 = vst.msk [vmem:[#allocation2 + $0x310] sm:$0xff] %vm3719, %v3532
        %3819 = vst.msk [vmem:[#allocation2 + $0x318] sm:$0xff] %vm3719, %v3534
        %3820 = vst.msk [vmem:[#allocation2 + $0x320] sm:$0xff] %vm3719, %v3536
        %3821 = vst.msk [vmem:[#allocation2 + $0x328] sm:$0xff] %vm3719, %v3538
        %3822 = vst.msk [vmem:[#allocation2 + $0x330] sm:$0xff] %vm3719, %v3540
        %3823 = vst.msk [vmem:[#allocation2 + $0x338] sm:$0xff] %vm3719, %v3542
        %3824 = vst.msk [vmem:[#allocation2 + $0x340] sm:$0xff] %vm3719, %v3544
        %3825 = vst.msk [vmem:[#allocation2 + $0x348] sm:$0xff] %vm3719, %v3546
        %3826 = vst.msk [vmem:[#allocation2 + $0x350] sm:$0xff] %vm3719, %v3548
        %3827 = vst.msk [vmem:[#allocation2 + $0x358] sm:$0xff] %vm3719, %v3550
        %3828 = vst.msk [vmem:[#allocation2 + $0x360] sm:$0xff] %vm3719, %v3552
        %3829 = vst.msk [vmem:[#allocation2 + $0x368] sm:$0xff] %vm3719, %v3554
        %3830 = vst.msk [vmem:[#allocation2 + $0x370] sm:$0xff] %vm3719, %v3556
        %3831 = vst.msk [vmem:[#allocation2 + $0x378] sm:$0xff] %vm3719, %v3558
        %3832 = vst.msk [vmem:[#allocation2 + $0x380] sm:$0xff] %vm3719, %v3560
        %3833 = vst.msk [vmem:[#allocation2 + $0x388] sm:$0xff] %vm3719, %v3562
        %3834 = vst.msk [vmem:[#allocation2 + $0x390] sm:$0xff] %vm3719, %v3564
        %3835 = vst.msk [vmem:[#allocation2 + $0x398] sm:$0xff] %vm3719, %v3566
        %3836 = vst.msk [vmem:[#allocation2 + $0x3a0] sm:$0xff] %vm3719, %v3568
        %3837 = vst.msk [vmem:[#allocation2 + $0x3a8] sm:$0xff] %vm3719, %v3570
        %3838 = vst.msk [vmem:[#allocation2 + $0x3b0] sm:$0xff] %vm3719, %v3572
        %3839 = vst.msk [vmem:[#allocation2 + $0x3b8] sm:$0xff] %vm3719, %v3574
        %3840 = vst.msk [vmem:[#allocation2 + $0x3c0] sm:$0xff] %vm3719, %v3576
        %3841 = vst.msk [vmem:[#allocation2 + $0x3c8] sm:$0xff] %vm3719, %v3578
        %3842 = vst.msk [vmem:[#allocation2 + $0x3d0] sm:$0xff] %vm3719, %v3580
        %3843 = vst.msk [vmem:[#allocation2 + $0x3d8] sm:$0xff] %vm3719, %v3582
        %3844 = vst.msk [vmem:[#allocation2 + $0x3e0] sm:$0xff] %vm3719, %v3584
        %3845 = vst.msk [vmem:[#allocation2 + $0x3e8] sm:$0xff] %vm3719, %v3586
        %3846 = vst.msk [vmem:[#allocation2 + $0x3f0] sm:$0xff] %vm3719, %v3588
        %3847 = vst.msk [vmem:[#allocation2 + $0x3f8] sm:$0xff] %vm3719, %v3590
        %3852 = vrot.lane.b32.xlu0 %v233, 24
        %v3853 = vpop.permute.xlu0 %3852
        %3854 = vrot.lane.b32.xlu0 %v234, 24
        %v3855 = vpop.permute.xlu0 %3854
        %3856 = vrot.lane.b32.xlu0 %v235, 24
        %v3857 = vpop.permute.xlu0 %3856
        %3858 = vrot.lane.b32.xlu0 %v236, 24
        %v3859 = vpop.permute.xlu0 %3858
        %3860 = vrot.lane.b32.xlu0 %v238, 24
        %v3861 = vpop.permute.xlu0 %3860
        %3862 = vrot.lane.b32.xlu0 %v239, 24
        %v3863 = vpop.permute.xlu0 %3862
        %3864 = vrot.lane.b32.xlu0 %v240, 24
        %v3865 = vpop.permute.xlu0 %3864
        %3866 = vrot.lane.b32.xlu0 %v241, 24
        %v3867 = vpop.permute.xlu0 %3866
        %3868 = vrot.lane.b32.xlu0 %v243, 24
        %v3869 = vpop.permute.xlu0 %3868
        %3870 = vrot.lane.b32.xlu0 %v244, 24
        %v3871 = vpop.permute.xlu0 %3870
        %3872 = vrot.lane.b32.xlu0 %v245, 24
        %v3873 = vpop.permute.xlu0 %3872
        %3874 = vrot.lane.b32.xlu0 %v246, 24
        %v3875 = vpop.permute.xlu0 %3874
        %3876 = vrot.lane.b32.xlu0 %v248, 24
        %v3877 = vpop.permute.xlu0 %3876
        %3878 = vrot.lane.b32.xlu0 %v249, 24
        %v3879 = vpop.permute.xlu0 %3878
        %3880 = vrot.lane.b32.xlu0 %v250, 24
        %v3881 = vpop.permute.xlu0 %3880
        %3882 = vrot.lane.b32.xlu0 %v251, 24
        %v3883 = vpop.permute.xlu0 %3882
        %3884 = vrot.lane.b32.xlu0 %v253, 24
        %v3885 = vpop.permute.xlu0 %3884
        %3886 = vrot.lane.b32.xlu0 %v254, 24
        %v3887 = vpop.permute.xlu0 %3886
        %3888 = vrot.lane.b32.xlu0 %v255, 24
        %v3889 = vpop.permute.xlu0 %3888
        %3890 = vrot.lane.b32.xlu0 %v256, 24
        %v3891 = vpop.permute.xlu0 %3890
        %3892 = vrot.lane.b32.xlu0 %v258, 24
        %v3893 = vpop.permute.xlu0 %3892
        %3894 = vrot.lane.b32.xlu0 %v259, 24
        %v3895 = vpop.permute.xlu0 %3894
        %3896 = vrot.lane.b32.xlu0 %v260, 24
        %v3897 = vpop.permute.xlu0 %3896
        %3898 = vrot.lane.b32.xlu0 %v261, 24
        %v3899 = vpop.permute.xlu0 %3898
        %3900 = vrot.lane.b32.xlu0 %v263, 24
        %v3901 = vpop.permute.xlu0 %3900
        %3902 = vrot.lane.b32.xlu0 %v264, 24
        %v3903 = vpop.permute.xlu0 %3902
        %3904 = vrot.lane.b32.xlu0 %v265, 24
        %v3905 = vpop.permute.xlu0 %3904
        %3906 = vrot.lane.b32.xlu0 %v266, 24
        %v3907 = vpop.permute.xlu0 %3906
        %3908 = vrot.lane.b32.xlu0 %v268, 24
        %v3909 = vpop.permute.xlu0 %3908
        %3910 = vrot.lane.b32.xlu0 %v269, 24
        %v3911 = vpop.permute.xlu0 %3910
        %3912 = vrot.lane.b32.xlu0 %v270, 24
        %v3913 = vpop.permute.xlu0 %3912
        %3914 = vrot.lane.b32.xlu0 %v271, 24
        %v3915 = vpop.permute.xlu0 %3914
        %3916 = vrot.lane.b32.xlu0 %v273, 24
        %v3917 = vpop.permute.xlu0 %3916
        %3918 = vrot.lane.b32.xlu0 %v274, 24
        %v3919 = vpop.permute.xlu0 %3918
        %3920 = vrot.lane.b32.xlu0 %v275, 24
        %v3921 = vpop.permute.xlu0 %3920
        %3922 = vrot.lane.b32.xlu0 %v276, 24
        %v3923 = vpop.permute.xlu0 %3922
        %3924 = vrot.lane.b32.xlu0 %v278, 24
        %v3925 = vpop.permute.xlu0 %3924
        %3926 = vrot.lane.b32.xlu0 %v279, 24
        %v3927 = vpop.permute.xlu0 %3926
        %3928 = vrot.lane.b32.xlu0 %v280, 24
        %v3929 = vpop.permute.xlu0 %3928
        %3930 = vrot.lane.b32.xlu0 %v281, 24
        %v3931 = vpop.permute.xlu0 %3930
        %3932 = vrot.lane.b32.xlu0 %v283, 24
        %v3933 = vpop.permute.xlu0 %3932
        %3934 = vrot.lane.b32.xlu0 %v284, 24
        %v3935 = vpop.permute.xlu0 %3934
        %3936 = vrot.lane.b32.xlu0 %v285, 24
        %v3937 = vpop.permute.xlu0 %3936
        %3938 = vrot.lane.b32.xlu0 %v286, 24
        %v3939 = vpop.permute.xlu0 %3938
        %3940 = vrot.lane.b32.xlu0 %v288, 24
        %v3941 = vpop.permute.xlu0 %3940
        %3942 = vrot.lane.b32.xlu0 %v289, 24
        %v3943 = vpop.permute.xlu0 %3942
        %3944 = vrot.lane.b32.xlu0 %v290, 24
        %v3945 = vpop.permute.xlu0 %3944
        %3946 = vrot.lane.b32.xlu0 %v291, 24
        %v3947 = vpop.permute.xlu0 %3946
        %3948 = vrot.lane.b32.xlu0 %v293, 24
        %v3949 = vpop.permute.xlu0 %3948
        %3950 = vrot.lane.b32.xlu0 %v294, 24
        %v3951 = vpop.permute.xlu0 %3950
        %3952 = vrot.lane.b32.xlu0 %v295, 24
        %v3953 = vpop.permute.xlu0 %3952
        %3954 = vrot.lane.b32.xlu0 %v296, 24
        %v3955 = vpop.permute.xlu0 %3954
        %3956 = vrot.lane.b32.xlu0 %v298, 24
        %v3957 = vpop.permute.xlu0 %3956
        %3958 = vrot.lane.b32.xlu0 %v299, 24
        %v3959 = vpop.permute.xlu0 %3958
        %3960 = vrot.lane.b32.xlu0 %v300, 24
        %v3961 = vpop.permute.xlu0 %3960
        %3962 = vrot.lane.b32.xlu0 %v301, 24
        %v3963 = vpop.permute.xlu0 %3962
        %3964 = vrot.lane.b32.xlu0 %v303, 24
        %v3965 = vpop.permute.xlu0 %3964
        %3966 = vrot.lane.b32.xlu0 %v304, 24
        %v3967 = vpop.permute.xlu0 %3966
        %3968 = vrot.lane.b32.xlu0 %v305, 24
        %v3969 = vpop.permute.xlu0 %3968
        %3970 = vrot.lane.b32.xlu0 %v306, 24
        %v3971 = vpop.permute.xlu0 %3970
        %3972 = vrot.lane.b32.xlu0 %v308, 24
        %v3973 = vpop.permute.xlu0 %3972
        %3974 = vrot.lane.b32.xlu0 %v309, 24
        %v3975 = vpop.permute.xlu0 %3974
        %3976 = vrot.lane.b32.xlu0 %v310, 24
        %v3977 = vpop.permute.xlu0 %3976
        %3978 = vrot.lane.b32.xlu0 %v311, 24
        %v3979 = vpop.permute.xlu0 %3978
        %3980 = vrot.lane.b32.xlu0 %v313, 24
        %v3981 = vpop.permute.xlu0 %3980
        %3982 = vrot.lane.b32.xlu0 %v314, 24
        %v3983 = vpop.permute.xlu0 %3982
        %3984 = vrot.lane.b32.xlu0 %v315, 24
        %v3985 = vpop.permute.xlu0 %3984
        %3986 = vrot.lane.b32.xlu0 %v316, 24
        %v3987 = vpop.permute.xlu0 %3986
        %3988 = vrot.lane.b32.xlu0 %v318, 24
        %v3989 = vpop.permute.xlu0 %3988
        %3990 = vrot.lane.b32.xlu0 %v319, 24
        %v3991 = vpop.permute.xlu0 %3990
        %3992 = vrot.lane.b32.xlu0 %v320, 24
        %v3993 = vpop.permute.xlu0 %3992
        %3994 = vrot.lane.b32.xlu0 %v321, 24
        %v3995 = vpop.permute.xlu0 %3994
        %3996 = vrot.lane.b32.xlu0 %v323, 24
        %v3997 = vpop.permute.xlu0 %3996
        %3998 = vrot.lane.b32.xlu0 %v324, 24
        %v3999 = vpop.permute.xlu0 %3998
        %4000 = vrot.lane.b32.xlu0 %v325, 24
        %v4001 = vpop.permute.xlu0 %4000
        %4002 = vrot.lane.b32.xlu0 %v326, 24
        %v4003 = vpop.permute.xlu0 %4002
        %4004 = vrot.lane.b32.xlu0 %v328, 24
        %v4005 = vpop.permute.xlu0 %4004
        %4006 = vrot.lane.b32.xlu0 %v329, 24
        %v4007 = vpop.permute.xlu0 %4006
        %4008 = vrot.lane.b32.xlu0 %v330, 24
        %v4009 = vpop.permute.xlu0 %4008
        %4010 = vrot.lane.b32.xlu0 %v331, 24
        %v4011 = vpop.permute.xlu0 %4010
        %4012 = vrot.lane.b32.xlu0 %v333, 24
        %v4013 = vpop.permute.xlu0 %4012
        %4014 = vrot.lane.b32.xlu0 %v334, 24
        %v4015 = vpop.permute.xlu0 %4014
        %4016 = vrot.lane.b32.xlu0 %v335, 24
        %v4017 = vpop.permute.xlu0 %4016
        %4018 = vrot.lane.b32.xlu0 %v336, 24
        %v4019 = vpop.permute.xlu0 %4018
        %4020 = vrot.lane.b32.xlu0 %v338, 24
        %v4021 = vpop.permute.xlu0 %4020
        %4022 = vrot.lane.b32.xlu0 %v339, 24
        %v4023 = vpop.permute.xlu0 %4022
        %4024 = vrot.lane.b32.xlu0 %v340, 24
        %v4025 = vpop.permute.xlu0 %4024
        %4026 = vrot.lane.b32.xlu0 %v341, 24
        %v4027 = vpop.permute.xlu0 %4026
        %4028 = vrot.lane.b32.xlu0 %v343, 24
        %v4029 = vpop.permute.xlu0 %4028
        %4030 = vrot.lane.b32.xlu0 %v344, 24
        %v4031 = vpop.permute.xlu0 %4030
        %4032 = vrot.lane.b32.xlu0 %v345, 24
        %v4033 = vpop.permute.xlu0 %4032
        %4034 = vrot.lane.b32.xlu0 %v346, 24
        %v4035 = vpop.permute.xlu0 %4034
        %4036 = vrot.lane.b32.xlu0 %v348, 24
        %v4037 = vpop.permute.xlu0 %4036
        %4038 = vrot.lane.b32.xlu0 %v349, 24
        %v4039 = vpop.permute.xlu0 %4038
        %4040 = vrot.lane.b32.xlu0 %v350, 24
        %v4041 = vpop.permute.xlu0 %4040
        %4042 = vrot.lane.b32.xlu0 %v351, 24
        %v4043 = vpop.permute.xlu0 %4042
        %4044 = vrot.lane.b32.xlu0 %v353, 24
        %v4045 = vpop.permute.xlu0 %4044
        %4046 = vrot.lane.b32.xlu0 %v354, 24
        %v4047 = vpop.permute.xlu0 %4046
        %4048 = vrot.lane.b32.xlu0 %v355, 24
        %v4049 = vpop.permute.xlu0 %4048
        %4050 = vrot.lane.b32.xlu0 %v356, 24
        %v4051 = vpop.permute.xlu0 %4050
        %4052 = vrot.lane.b32.xlu0 %v358, 24
        %v4053 = vpop.permute.xlu0 %4052
        %4054 = vrot.lane.b32.xlu0 %v359, 24
        %v4055 = vpop.permute.xlu0 %4054
        %4056 = vrot.lane.b32.xlu0 %v360, 24
        %v4057 = vpop.permute.xlu0 %4056
        %4058 = vrot.lane.b32.xlu0 %v361, 24
        %v4059 = vpop.permute.xlu0 %4058
        %4060 = vrot.lane.b32.xlu0 %v363, 24
        %v4061 = vpop.permute.xlu0 %4060
        %4062 = vrot.lane.b32.xlu0 %v364, 24
        %v4063 = vpop.permute.xlu0 %4062
        %4064 = vrot.lane.b32.xlu0 %v365, 24
        %v4065 = vpop.permute.xlu0 %4064
        %4066 = vrot.lane.b32.xlu0 %v366, 24
        %v4067 = vpop.permute.xlu0 %4066
        %4068 = vrot.lane.b32.xlu0 %v368, 24
        %v4069 = vpop.permute.xlu0 %4068
        %4070 = vrot.lane.b32.xlu0 %v369, 24
        %v4071 = vpop.permute.xlu0 %4070
        %4072 = vrot.lane.b32.xlu0 %v370, 24
        %v4073 = vpop.permute.xlu0 %4072
        %4074 = vrot.lane.b32.xlu0 %v371, 24
        %v4075 = vpop.permute.xlu0 %4074
        %4076 = vrot.lane.b32.xlu0 %v373, 24
        %v4077 = vpop.permute.xlu0 %4076
        %4078 = vrot.lane.b32.xlu0 %v374, 24
        %v4079 = vpop.permute.xlu0 %4078
        %4080 = vrot.lane.b32.xlu0 %v375, 24
        %v4081 = vpop.permute.xlu0 %4080
        %4082 = vrot.lane.b32.xlu0 %v376, 24
        %v4083 = vpop.permute.xlu0 %4082
        %4084 = vrot.lane.b32.xlu0 %v378, 24
        %v4085 = vpop.permute.xlu0 %4084
        %4086 = vrot.lane.b32.xlu0 %v379, 24
        %v4087 = vpop.permute.xlu0 %4086
        %4088 = vrot.lane.b32.xlu0 %v380, 24
        %v4089 = vpop.permute.xlu0 %4088
        %4090 = vrot.lane.b32.xlu0 %v381, 24
        %v4091 = vpop.permute.xlu0 %4090
        %4092 = vrot.lane.b32.xlu0 %v383, 24
        %v4093 = vpop.permute.xlu0 %4092
        %4094 = vrot.lane.b32.xlu0 %v384, 24
        %v4095 = vpop.permute.xlu0 %4094
        %4096 = vrot.lane.b32.xlu0 %v385, 24
        %v4097 = vpop.permute.xlu0 %4096
        %4098 = vrot.lane.b32.xlu0 %v386, 24
        %v4099 = vpop.permute.xlu0 %4098
        %4100 = vrot.lane.b32.xlu0 %v388, 24
        %v4101 = vpop.permute.xlu0 %4100
        %4102 = vrot.lane.b32.xlu0 %v389, 24
        %v4103 = vpop.permute.xlu0 %4102
        %4104 = vrot.lane.b32.xlu0 %v390, 24
        %v4105 = vpop.permute.xlu0 %4104
        %4106 = vrot.lane.b32.xlu0 %v391, 24
        %v4107 = vpop.permute.xlu0 %4106
        %vm4236 = vcmask 228544
        %4237 = vst.msk [vmem:[#allocation2] sm:$0xff] %vm4236, %v3853
        %4238 = vst.msk [vmem:[#allocation2 + $0x8] sm:$0xff] %vm4236, %v3855
        %4239 = vst.msk [vmem:[#allocation2 + $0x10] sm:$0xff] %vm4236, %v3857
        %4240 = vst.msk [vmem:[#allocation2 + $0x18] sm:$0xff] %vm4236, %v3859
        %4241 = vst.msk [vmem:[#allocation2 + $0x20] sm:$0xff] %vm4236, %v3861
        %4242 = vst.msk [vmem:[#allocation2 + $0x28] sm:$0xff] %vm4236, %v3863
        %4243 = vst.msk [vmem:[#allocation2 + $0x30] sm:$0xff] %vm4236, %v3865
        %4244 = vst.msk [vmem:[#allocation2 + $0x38] sm:$0xff] %vm4236, %v3867
        %4245 = vst.msk [vmem:[#allocation2 + $0x40] sm:$0xff] %vm4236, %v3869
        %4246 = vst.msk [vmem:[#allocation2 + $0x48] sm:$0xff] %vm4236, %v3871
        %4247 = vst.msk [vmem:[#allocation2 + $0x50] sm:$0xff] %vm4236, %v3873
        %4248 = vst.msk [vmem:[#allocation2 + $0x58] sm:$0xff] %vm4236, %v3875
        %4249 = vst.msk [vmem:[#allocation2 + $0x60] sm:$0xff] %vm4236, %v3877
        %4250 = vst.msk [vmem:[#allocation2 + $0x68] sm:$0xff] %vm4236, %v3879
        %4251 = vst.msk [vmem:[#allocation2 + $0x70] sm:$0xff] %vm4236, %v3881
        %4252 = vst.msk [vmem:[#allocation2 + $0x78] sm:$0xff] %vm4236, %v3883
        %4253 = vst.msk [vmem:[#allocation2 + $0x80] sm:$0xff] %vm4236, %v3885
        %4254 = vst.msk [vmem:[#allocation2 + $0x88] sm:$0xff] %vm4236, %v3887
        %4255 = vst.msk [vmem:[#allocation2 + $0x90] sm:$0xff] %vm4236, %v3889
        %4256 = vst.msk [vmem:[#allocation2 + $0x98] sm:$0xff] %vm4236, %v3891
        %4257 = vst.msk [vmem:[#allocation2 + $0xa0] sm:$0xff] %vm4236, %v3893
        %4258 = vst.msk [vmem:[#allocation2 + $0xa8] sm:$0xff] %vm4236, %v3895
        %4259 = vst.msk [vmem:[#allocation2 + $0xb0] sm:$0xff] %vm4236, %v3897
        %4260 = vst.msk [vmem:[#allocation2 + $0xb8] sm:$0xff] %vm4236, %v3899
        %4261 = vst.msk [vmem:[#allocation2 + $0xc0] sm:$0xff] %vm4236, %v3901
        %4262 = vst.msk [vmem:[#allocation2 + $0xc8] sm:$0xff] %vm4236, %v3903
        %4263 = vst.msk [vmem:[#allocation2 + $0xd0] sm:$0xff] %vm4236, %v3905
        %4264 = vst.msk [vmem:[#allocation2 + $0xd8] sm:$0xff] %vm4236, %v3907
        %4265 = vst.msk [vmem:[#allocation2 + $0xe0] sm:$0xff] %vm4236, %v3909
        %4266 = vst.msk [vmem:[#allocation2 + $0xe8] sm:$0xff] %vm4236, %v3911
        %4267 = vst.msk [vmem:[#allocation2 + $0xf0] sm:$0xff] %vm4236, %v3913
        %4268 = vst.msk [vmem:[#allocation2 + $0xf8] sm:$0xff] %vm4236, %v3915
        %4269 = vst.msk [vmem:[#allocation2 + $0x100] sm:$0xff] %vm4236, %v3917
        %4270 = vst.msk [vmem:[#allocation2 + $0x108] sm:$0xff] %vm4236, %v3919
        %4271 = vst.msk [vmem:[#allocation2 + $0x110] sm:$0xff] %vm4236, %v3921
        %4272 = vst.msk [vmem:[#allocation2 + $0x118] sm:$0xff] %vm4236, %v3923
        %4273 = vst.msk [vmem:[#allocation2 + $0x120] sm:$0xff] %vm4236, %v3925
        %4274 = vst.msk [vmem:[#allocation2 + $0x128] sm:$0xff] %vm4236, %v3927
        %4275 = vst.msk [vmem:[#allocation2 + $0x130] sm:$0xff] %vm4236, %v3929
        %4276 = vst.msk [vmem:[#allocation2 + $0x138] sm:$0xff] %vm4236, %v3931
        %4277 = vst.msk [vmem:[#allocation2 + $0x140] sm:$0xff] %vm4236, %v3933
        %4278 = vst.msk [vmem:[#allocation2 + $0x148] sm:$0xff] %vm4236, %v3935
        %4279 = vst.msk [vmem:[#allocation2 + $0x150] sm:$0xff] %vm4236, %v3937
        %4280 = vst.msk [vmem:[#allocation2 + $0x158] sm:$0xff] %vm4236, %v3939
        %4281 = vst.msk [vmem:[#allocation2 + $0x160] sm:$0xff] %vm4236, %v3941
        %4282 = vst.msk [vmem:[#allocation2 + $0x168] sm:$0xff] %vm4236, %v3943
        %4283 = vst.msk [vmem:[#allocation2 + $0x170] sm:$0xff] %vm4236, %v3945
        %4284 = vst.msk [vmem:[#allocation2 + $0x178] sm:$0xff] %vm4236, %v3947
        %4285 = vst.msk [vmem:[#allocation2 + $0x180] sm:$0xff] %vm4236, %v3949
        %4286 = vst.msk [vmem:[#allocation2 + $0x188] sm:$0xff] %vm4236, %v3951
        %4287 = vst.msk [vmem:[#allocation2 + $0x190] sm:$0xff] %vm4236, %v3953
        %4288 = vst.msk [vmem:[#allocation2 + $0x198] sm:$0xff] %vm4236, %v3955
        %4289 = vst.msk [vmem:[#allocation2 + $0x1a0] sm:$0xff] %vm4236, %v3957
        %4290 = vst.msk [vmem:[#allocation2 + $0x1a8] sm:$0xff] %vm4236, %v3959
        %4291 = vst.msk [vmem:[#allocation2 + $0x1b0] sm:$0xff] %vm4236, %v3961
        %4292 = vst.msk [vmem:[#allocation2 + $0x1b8] sm:$0xff] %vm4236, %v3963
        %4293 = vst.msk [vmem:[#allocation2 + $0x1c0] sm:$0xff] %vm4236, %v3965
        %4294 = vst.msk [vmem:[#allocation2 + $0x1c8] sm:$0xff] %vm4236, %v3967
        %4295 = vst.msk [vmem:[#allocation2 + $0x1d0] sm:$0xff] %vm4236, %v3969
        %4296 = vst.msk [vmem:[#allocation2 + $0x1d8] sm:$0xff] %vm4236, %v3971
        %4297 = vst.msk [vmem:[#allocation2 + $0x1e0] sm:$0xff] %vm4236, %v3973
        %4298 = vst.msk [vmem:[#allocation2 + $0x1e8] sm:$0xff] %vm4236, %v3975
        %4299 = vst.msk [vmem:[#allocation2 + $0x1f0] sm:$0xff] %vm4236, %v3977
        %4300 = vst.msk [vmem:[#allocation2 + $0x1f8] sm:$0xff] %vm4236, %v3979
        %4301 = vst.msk [vmem:[#allocation2 + $0x200] sm:$0xff] %vm4236, %v3981
        %4302 = vst.msk [vmem:[#allocation2 + $0x208] sm:$0xff] %vm4236, %v3983
        %4303 = vst.msk [vmem:[#allocation2 + $0x210] sm:$0xff] %vm4236, %v3985
        %4304 = vst.msk [vmem:[#allocation2 + $0x218] sm:$0xff] %vm4236, %v3987
        %4305 = vst.msk [vmem:[#allocation2 + $0x220] sm:$0xff] %vm4236, %v3989
        %4306 = vst.msk [vmem:[#allocation2 + $0x228] sm:$0xff] %vm4236, %v3991
        %4307 = vst.msk [vmem:[#allocation2 + $0x230] sm:$0xff] %vm4236, %v3993
        %4308 = vst.msk [vmem:[#allocation2 + $0x238] sm:$0xff] %vm4236, %v3995
        %4309 = vst.msk [vmem:[#allocation2 + $0x240] sm:$0xff] %vm4236, %v3997
        %4310 = vst.msk [vmem:[#allocation2 + $0x248] sm:$0xff] %vm4236, %v3999
        %4311 = vst.msk [vmem:[#allocation2 + $0x250] sm:$0xff] %vm4236, %v4001
        %4312 = vst.msk [vmem:[#allocation2 + $0x258] sm:$0xff] %vm4236, %v4003
        %4313 = vst.msk [vmem:[#allocation2 + $0x260] sm:$0xff] %vm4236, %v4005
        %4314 = vst.msk [vmem:[#allocation2 + $0x268] sm:$0xff] %vm4236, %v4007
        %4315 = vst.msk [vmem:[#allocation2 + $0x270] sm:$0xff] %vm4236, %v4009
        %4316 = vst.msk [vmem:[#allocation2 + $0x278] sm:$0xff] %vm4236, %v4011
        %4317 = vst.msk [vmem:[#allocation2 + $0x280] sm:$0xff] %vm4236, %v4013
        %4318 = vst.msk [vmem:[#allocation2 + $0x288] sm:$0xff] %vm4236, %v4015
        %4319 = vst.msk [vmem:[#allocation2 + $0x290] sm:$0xff] %vm4236, %v4017
        %4320 = vst.msk [vmem:[#allocation2 + $0x298] sm:$0xff] %vm4236, %v4019
        %4321 = vst.msk [vmem:[#allocation2 + $0x2a0] sm:$0xff] %vm4236, %v4021
        %4322 = vst.msk [vmem:[#allocation2 + $0x2a8] sm:$0xff] %vm4236, %v4023
        %4323 = vst.msk [vmem:[#allocation2 + $0x2b0] sm:$0xff] %vm4236, %v4025
        %4324 = vst.msk [vmem:[#allocation2 + $0x2b8] sm:$0xff] %vm4236, %v4027
        %4325 = vst.msk [vmem:[#allocation2 + $0x2c0] sm:$0xff] %vm4236, %v4029
        %4326 = vst.msk [vmem:[#allocation2 + $0x2c8] sm:$0xff] %vm4236, %v4031
        %4327 = vst.msk [vmem:[#allocation2 + $0x2d0] sm:$0xff] %vm4236, %v4033
        %4328 = vst.msk [vmem:[#allocation2 + $0x2d8] sm:$0xff] %vm4236, %v4035
        %4329 = vst.msk [vmem:[#allocation2 + $0x2e0] sm:$0xff] %vm4236, %v4037
        %4330 = vst.msk [vmem:[#allocation2 + $0x2e8] sm:$0xff] %vm4236, %v4039
        %4331 = vst.msk [vmem:[#allocation2 + $0x2f0] sm:$0xff] %vm4236, %v4041
        %4332 = vst.msk [vmem:[#allocation2 + $0x2f8] sm:$0xff] %vm4236, %v4043
        %4333 = vst.msk [vmem:[#allocation2 + $0x300] sm:$0xff] %vm4236, %v4045
        %4334 = vst.msk [vmem:[#allocation2 + $0x308] sm:$0xff] %vm4236, %v4047
        %4335 = vst.msk [vmem:[#allocation2 + $0x310] sm:$0xff] %vm4236, %v4049
        %4336 = vst.msk [vmem:[#allocation2 + $0x318] sm:$0xff] %vm4236, %v4051
        %4337 = vst.msk [vmem:[#allocation2 + $0x320] sm:$0xff] %vm4236, %v4053
        %4338 = vst.msk [vmem:[#allocation2 + $0x328] sm:$0xff] %vm4236, %v4055
        %4339 = vst.msk [vmem:[#allocation2 + $0x330] sm:$0xff] %vm4236, %v4057
        %4340 = vst.msk [vmem:[#allocation2 + $0x338] sm:$0xff] %vm4236, %v4059
        %4341 = vst.msk [vmem:[#allocation2 + $0x340] sm:$0xff] %vm4236, %v4061
        %4342 = vst.msk [vmem:[#allocation2 + $0x348] sm:$0xff] %vm4236, %v4063
        %4343 = vst.msk [vmem:[#allocation2 + $0x350] sm:$0xff] %vm4236, %v4065
        %4344 = vst.msk [vmem:[#allocation2 + $0x358] sm:$0xff] %vm4236, %v4067
        %4345 = vst.msk [vmem:[#allocation2 + $0x360] sm:$0xff] %vm4236, %v4069
        %4346 = vst.msk [vmem:[#allocation2 + $0x368] sm:$0xff] %vm4236, %v4071
        %4347 = vst.msk [vmem:[#allocation2 + $0x370] sm:$0xff] %vm4236, %v4073
        %4348 = vst.msk [vmem:[#allocation2 + $0x378] sm:$0xff] %vm4236, %v4075
        %4349 = vst.msk [vmem:[#allocation2 + $0x380] sm:$0xff] %vm4236, %v4077
        %4350 = vst.msk [vmem:[#allocation2 + $0x388] sm:$0xff] %vm4236, %v4079
        %4351 = vst.msk [vmem:[#allocation2 + $0x390] sm:$0xff] %vm4236, %v4081
        %4352 = vst.msk [vmem:[#allocation2 + $0x398] sm:$0xff] %vm4236, %v4083
        %4353 = vst.msk [vmem:[#allocation2 + $0x3a0] sm:$0xff] %vm4236, %v4085
        %4354 = vst.msk [vmem:[#allocation2 + $0x3a8] sm:$0xff] %vm4236, %v4087
        %4355 = vst.msk [vmem:[#allocation2 + $0x3b0] sm:$0xff] %vm4236, %v4089
        %4356 = vst.msk [vmem:[#allocation2 + $0x3b8] sm:$0xff] %vm4236, %v4091
        %4357 = vst.msk [vmem:[#allocation2 + $0x3c0] sm:$0xff] %vm4236, %v4093
        %4358 = vst.msk [vmem:[#allocation2 + $0x3c8] sm:$0xff] %vm4236, %v4095
        %4359 = vst.msk [vmem:[#allocation2 + $0x3d0] sm:$0xff] %vm4236, %v4097
        %4360 = vst.msk [vmem:[#allocation2 + $0x3d8] sm:$0xff] %vm4236, %v4099
        %4361 = vst.msk [vmem:[#allocation2 + $0x3e0] sm:$0xff] %vm4236, %v4101
        %4362 = vst.msk [vmem:[#allocation2 + $0x3e8] sm:$0xff] %vm4236, %v4103
        %4363 = vst.msk [vmem:[#allocation2 + $0x3f0] sm:$0xff] %vm4236, %v4105
        %4364 = vst.msk [vmem:[#allocation2 + $0x3f8] sm:$0xff] %vm4236, %v4107
        %v4366 = vrot.slane %v388, 1
        %v4367 = vrot.slane %v389, 1
        %v4368 = vsel %vm682, %v4366, %v4367
        %v4369 = vrot.slane %v390, 1
        %v4370 = vsel %vm682, %v4367, %v4369
        %v4371 = vrot.slane %v391, 1
        %v4372 = vsel %vm682, %v4369, %v4371
        %v4373 = vrot.slane %v392, 1
        %v4374 = vsel %vm682, %v4371, %v4373
        %4375 = vrot.lane.b32.xlu0 %v703, 28
        %v4376 = vpop.permute.xlu0 %4375
        %4377 = vrot.lane.b32.xlu0 %v705, 28
        %v4378 = vpop.permute.xlu0 %4377
        %4379 = vrot.lane.b32.xlu0 %v707, 28
        %v4380 = vpop.permute.xlu0 %4379
        %4381 = vrot.lane.b32.xlu0 %v709, 28
        %v4382 = vpop.permute.xlu0 %4381
        %4383 = vrot.lane.b32.xlu0 %v712, 28
        %v4384 = vpop.permute.xlu0 %4383
        %4385 = vrot.lane.b32.xlu0 %v714, 28
        %v4386 = vpop.permute.xlu0 %4385
        %4387 = vrot.lane.b32.xlu0 %v716, 28
        %v4388 = vpop.permute.xlu0 %4387
        %4389 = vrot.lane.b32.xlu0 %v718, 28
        %v4390 = vpop.permute.xlu0 %4389
        %4391 = vrot.lane.b32.xlu0 %v721, 28
        %v4392 = vpop.permute.xlu0 %4391
        %4393 = vrot.lane.b32.xlu0 %v723, 28
        %v4394 = vpop.permute.xlu0 %4393
        %4395 = vrot.lane.b32.xlu0 %v725, 28
        %v4396 = vpop.permute.xlu0 %4395
        %4397 = vrot.lane.b32.xlu0 %v727, 28
        %v4398 = vpop.permute.xlu0 %4397
        %4399 = vrot.lane.b32.xlu0 %v730, 28
        %v4400 = vpop.permute.xlu0 %4399
        %4401 = vrot.lane.b32.xlu0 %v732, 28
        %v4402 = vpop.permute.xlu0 %4401
        %4403 = vrot.lane.b32.xlu0 %v734, 28
        %v4404 = vpop.permute.xlu0 %4403
        %4405 = vrot.lane.b32.xlu0 %v736, 28
        %v4406 = vpop.permute.xlu0 %4405
        %4407 = vrot.lane.b32.xlu0 %v739, 28
        %v4408 = vpop.permute.xlu0 %4407
        %4409 = vrot.lane.b32.xlu0 %v741, 28
        %v4410 = vpop.permute.xlu0 %4409
        %4411 = vrot.lane.b32.xlu0 %v743, 28
        %v4412 = vpop.permute.xlu0 %4411
        %4413 = vrot.lane.b32.xlu0 %v745, 28
        %v4414 = vpop.permute.xlu0 %4413
        %4415 = vrot.lane.b32.xlu0 %v748, 28
        %v4416 = vpop.permute.xlu0 %4415
        %4417 = vrot.lane.b32.xlu0 %v750, 28
        %v4418 = vpop.permute.xlu0 %4417
        %4419 = vrot.lane.b32.xlu0 %v752, 28
        %v4420 = vpop.permute.xlu0 %4419
        %4421 = vrot.lane.b32.xlu0 %v754, 28
        %v4422 = vpop.permute.xlu0 %4421
        %4423 = vrot.lane.b32.xlu0 %v757, 28
        %v4424 = vpop.permute.xlu0 %4423
        %4425 = vrot.lane.b32.xlu0 %v759, 28
        %v4426 = vpop.permute.xlu0 %4425
        %4427 = vrot.lane.b32.xlu0 %v761, 28
        %v4428 = vpop.permute.xlu0 %4427
        %4429 = vrot.lane.b32.xlu0 %v763, 28
        %v4430 = vpop.permute.xlu0 %4429
        %4431 = vrot.lane.b32.xlu0 %v766, 28
        %v4432 = vpop.permute.xlu0 %4431
        %4433 = vrot.lane.b32.xlu0 %v768, 28
        %v4434 = vpop.permute.xlu0 %4433
        %4435 = vrot.lane.b32.xlu0 %v770, 28
        %v4436 = vpop.permute.xlu0 %4435
        %4437 = vrot.lane.b32.xlu0 %v772, 28
        %v4438 = vpop.permute.xlu0 %4437
        %4439 = vrot.lane.b32.xlu0 %v775, 28
        %v4440 = vpop.permute.xlu0 %4439
        %4441 = vrot.lane.b32.xlu0 %v777, 28
        %v4442 = vpop.permute.xlu0 %4441
        %4443 = vrot.lane.b32.xlu0 %v779, 28
        %v4444 = vpop.permute.xlu0 %4443
        %4445 = vrot.lane.b32.xlu0 %v781, 28
        %v4446 = vpop.permute.xlu0 %4445
        %4447 = vrot.lane.b32.xlu0 %v784, 28
        %v4448 = vpop.permute.xlu0 %4447
        %4449 = vrot.lane.b32.xlu0 %v786, 28
        %v4450 = vpop.permute.xlu0 %4449
        %4451 = vrot.lane.b32.xlu0 %v788, 28
        %v4452 = vpop.permute.xlu0 %4451
        %4453 = vrot.lane.b32.xlu0 %v790, 28
        %v4454 = vpop.permute.xlu0 %4453
        %4455 = vrot.lane.b32.xlu0 %v793, 28
        %v4456 = vpop.permute.xlu0 %4455
        %4457 = vrot.lane.b32.xlu0 %v795, 28
        %v4458 = vpop.permute.xlu0 %4457
        %4459 = vrot.lane.b32.xlu0 %v797, 28
        %v4460 = vpop.permute.xlu0 %4459
        %4461 = vrot.lane.b32.xlu0 %v799, 28
        %v4462 = vpop.permute.xlu0 %4461
        %4463 = vrot.lane.b32.xlu0 %v802, 28
        %v4464 = vpop.permute.xlu0 %4463
        %4465 = vrot.lane.b32.xlu0 %v804, 28
        %v4466 = vpop.permute.xlu0 %4465
        %4467 = vrot.lane.b32.xlu0 %v806, 28
        %v4468 = vpop.permute.xlu0 %4467
        %4469 = vrot.lane.b32.xlu0 %v808, 28
        %v4470 = vpop.permute.xlu0 %4469
        %4471 = vrot.lane.b32.xlu0 %v811, 28
        %v4472 = vpop.permute.xlu0 %4471
        %4473 = vrot.lane.b32.xlu0 %v813, 28
        %v4474 = vpop.permute.xlu0 %4473
        %4475 = vrot.lane.b32.xlu0 %v815, 28
        %v4476 = vpop.permute.xlu0 %4475
        %4477 = vrot.lane.b32.xlu0 %v817, 28
        %v4478 = vpop.permute.xlu0 %4477
        %4479 = vrot.lane.b32.xlu0 %v820, 28
        %v4480 = vpop.permute.xlu0 %4479
        %4481 = vrot.lane.b32.xlu0 %v822, 28
        %v4482 = vpop.permute.xlu0 %4481
        %4483 = vrot.lane.b32.xlu0 %v824, 28
        %v4484 = vpop.permute.xlu0 %4483
        %4485 = vrot.lane.b32.xlu0 %v826, 28
        %v4486 = vpop.permute.xlu0 %4485
        %4487 = vrot.lane.b32.xlu0 %v829, 28
        %v4488 = vpop.permute.xlu0 %4487
        %4489 = vrot.lane.b32.xlu0 %v831, 28
        %v4490 = vpop.permute.xlu0 %4489
        %4491 = vrot.lane.b32.xlu0 %v833, 28
        %v4492 = vpop.permute.xlu0 %4491
        %4493 = vrot.lane.b32.xlu0 %v835, 28
        %v4494 = vpop.permute.xlu0 %4493
        %4495 = vrot.lane.b32.xlu0 %v838, 28
        %v4496 = vpop.permute.xlu0 %4495
        %4497 = vrot.lane.b32.xlu0 %v840, 28
        %v4498 = vpop.permute.xlu0 %4497
        %4499 = vrot.lane.b32.xlu0 %v842, 28
        %v4500 = vpop.permute.xlu0 %4499
        %4501 = vrot.lane.b32.xlu0 %v844, 28
        %v4502 = vpop.permute.xlu0 %4501
        %4503 = vrot.lane.b32.xlu0 %v847, 28
        %v4504 = vpop.permute.xlu0 %4503
        %4505 = vrot.lane.b32.xlu0 %v849, 28
        %v4506 = vpop.permute.xlu0 %4505
        %4507 = vrot.lane.b32.xlu0 %v851, 28
        %v4508 = vpop.permute.xlu0 %4507
        %4509 = vrot.lane.b32.xlu0 %v853, 28
        %v4510 = vpop.permute.xlu0 %4509
        %4511 = vrot.lane.b32.xlu0 %v856, 28
        %v4512 = vpop.permute.xlu0 %4511
        %4513 = vrot.lane.b32.xlu0 %v858, 28
        %v4514 = vpop.permute.xlu0 %4513
        %4515 = vrot.lane.b32.xlu0 %v860, 28
        %v4516 = vpop.permute.xlu0 %4515
        %4517 = vrot.lane.b32.xlu0 %v862, 28
        %v4518 = vpop.permute.xlu0 %4517
        %4519 = vrot.lane.b32.xlu0 %v865, 28
        %v4520 = vpop.permute.xlu0 %4519
        %4521 = vrot.lane.b32.xlu0 %v867, 28
        %v4522 = vpop.permute.xlu0 %4521
        %4523 = vrot.lane.b32.xlu0 %v869, 28
        %v4524 = vpop.permute.xlu0 %4523
        %4525 = vrot.lane.b32.xlu0 %v871, 28
        %v4526 = vpop.permute.xlu0 %4525
        %4527 = vrot.lane.b32.xlu0 %v874, 28
        %v4528 = vpop.permute.xlu0 %4527
        %4529 = vrot.lane.b32.xlu0 %v876, 28
        %v4530 = vpop.permute.xlu0 %4529
        %4531 = vrot.lane.b32.xlu0 %v878, 28
        %v4532 = vpop.permute.xlu0 %4531
        %4533 = vrot.lane.b32.xlu0 %v880, 28
        %v4534 = vpop.permute.xlu0 %4533
        %4535 = vrot.lane.b32.xlu0 %v883, 28
        %v4536 = vpop.permute.xlu0 %4535
        %4537 = vrot.lane.b32.xlu0 %v885, 28
        %v4538 = vpop.permute.xlu0 %4537
        %4539 = vrot.lane.b32.xlu0 %v887, 28
        %v4540 = vpop.permute.xlu0 %4539
        %4541 = vrot.lane.b32.xlu0 %v889, 28
        %v4542 = vpop.permute.xlu0 %4541
        %4543 = vrot.lane.b32.xlu0 %v892, 28
        %v4544 = vpop.permute.xlu0 %4543
        %4545 = vrot.lane.b32.xlu0 %v894, 28
        %v4546 = vpop.permute.xlu0 %4545
        %4547 = vrot.lane.b32.xlu0 %v896, 28
        %v4548 = vpop.permute.xlu0 %4547
        %4549 = vrot.lane.b32.xlu0 %v898, 28
        %v4550 = vpop.permute.xlu0 %4549
        %4551 = vrot.lane.b32.xlu0 %v901, 28
        %v4552 = vpop.permute.xlu0 %4551
        %4553 = vrot.lane.b32.xlu0 %v903, 28
        %v4554 = vpop.permute.xlu0 %4553
        %4555 = vrot.lane.b32.xlu0 %v905, 28
        %v4556 = vpop.permute.xlu0 %4555
        %4557 = vrot.lane.b32.xlu0 %v907, 28
        %v4558 = vpop.permute.xlu0 %4557
        %4559 = vrot.lane.b32.xlu0 %v910, 28
        %v4560 = vpop.permute.xlu0 %4559
        %4561 = vrot.lane.b32.xlu0 %v912, 28
        %v4562 = vpop.permute.xlu0 %4561
        %4563 = vrot.lane.b32.xlu0 %v914, 28
        %v4564 = vpop.permute.xlu0 %4563
        %4565 = vrot.lane.b32.xlu0 %v916, 28
        %v4566 = vpop.permute.xlu0 %4565
        %4567 = vrot.lane.b32.xlu0 %v919, 28
        %v4568 = vpop.permute.xlu0 %4567
        %4569 = vrot.lane.b32.xlu0 %v921, 28
        %v4570 = vpop.permute.xlu0 %4569
        %4571 = vrot.lane.b32.xlu0 %v923, 28
        %v4572 = vpop.permute.xlu0 %4571
        %4573 = vrot.lane.b32.xlu0 %v925, 28
        %v4574 = vpop.permute.xlu0 %4573
        %4575 = vrot.lane.b32.xlu0 %v928, 28
        %v4576 = vpop.permute.xlu0 %4575
        %4577 = vrot.lane.b32.xlu0 %v930, 28
        %v4578 = vpop.permute.xlu0 %4577
        %4579 = vrot.lane.b32.xlu0 %v932, 28
        %v4580 = vpop.permute.xlu0 %4579
        %4581 = vrot.lane.b32.xlu0 %v934, 28
        %v4582 = vpop.permute.xlu0 %4581
        %4583 = vrot.lane.b32.xlu0 %v937, 28
        %v4584 = vpop.permute.xlu0 %4583
        %4585 = vrot.lane.b32.xlu0 %v939, 28
        %v4586 = vpop.permute.xlu0 %4585
        %4587 = vrot.lane.b32.xlu0 %v941, 28
        %v4588 = vpop.permute.xlu0 %4587
        %4589 = vrot.lane.b32.xlu0 %v943, 28
        %v4590 = vpop.permute.xlu0 %4589
        %4591 = vrot.lane.b32.xlu0 %v946, 28
        %v4592 = vpop.permute.xlu0 %4591
        %4593 = vrot.lane.b32.xlu0 %v948, 28
        %v4594 = vpop.permute.xlu0 %4593
        %4595 = vrot.lane.b32.xlu0 %v950, 28
        %v4596 = vpop.permute.xlu0 %4595
        %4597 = vrot.lane.b32.xlu0 %v952, 28
        %v4598 = vpop.permute.xlu0 %4597
        %4599 = vrot.lane.b32.xlu0 %v955, 28
        %v4600 = vpop.permute.xlu0 %4599
        %4601 = vrot.lane.b32.xlu0 %v957, 28
        %v4602 = vpop.permute.xlu0 %4601
        %4603 = vrot.lane.b32.xlu0 %v959, 28
        %v4604 = vpop.permute.xlu0 %4603
        %4605 = vrot.lane.b32.xlu0 %v961, 28
        %v4606 = vpop.permute.xlu0 %4605
        %4607 = vrot.lane.b32.xlu0 %v964, 28
        %v4608 = vpop.permute.xlu0 %4607
        %4609 = vrot.lane.b32.xlu0 %v966, 28
        %v4610 = vpop.permute.xlu0 %4609
        %4611 = vrot.lane.b32.xlu0 %v968, 28
        %v4612 = vpop.permute.xlu0 %4611
        %4613 = vrot.lane.b32.xlu0 %v970, 28
        %v4614 = vpop.permute.xlu0 %4613
        %4615 = vrot.lane.b32.xlu0 %v2806, 28
        %v4616 = vpop.permute.xlu0 %4615
        %4617 = vrot.lane.b32.xlu0 %v2808, 28
        %v4618 = vpop.permute.xlu0 %4617
        %4619 = vrot.lane.b32.xlu0 %v2810, 28
        %v4620 = vpop.permute.xlu0 %4619
        %4621 = vrot.lane.b32.xlu0 %v2812, 28
        %v4622 = vpop.permute.xlu0 %4621
        %4623 = vrot.lane.b32.xlu0 %v4368, 28
        %v4624 = vpop.permute.xlu0 %4623
        %4625 = vrot.lane.b32.xlu0 %v4370, 28
        %v4626 = vpop.permute.xlu0 %4625
        %4627 = vrot.lane.b32.xlu0 %v4372, 28
        %v4628 = vpop.permute.xlu0 %4627
        %4629 = vrot.lane.b32.xlu0 %v4374, 28
        %v4630 = vpop.permute.xlu0 %4629
        %vm4759 = vcmask 261344
        %4760 = vst.msk [vmem:[#allocation2] sm:$0xff] %vm4759, %v4376
        %4761 = vst.msk [vmem:[#allocation2 + $0x8] sm:$0xff] %vm4759, %v4378
        %4762 = vst.msk [vmem:[#allocation2 + $0x10] sm:$0xff] %vm4759, %v4380
        %4763 = vst.msk [vmem:[#allocation2 + $0x18] sm:$0xff] %vm4759, %v4382
        %4764 = vst.msk [vmem:[#allocation2 + $0x20] sm:$0xff] %vm4759, %v4384
        %4765 = vst.msk [vmem:[#allocation2 + $0x28] sm:$0xff] %vm4759, %v4386
        %4766 = vst.msk [vmem:[#allocation2 + $0x30] sm:$0xff] %vm4759, %v4388
        %4767 = vst.msk [vmem:[#allocation2 + $0x38] sm:$0xff] %vm4759, %v4390
        %4768 = vst.msk [vmem:[#allocation2 + $0x40] sm:$0xff] %vm4759, %v4392
        %4769 = vst.msk [vmem:[#allocation2 + $0x48] sm:$0xff] %vm4759, %v4394
        %4770 = vst.msk [vmem:[#allocation2 + $0x50] sm:$0xff] %vm4759, %v4396
        %4771 = vst.msk [vmem:[#allocation2 + $0x58] sm:$0xff] %vm4759, %v4398
        %4772 = vst.msk [vmem:[#allocation2 + $0x60] sm:$0xff] %vm4759, %v4400
        %4773 = vst.msk [vmem:[#allocation2 + $0x68] sm:$0xff] %vm4759, %v4402
        %4774 = vst.msk [vmem:[#allocation2 + $0x70] sm:$0xff] %vm4759, %v4404
        %4775 = vst.msk [vmem:[#allocation2 + $0x78] sm:$0xff] %vm4759, %v4406
        %4776 = vst.msk [vmem:[#allocation2 + $0x80] sm:$0xff] %vm4759, %v4408
        %4777 = vst.msk [vmem:[#allocation2 + $0x88] sm:$0xff] %vm4759, %v4410
        %4778 = vst.msk [vmem:[#allocation2 + $0x90] sm:$0xff] %vm4759, %v4412
        %4779 = vst.msk [vmem:[#allocation2 + $0x98] sm:$0xff] %vm4759, %v4414
        %4780 = vst.msk [vmem:[#allocation2 + $0xa0] sm:$0xff] %vm4759, %v4416
        %4781 = vst.msk [vmem:[#allocation2 + $0xa8] sm:$0xff] %vm4759, %v4418
        %4782 = vst.msk [vmem:[#allocation2 + $0xb0] sm:$0xff] %vm4759, %v4420
        %4783 = vst.msk [vmem:[#allocation2 + $0xb8] sm:$0xff] %vm4759, %v4422
        %4784 = vst.msk [vmem:[#allocation2 + $0xc0] sm:$0xff] %vm4759, %v4424
        %4785 = vst.msk [vmem:[#allocation2 + $0xc8] sm:$0xff] %vm4759, %v4426
        %4786 = vst.msk [vmem:[#allocation2 + $0xd0] sm:$0xff] %vm4759, %v4428
        %4787 = vst.msk [vmem:[#allocation2 + $0xd8] sm:$0xff] %vm4759, %v4430
        %4788 = vst.msk [vmem:[#allocation2 + $0xe0] sm:$0xff] %vm4759, %v4432
        %4789 = vst.msk [vmem:[#allocation2 + $0xe8] sm:$0xff] %vm4759, %v4434
        %4790 = vst.msk [vmem:[#allocation2 + $0xf0] sm:$0xff] %vm4759, %v4436
        %4791 = vst.msk [vmem:[#allocation2 + $0xf8] sm:$0xff] %vm4759, %v4438
        %4792 = vst.msk [vmem:[#allocation2 + $0x100] sm:$0xff] %vm4759, %v4440
        %4793 = vst.msk [vmem:[#allocation2 + $0x108] sm:$0xff] %vm4759, %v4442
        %4794 = vst.msk [vmem:[#allocation2 + $0x110] sm:$0xff] %vm4759, %v4444
        %4795 = vst.msk [vmem:[#allocation2 + $0x118] sm:$0xff] %vm4759, %v4446
        %4796 = vst.msk [vmem:[#allocation2 + $0x120] sm:$0xff] %vm4759, %v4448
        %4797 = vst.msk [vmem:[#allocation2 + $0x128] sm:$0xff] %vm4759, %v4450
        %4798 = vst.msk [vmem:[#allocation2 + $0x130] sm:$0xff] %vm4759, %v4452
        %4799 = vst.msk [vmem:[#allocation2 + $0x138] sm:$0xff] %vm4759, %v4454
        %4800 = vst.msk [vmem:[#allocation2 + $0x140] sm:$0xff] %vm4759, %v4456
        %4801 = vst.msk [vmem:[#allocation2 + $0x148] sm:$0xff] %vm4759, %v4458
        %4802 = vst.msk [vmem:[#allocation2 + $0x150] sm:$0xff] %vm4759, %v4460
        %4803 = vst.msk [vmem:[#allocation2 + $0x158] sm:$0xff] %vm4759, %v4462
        %4804 = vst.msk [vmem:[#allocation2 + $0x160] sm:$0xff] %vm4759, %v4464
        %4805 = vst.msk [vmem:[#allocation2 + $0x168] sm:$0xff] %vm4759, %v4466
        %4806 = vst.msk [vmem:[#allocation2 + $0x170] sm:$0xff] %vm4759, %v4468
        %4807 = vst.msk [vmem:[#allocation2 + $0x178] sm:$0xff] %vm4759, %v4470
        %4808 = vst.msk [vmem:[#allocation2 + $0x180] sm:$0xff] %vm4759, %v4472
        %4809 = vst.msk [vmem:[#allocation2 + $0x188] sm:$0xff] %vm4759, %v4474
        %4810 = vst.msk [vmem:[#allocation2 + $0x190] sm:$0xff] %vm4759, %v4476
        %4811 = vst.msk [vmem:[#allocation2 + $0x198] sm:$0xff] %vm4759, %v4478
        %4812 = vst.msk [vmem:[#allocation2 + $0x1a0] sm:$0xff] %vm4759, %v4480
        %4813 = vst.msk [vmem:[#allocation2 + $0x1a8] sm:$0xff] %vm4759, %v4482
        %4814 = vst.msk [vmem:[#allocation2 + $0x1b0] sm:$0xff] %vm4759, %v4484
        %4815 = vst.msk [vmem:[#allocation2 + $0x1b8] sm:$0xff] %vm4759, %v4486
        %4816 = vst.msk [vmem:[#allocation2 + $0x1c0] sm:$0xff] %vm4759, %v4488
        %4817 = vst.msk [vmem:[#allocation2 + $0x1c8] sm:$0xff] %vm4759, %v4490
        %4818 = vst.msk [vmem:[#allocation2 + $0x1d0] sm:$0xff] %vm4759, %v4492
        %4819 = vst.msk [vmem:[#allocation2 + $0x1d8] sm:$0xff] %vm4759, %v4494
        %4820 = vst.msk [vmem:[#allocation2 + $0x1e0] sm:$0xff] %vm4759, %v4496
        %4821 = vst.msk [vmem:[#allocation2 + $0x1e8] sm:$0xff] %vm4759, %v4498
        %4822 = vst.msk [vmem:[#allocation2 + $0x1f0] sm:$0xff] %vm4759, %v4500
        %4823 = vst.msk [vmem:[#allocation2 + $0x1f8] sm:$0xff] %vm4759, %v4502
        %4824 = vst.msk [vmem:[#allocation2 + $0x200] sm:$0xff] %vm4759, %v4504
        %4825 = vst.msk [vmem:[#allocation2 + $0x208] sm:$0xff] %vm4759, %v4506
        %4826 = vst.msk [vmem:[#allocation2 + $0x210] sm:$0xff] %vm4759, %v4508
        %4827 = vst.msk [vmem:[#allocation2 + $0x218] sm:$0xff] %vm4759, %v4510
        %4828 = vst.msk [vmem:[#allocation2 + $0x220] sm:$0xff] %vm4759, %v4512
        %4829 = vst.msk [vmem:[#allocation2 + $0x228] sm:$0xff] %vm4759, %v4514
        %4830 = vst.msk [vmem:[#allocation2 + $0x230] sm:$0xff] %vm4759, %v4516
        %4831 = vst.msk [vmem:[#allocation2 + $0x238] sm:$0xff] %vm4759, %v4518
        %4832 = vst.msk [vmem:[#allocation2 + $0x240] sm:$0xff] %vm4759, %v4520
        %4833 = vst.msk [vmem:[#allocation2 + $0x248] sm:$0xff] %vm4759, %v4522
        %4834 = vst.msk [vmem:[#allocation2 + $0x250] sm:$0xff] %vm4759, %v4524
        %4835 = vst.msk [vmem:[#allocation2 + $0x258] sm:$0xff] %vm4759, %v4526
        %4836 = vst.msk [vmem:[#allocation2 + $0x260] sm:$0xff] %vm4759, %v4528
        %4837 = vst.msk [vmem:[#allocation2 + $0x268] sm:$0xff] %vm4759, %v4530
        %4838 = vst.msk [vmem:[#allocation2 + $0x270] sm:$0xff] %vm4759, %v4532
        %4839 = vst.msk [vmem:[#allocation2 + $0x278] sm:$0xff] %vm4759, %v4534
        %4840 = vst.msk [vmem:[#allocation2 + $0x280] sm:$0xff] %vm4759, %v4536
        %4841 = vst.msk [vmem:[#allocation2 + $0x288] sm:$0xff] %vm4759, %v4538
        %4842 = vst.msk [vmem:[#allocation2 + $0x290] sm:$0xff] %vm4759, %v4540
        %4843 = vst.msk [vmem:[#allocation2 + $0x298] sm:$0xff] %vm4759, %v4542
        %4844 = vst.msk [vmem:[#allocation2 + $0x2a0] sm:$0xff] %vm4759, %v4544
        %4845 = vst.msk [vmem:[#allocation2 + $0x2a8] sm:$0xff] %vm4759, %v4546
        %4846 = vst.msk [vmem:[#allocation2 + $0x2b0] sm:$0xff] %vm4759, %v4548
        %4847 = vst.msk [vmem:[#allocation2 + $0x2b8] sm:$0xff] %vm4759, %v4550
        %4848 = vst.msk [vmem:[#allocation2 + $0x2c0] sm:$0xff] %vm4759, %v4552
        %4849 = vst.msk [vmem:[#allocation2 + $0x2c8] sm:$0xff] %vm4759, %v4554
        %4850 = vst.msk [vmem:[#allocation2 + $0x2d0] sm:$0xff] %vm4759, %v4556
        %4851 = vst.msk [vmem:[#allocation2 + $0x2d8] sm:$0xff] %vm4759, %v4558
        %4852 = vst.msk [vmem:[#allocation2 + $0x2e0] sm:$0xff] %vm4759, %v4560
        %4853 = vst.msk [vmem:[#allocation2 + $0x2e8] sm:$0xff] %vm4759, %v4562
        %4854 = vst.msk [vmem:[#allocation2 + $0x2f0] sm:$0xff] %vm4759, %v4564
        %4855 = vst.msk [vmem:[#allocation2 + $0x2f8] sm:$0xff] %vm4759, %v4566
        %4856 = vst.msk [vmem:[#allocation2 + $0x300] sm:$0xff] %vm4759, %v4568
        %4857 = vst.msk [vmem:[#allocation2 + $0x308] sm:$0xff] %vm4759, %v4570
        %4858 = vst.msk [vmem:[#allocation2 + $0x310] sm:$0xff] %vm4759, %v4572
        %4859 = vst.msk [vmem:[#allocation2 + $0x318] sm:$0xff] %vm4759, %v4574
        %4860 = vst.msk [vmem:[#allocation2 + $0x320] sm:$0xff] %vm4759, %v4576
        %4861 = vst.msk [vmem:[#allocation2 + $0x328] sm:$0xff] %vm4759, %v4578
        %4862 = vst.msk [vmem:[#allocation2 + $0x330] sm:$0xff] %vm4759, %v4580
        %4863 = vst.msk [vmem:[#allocation2 + $0x338] sm:$0xff] %vm4759, %v4582
        %4864 = vst.msk [vmem:[#allocation2 + $0x340] sm:$0xff] %vm4759, %v4584
        %4865 = vst.msk [vmem:[#allocation2 + $0x348] sm:$0xff] %vm4759, %v4586
        %4866 = vst.msk [vmem:[#allocation2 + $0x350] sm:$0xff] %vm4759, %v4588
        %4867 = vst.msk [vmem:[#allocation2 + $0x358] sm:$0xff] %vm4759, %v4590
        %4868 = vst.msk [vmem:[#allocation2 + $0x360] sm:$0xff] %vm4759, %v4592
        %4869 = vst.msk [vmem:[#allocation2 + $0x368] sm:$0xff] %vm4759, %v4594
        %4870 = vst.msk [vmem:[#allocation2 + $0x370] sm:$0xff] %vm4759, %v4596
        %4871 = vst.msk [vmem:[#allocation2 + $0x378] sm:$0xff] %vm4759, %v4598
        %4872 = vst.msk [vmem:[#allocation2 + $0x380] sm:$0xff] %vm4759, %v4600
        %4873 = vst.msk [vmem:[#allocation2 + $0x388] sm:$0xff] %vm4759, %v4602
        %4874 = vst.msk [vmem:[#allocation2 + $0x390] sm:$0xff] %vm4759, %v4604
        %4875 = vst.msk [vmem:[#allocation2 + $0x398] sm:$0xff] %vm4759, %v4606
        %4876 = vst.msk [vmem:[#allocation2 + $0x3a0] sm:$0xff] %vm4759, %v4608
        %4877 = vst.msk [vmem:[#allocation2 + $0x3a8] sm:$0xff] %vm4759, %v4610
        %4878 = vst.msk [vmem:[#allocation2 + $0x3b0] sm:$0xff] %vm4759, %v4612
        %4879 = vst.msk [vmem:[#allocation2 + $0x3b8] sm:$0xff] %vm4759, %v4614
        %4880 = vst.msk [vmem:[#allocation2 + $0x3c0] sm:$0xff] %vm4759, %v4616
        %4881 = vst.msk [vmem:[#allocation2 + $0x3c8] sm:$0xff] %vm4759, %v4618
        %4882 = vst.msk [vmem:[#allocation2 + $0x3d0] sm:$0xff] %vm4759, %v4620
        %4883 = vst.msk [vmem:[#allocation2 + $0x3d8] sm:$0xff] %vm4759, %v4622
        %4884 = vst.msk [vmem:[#allocation2 + $0x3e0] sm:$0xff] %vm4759, %v4624
        %4885 = vst.msk [vmem:[#allocation2 + $0x3e8] sm:$0xff] %vm4759, %v4626
        %4886 = vst.msk [vmem:[#allocation2 + $0x3f0] sm:$0xff] %vm4759, %v4628
        %4887 = vst.msk [vmem:[#allocation2 + $0x3f8] sm:$0xff] %vm4759, %v4630
        %v4888 = vrot.slane %v388, 2
        %v4889 = vrot.slane %v389, 2
        %v4890 = vsel %vm1484, %v4888, %v4889
        %v4891 = vrot.slane %v390, 2
        %v4892 = vsel %vm1484, %v4889, %v4891
        %v4893 = vrot.slane %v391, 2
        %v4894 = vsel %vm1484, %v4891, %v4893
        %v4895 = vrot.slane %v392, 2
        %v4896 = vsel %vm1484, %v4893, %v4895
        %4897 = vrot.lane.b32.xlu0 %v1505, 32
        %v4898 = vpop.permute.xlu0 %4897
        %4899 = vrot.lane.b32.xlu0 %v1507, 32
        %v4900 = vpop.permute.xlu0 %4899
        %4901 = vrot.lane.b32.xlu0 %v1509, 32
        %v4902 = vpop.permute.xlu0 %4901
        %4903 = vrot.lane.b32.xlu0 %v1511, 32
        %v4904 = vpop.permute.xlu0 %4903
        %4905 = vrot.lane.b32.xlu0 %v1514, 32
        %v4906 = vpop.permute.xlu0 %4905
        %4907 = vrot.lane.b32.xlu0 %v1516, 32
        %v4908 = vpop.permute.xlu0 %4907
        %4909 = vrot.lane.b32.xlu0 %v1518, 32
        %v4910 = vpop.permute.xlu0 %4909
        %4911 = vrot.lane.b32.xlu0 %v1520, 32
        %v4912 = vpop.permute.xlu0 %4911
        %4913 = vrot.lane.b32.xlu0 %v1523, 32
        %v4914 = vpop.permute.xlu0 %4913
        %4915 = vrot.lane.b32.xlu0 %v1525, 32
        %v4916 = vpop.permute.xlu0 %4915
        %4917 = vrot.lane.b32.xlu0 %v1527, 32
        %v4918 = vpop.permute.xlu0 %4917
        %4919 = vrot.lane.b32.xlu0 %v1529, 32
        %v4920 = vpop.permute.xlu0 %4919
        %4921 = vrot.lane.b32.xlu0 %v1532, 32
        %v4922 = vpop.permute.xlu0 %4921
        %4923 = vrot.lane.b32.xlu0 %v1534, 32
        %v4924 = vpop.permute.xlu0 %4923
        %4925 = vrot.lane.b32.xlu0 %v1536, 32
        %v4926 = vpop.permute.xlu0 %4925
        %4927 = vrot.lane.b32.xlu0 %v1538, 32
        %v4928 = vpop.permute.xlu0 %4927
        %4929 = vrot.lane.b32.xlu0 %v1541, 32
        %v4930 = vpop.permute.xlu0 %4929
        %4931 = vrot.lane.b32.xlu0 %v1543, 32
        %v4932 = vpop.permute.xlu0 %4931
        %4933 = vrot.lane.b32.xlu0 %v1545, 32
        %v4934 = vpop.permute.xlu0 %4933
        %4935 = vrot.lane.b32.xlu0 %v1547, 32
        %v4936 = vpop.permute.xlu0 %4935
        %4937 = vrot.lane.b32.xlu0 %v1550, 32
        %v4938 = vpop.permute.xlu0 %4937
        %4939 = vrot.lane.b32.xlu0 %v1552, 32
        %v4940 = vpop.permute.xlu0 %4939
        %4941 = vrot.lane.b32.xlu0 %v1554, 32
        %v4942 = vpop.permute.xlu0 %4941
        %4943 = vrot.lane.b32.xlu0 %v1556, 32
        %v4944 = vpop.permute.xlu0 %4943
        %4945 = vrot.lane.b32.xlu0 %v1559, 32
        %v4946 = vpop.permute.xlu0 %4945
        %4947 = vrot.lane.b32.xlu0 %v1561, 32
        %v4948 = vpop.permute.xlu0 %4947
        %4949 = vrot.lane.b32.xlu0 %v1563, 32
        %v4950 = vpop.permute.xlu0 %4949
        %4951 = vrot.lane.b32.xlu0 %v1565, 32
        %v4952 = vpop.permute.xlu0 %4951
        %4953 = vrot.lane.b32.xlu0 %v1568, 32
        %v4954 = vpop.permute.xlu0 %4953
        %4955 = vrot.lane.b32.xlu0 %v1570, 32
        %v4956 = vpop.permute.xlu0 %4955
        %4957 = vrot.lane.b32.xlu0 %v1572, 32
        %v4958 = vpop.permute.xlu0 %4957
        %4959 = vrot.lane.b32.xlu0 %v1574, 32
        %v4960 = vpop.permute.xlu0 %4959
        %4961 = vrot.lane.b32.xlu0 %v1577, 32
        %v4962 = vpop.permute.xlu0 %4961
        %4963 = vrot.lane.b32.xlu0 %v1579, 32
        %v4964 = vpop.permute.xlu0 %4963
        %4965 = vrot.lane.b32.xlu0 %v1581, 32
        %v4966 = vpop.permute.xlu0 %4965
        %4967 = vrot.lane.b32.xlu0 %v1583, 32
        %v4968 = vpop.permute.xlu0 %4967
        %4969 = vrot.lane.b32.xlu0 %v1586, 32
        %v4970 = vpop.permute.xlu0 %4969
        %4971 = vrot.lane.b32.xlu0 %v1588, 32
        %v4972 = vpop.permute.xlu0 %4971
        %4973 = vrot.lane.b32.xlu0 %v1590, 32
        %v4974 = vpop.permute.xlu0 %4973
        %4975 = vrot.lane.b32.xlu0 %v1592, 32
        %v4976 = vpop.permute.xlu0 %4975
        %4977 = vrot.lane.b32.xlu0 %v1595, 32
        %v4978 = vpop.permute.xlu0 %4977
        %4979 = vrot.lane.b32.xlu0 %v1597, 32
        %v4980 = vpop.permute.xlu0 %4979
        %4981 = vrot.lane.b32.xlu0 %v1599, 32
        %v4982 = vpop.permute.xlu0 %4981
        %4983 = vrot.lane.b32.xlu0 %v1601, 32
        %v4984 = vpop.permute.xlu0 %4983
        %4985 = vrot.lane.b32.xlu0 %v1604, 32
        %v4986 = vpop.permute.xlu0 %4985
        %4987 = vrot.lane.b32.xlu0 %v1606, 32
        %v4988 = vpop.permute.xlu0 %4987
        %4989 = vrot.lane.b32.xlu0 %v1608, 32
        %v4990 = vpop.permute.xlu0 %4989
        %4991 = vrot.lane.b32.xlu0 %v1610, 32
        %v4992 = vpop.permute.xlu0 %4991
        %4993 = vrot.lane.b32.xlu0 %v1613, 32
        %v4994 = vpop.permute.xlu0 %4993
        %4995 = vrot.lane.b32.xlu0 %v1615, 32
        %v4996 = vpop.permute.xlu0 %4995
        %4997 = vrot.lane.b32.xlu0 %v1617, 32
        %v4998 = vpop.permute.xlu0 %4997
        %4999 = vrot.lane.b32.xlu0 %v1619, 32
        %v5000 = vpop.permute.xlu0 %4999
        %5001 = vrot.lane.b32.xlu0 %v1622, 32
        %v5002 = vpop.permute.xlu0 %5001
        %5003 = vrot.lane.b32.xlu0 %v1624, 32
        %v5004 = vpop.permute.xlu0 %5003
        %5005 = vrot.lane.b32.xlu0 %v1626, 32
        %v5006 = vpop.permute.xlu0 %5005
        %5007 = vrot.lane.b32.xlu0 %v1628, 32
        %v5008 = vpop.permute.xlu0 %5007
        %5009 = vrot.lane.b32.xlu0 %v1631, 32
        %v5010 = vpop.permute.xlu0 %5009
        %5011 = vrot.lane.b32.xlu0 %v1633, 32
        %v5012 = vpop.permute.xlu0 %5011
        %5013 = vrot.lane.b32.xlu0 %v1635, 32
        %v5014 = vpop.permute.xlu0 %5013
        %5015 = vrot.lane.b32.xlu0 %v1637, 32
        %v5016 = vpop.permute.xlu0 %5015
        %5017 = vrot.lane.b32.xlu0 %v1640, 32
        %v5018 = vpop.permute.xlu0 %5017
        %5019 = vrot.lane.b32.xlu0 %v1642, 32
        %v5020 = vpop.permute.xlu0 %5019
        %5021 = vrot.lane.b32.xlu0 %v1644, 32
        %v5022 = vpop.permute.xlu0 %5021
        %5023 = vrot.lane.b32.xlu0 %v1646, 32
        %v5024 = vpop.permute.xlu0 %5023
        %5025 = vrot.lane.b32.xlu0 %v1649, 32
        %v5026 = vpop.permute.xlu0 %5025
        %5027 = vrot.lane.b32.xlu0 %v1651, 32
        %v5028 = vpop.permute.xlu0 %5027
        %5029 = vrot.lane.b32.xlu0 %v1653, 32
        %v5030 = vpop.permute.xlu0 %5029
        %5031 = vrot.lane.b32.xlu0 %v1655, 32
        %v5032 = vpop.permute.xlu0 %5031
        %5033 = vrot.lane.b32.xlu0 %v1658, 32
        %v5034 = vpop.permute.xlu0 %5033
        %5035 = vrot.lane.b32.xlu0 %v1660, 32
        %v5036 = vpop.permute.xlu0 %5035
        %5037 = vrot.lane.b32.xlu0 %v1662, 32
        %v5038 = vpop.permute.xlu0 %5037
        %5039 = vrot.lane.b32.xlu0 %v1664, 32
        %v5040 = vpop.permute.xlu0 %5039
        %5041 = vrot.lane.b32.xlu0 %v1667, 32
        %v5042 = vpop.permute.xlu0 %5041
        %5043 = vrot.lane.b32.xlu0 %v1669, 32
        %v5044 = vpop.permute.xlu0 %5043
        %5045 = vrot.lane.b32.xlu0 %v1671, 32
        %v5046 = vpop.permute.xlu0 %5045
        %5047 = vrot.lane.b32.xlu0 %v1673, 32
        %v5048 = vpop.permute.xlu0 %5047
        %5049 = vrot.lane.b32.xlu0 %v1676, 32
        %v5050 = vpop.permute.xlu0 %5049
        %5051 = vrot.lane.b32.xlu0 %v1678, 32
        %v5052 = vpop.permute.xlu0 %5051
        %5053 = vrot.lane.b32.xlu0 %v1680, 32
        %v5054 = vpop.permute.xlu0 %5053
        %5055 = vrot.lane.b32.xlu0 %v1682, 32
        %v5056 = vpop.permute.xlu0 %5055
        %5057 = vrot.lane.b32.xlu0 %v1685, 32
        %v5058 = vpop.permute.xlu0 %5057
        %5059 = vrot.lane.b32.xlu0 %v1687, 32
        %v5060 = vpop.permute.xlu0 %5059
        %5061 = vrot.lane.b32.xlu0 %v1689, 32
        %v5062 = vpop.permute.xlu0 %5061
        %5063 = vrot.lane.b32.xlu0 %v1691, 32
        %v5064 = vpop.permute.xlu0 %5063
        %5065 = vrot.lane.b32.xlu0 %v1694, 32
        %v5066 = vpop.permute.xlu0 %5065
        %5067 = vrot.lane.b32.xlu0 %v1696, 32
        %v5068 = vpop.permute.xlu0 %5067
        %5069 = vrot.lane.b32.xlu0 %v1698, 32
        %v5070 = vpop.permute.xlu0 %5069
        %5071 = vrot.lane.b32.xlu0 %v1700, 32
        %v5072 = vpop.permute.xlu0 %5071
        %5073 = vrot.lane.b32.xlu0 %v1703, 32
        %v5074 = vpop.permute.xlu0 %5073
        %5075 = vrot.lane.b32.xlu0 %v1705, 32
        %v5076 = vpop.permute.xlu0 %5075
        %5077 = vrot.lane.b32.xlu0 %v1707, 32
        %v5078 = vpop.permute.xlu0 %5077
        %5079 = vrot.lane.b32.xlu0 %v1709, 32
        %v5080 = vpop.permute.xlu0 %5079
        %5081 = vrot.lane.b32.xlu0 %v1712, 32
        %v5082 = vpop.permute.xlu0 %5081
        %5083 = vrot.lane.b32.xlu0 %v1714, 32
        %v5084 = vpop.permute.xlu0 %5083
        %5085 = vrot.lane.b32.xlu0 %v1716, 32
        %v5086 = vpop.permute.xlu0 %5085
        %5087 = vrot.lane.b32.xlu0 %v1718, 32
        %v5088 = vpop.permute.xlu0 %5087
        %5089 = vrot.lane.b32.xlu0 %v1721, 32
        %v5090 = vpop.permute.xlu0 %5089
        %5091 = vrot.lane.b32.xlu0 %v1723, 32
        %v5092 = vpop.permute.xlu0 %5091
        %5093 = vrot.lane.b32.xlu0 %v1725, 32
        %v5094 = vpop.permute.xlu0 %5093
        %5095 = vrot.lane.b32.xlu0 %v1727, 32
        %v5096 = vpop.permute.xlu0 %5095
        %5097 = vrot.lane.b32.xlu0 %v1730, 32
        %v5098 = vpop.permute.xlu0 %5097
        %5099 = vrot.lane.b32.xlu0 %v1732, 32
        %v5100 = vpop.permute.xlu0 %5099
        %5101 = vrot.lane.b32.xlu0 %v1734, 32
        %v5102 = vpop.permute.xlu0 %5101
        %5103 = vrot.lane.b32.xlu0 %v1736, 32
        %v5104 = vpop.permute.xlu0 %5103
        %5105 = vrot.lane.b32.xlu0 %v1739, 32
        %v5106 = vpop.permute.xlu0 %5105
        %5107 = vrot.lane.b32.xlu0 %v1741, 32
        %v5108 = vpop.permute.xlu0 %5107
        %5109 = vrot.lane.b32.xlu0 %v1743, 32
        %v5110 = vpop.permute.xlu0 %5109
        %5111 = vrot.lane.b32.xlu0 %v1745, 32
        %v5112 = vpop.permute.xlu0 %5111
        %5113 = vrot.lane.b32.xlu0 %v1748, 32
        %v5114 = vpop.permute.xlu0 %5113
        %5115 = vrot.lane.b32.xlu0 %v1750, 32
        %v5116 = vpop.permute.xlu0 %5115
        %5117 = vrot.lane.b32.xlu0 %v1752, 32
        %v5118 = vpop.permute.xlu0 %5117
        %5119 = vrot.lane.b32.xlu0 %v1754, 32
        %v5120 = vpop.permute.xlu0 %5119
        %5121 = vrot.lane.b32.xlu0 %v1757, 32
        %v5122 = vpop.permute.xlu0 %5121
        %5123 = vrot.lane.b32.xlu0 %v1759, 32
        %v5124 = vpop.permute.xlu0 %5123
        %5125 = vrot.lane.b32.xlu0 %v1761, 32
        %v5126 = vpop.permute.xlu0 %5125
        %5127 = vrot.lane.b32.xlu0 %v1763, 32
        %v5128 = vpop.permute.xlu0 %5127
        %5129 = vrot.lane.b32.xlu0 %v1766, 32
        %v5130 = vpop.permute.xlu0 %5129
        %5131 = vrot.lane.b32.xlu0 %v1768, 32
        %v5132 = vpop.permute.xlu0 %5131
        %5133 = vrot.lane.b32.xlu0 %v1770, 32
        %v5134 = vpop.permute.xlu0 %5133
        %5135 = vrot.lane.b32.xlu0 %v1772, 32
        %v5136 = vpop.permute.xlu0 %5135
        %5137 = vrot.lane.b32.xlu0 %v3328, 32
        %v5138 = vpop.permute.xlu0 %5137
        %5139 = vrot.lane.b32.xlu0 %v3330, 32
        %v5140 = vpop.permute.xlu0 %5139
        %5141 = vrot.lane.b32.xlu0 %v3332, 32
        %v5142 = vpop.permute.xlu0 %5141
        %5143 = vrot.lane.b32.xlu0 %v3334, 32
        %v5144 = vpop.permute.xlu0 %5143
        %5145 = vrot.lane.b32.xlu0 %v4890, 32
        %v5146 = vpop.permute.xlu0 %5145
        %5147 = vrot.lane.b32.xlu0 %v4892, 32
        %v5148 = vpop.permute.xlu0 %5147
        %5149 = vrot.lane.b32.xlu0 %v4894, 32
        %v5150 = vpop.permute.xlu0 %5149
        %5151 = vrot.lane.b32.xlu0 %v4896, 32
        %v5152 = vpop.permute.xlu0 %5151
        %vm5281 = vcmask 294144
        %5282 = vst.msk [vmem:[#allocation2] sm:$0xff] %vm5281, %v4898
        %5283 = vst.msk [vmem:[#allocation2 + $0x8] sm:$0xff] %vm5281, %v4900
        %5284 = vst.msk [vmem:[#allocation2 + $0x10] sm:$0xff] %vm5281, %v4902
        %5285 = vst.msk [vmem:[#allocation2 + $0x18] sm:$0xff] %vm5281, %v4904
        %5286 = vst.msk [vmem:[#allocation2 + $0x20] sm:$0xff] %vm5281, %v4906
        %5287 = vst.msk [vmem:[#allocation2 + $0x28] sm:$0xff] %vm5281, %v4908
        %5288 = vst.msk [vmem:[#allocation2 + $0x30] sm:$0xff] %vm5281, %v4910
        %5289 = vst.msk [vmem:[#allocation2 + $0x38] sm:$0xff] %vm5281, %v4912
        %5290 = vst.msk [vmem:[#allocation2 + $0x40] sm:$0xff] %vm5281, %v4914
        %5291 = vst.msk [vmem:[#allocation2 + $0x48] sm:$0xff] %vm5281, %v4916
        %5292 = vst.msk [vmem:[#allocation2 + $0x50] sm:$0xff] %vm5281, %v4918
        %5293 = vst.msk [vmem:[#allocation2 + $0x58] sm:$0xff] %vm5281, %v4920
        %5294 = vst.msk [vmem:[#allocation2 + $0x60] sm:$0xff] %vm5281, %v4922
        %5295 = vst.msk [vmem:[#allocation2 + $0x68] sm:$0xff] %vm5281, %v4924
        %5296 = vst.msk [vmem:[#allocation2 + $0x70] sm:$0xff] %vm5281, %v4926
        %5297 = vst.msk [vmem:[#allocation2 + $0x78] sm:$0xff] %vm5281, %v4928
        %5298 = vst.msk [vmem:[#allocation2 + $0x80] sm:$0xff] %vm5281, %v4930
        %5299 = vst.msk [vmem:[#allocation2 + $0x88] sm:$0xff] %vm5281, %v4932
        %5300 = vst.msk [vmem:[#allocation2 + $0x90] sm:$0xff] %vm5281, %v4934
        %5301 = vst.msk [vmem:[#allocation2 + $0x98] sm:$0xff] %vm5281, %v4936
        %5302 = vst.msk [vmem:[#allocation2 + $0xa0] sm:$0xff] %vm5281, %v4938
        %5303 = vst.msk [vmem:[#allocation2 + $0xa8] sm:$0xff] %vm5281, %v4940
        %5304 = vst.msk [vmem:[#allocation2 + $0xb0] sm:$0xff] %vm5281, %v4942
        %5305 = vst.msk [vmem:[#allocation2 + $0xb8] sm:$0xff] %vm5281, %v4944
        %5306 = vst.msk [vmem:[#allocation2 + $0xc0] sm:$0xff] %vm5281, %v4946
        %5307 = vst.msk [vmem:[#allocation2 + $0xc8] sm:$0xff] %vm5281, %v4948
        %5308 = vst.msk [vmem:[#allocation2 + $0xd0] sm:$0xff] %vm5281, %v4950
        %5309 = vst.msk [vmem:[#allocation2 + $0xd8] sm:$0xff] %vm5281, %v4952
        %5310 = vst.msk [vmem:[#allocation2 + $0xe0] sm:$0xff] %vm5281, %v4954
        %5311 = vst.msk [vmem:[#allocation2 + $0xe8] sm:$0xff] %vm5281, %v4956
        %5312 = vst.msk [vmem:[#allocation2 + $0xf0] sm:$0xff] %vm5281, %v4958
        %5313 = vst.msk [vmem:[#allocation2 + $0xf8] sm:$0xff] %vm5281, %v4960
        %5314 = vst.msk [vmem:[#allocation2 + $0x100] sm:$0xff] %vm5281, %v4962
        %5315 = vst.msk [vmem:[#allocation2 + $0x108] sm:$0xff] %vm5281, %v4964
        %5316 = vst.msk [vmem:[#allocation2 + $0x110] sm:$0xff] %vm5281, %v4966
        %5317 = vst.msk [vmem:[#allocation2 + $0x118] sm:$0xff] %vm5281, %v4968
        %5318 = vst.msk [vmem:[#allocation2 + $0x120] sm:$0xff] %vm5281, %v4970
        %5319 = vst.msk [vmem:[#allocation2 + $0x128] sm:$0xff] %vm5281, %v4972
        %5320 = vst.msk [vmem:[#allocation2 + $0x130] sm:$0xff] %vm5281, %v4974
        %5321 = vst.msk [vmem:[#allocation2 + $0x138] sm:$0xff] %vm5281, %v4976
        %5322 = vst.msk [vmem:[#allocation2 + $0x140] sm:$0xff] %vm5281, %v4978
        %5323 = vst.msk [vmem:[#allocation2 + $0x148] sm:$0xff] %vm5281, %v4980
        %5324 = vst.msk [vmem:[#allocation2 + $0x150] sm:$0xff] %vm5281, %v4982
        %5325 = vst.msk [vmem:[#allocation2 + $0x158] sm:$0xff] %vm5281, %v4984
        %5326 = vst.msk [vmem:[#allocation2 + $0x160] sm:$0xff] %vm5281, %v4986
        %5327 = vst.msk [vmem:[#allocation2 + $0x168] sm:$0xff] %vm5281, %v4988
        %5328 = vst.msk [vmem:[#allocation2 + $0x170] sm:$0xff] %vm5281, %v4990
        %5329 = vst.msk [vmem:[#allocation2 + $0x178] sm:$0xff] %vm5281, %v4992
        %5330 = vst.msk [vmem:[#allocation2 + $0x180] sm:$0xff] %vm5281, %v4994
        %5331 = vst.msk [vmem:[#allocation2 + $0x188] sm:$0xff] %vm5281, %v4996
        %5332 = vst.msk [vmem:[#allocation2 + $0x190] sm:$0xff] %vm5281, %v4998
        %5333 = vst.msk [vmem:[#allocation2 + $0x198] sm:$0xff] %vm5281, %v5000
        %5334 = vst.msk [vmem:[#allocation2 + $0x1a0] sm:$0xff] %vm5281, %v5002
        %5335 = vst.msk [vmem:[#allocation2 + $0x1a8] sm:$0xff] %vm5281, %v5004
        %5336 = vst.msk [vmem:[#allocation2 + $0x1b0] sm:$0xff] %vm5281, %v5006
        %5337 = vst.msk [vmem:[#allocation2 + $0x1b8] sm:$0xff] %vm5281, %v5008
        %5338 = vst.msk [vmem:[#allocation2 + $0x1c0] sm:$0xff] %vm5281, %v5010
        %5339 = vst.msk [vmem:[#allocation2 + $0x1c8] sm:$0xff] %vm5281, %v5012
        %5340 = vst.msk [vmem:[#allocation2 + $0x1d0] sm:$0xff] %vm5281, %v5014
        %5341 = vst.msk [vmem:[#allocation2 + $0x1d8] sm:$0xff] %vm5281, %v5016
        %5342 = vst.msk [vmem:[#allocation2 + $0x1e0] sm:$0xff] %vm5281, %v5018
        %5343 = vst.msk [vmem:[#allocation2 + $0x1e8] sm:$0xff] %vm5281, %v5020
        %5344 = vst.msk [vmem:[#allocation2 + $0x1f0] sm:$0xff] %vm5281, %v5022
        %5345 = vst.msk [vmem:[#allocation2 + $0x1f8] sm:$0xff] %vm5281, %v5024
        %5346 = vst.msk [vmem:[#allocation2 + $0x200] sm:$0xff] %vm5281, %v5026
        %5347 = vst.msk [vmem:[#allocation2 + $0x208] sm:$0xff] %vm5281, %v5028
        %5348 = vst.msk [vmem:[#allocation2 + $0x210] sm:$0xff] %vm5281, %v5030
        %5349 = vst.msk [vmem:[#allocation2 + $0x218] sm:$0xff] %vm5281, %v5032
        %5350 = vst.msk [vmem:[#allocation2 + $0x220] sm:$0xff] %vm5281, %v5034
        %5351 = vst.msk [vmem:[#allocation2 + $0x228] sm:$0xff] %vm5281, %v5036
        %5352 = vst.msk [vmem:[#allocation2 + $0x230] sm:$0xff] %vm5281, %v5038
        %5353 = vst.msk [vmem:[#allocation2 + $0x238] sm:$0xff] %vm5281, %v5040
        %5354 = vst.msk [vmem:[#allocation2 + $0x240] sm:$0xff] %vm5281, %v5042
        %5355 = vst.msk [vmem:[#allocation2 + $0x248] sm:$0xff] %vm5281, %v5044
        %5356 = vst.msk [vmem:[#allocation2 + $0x250] sm:$0xff] %vm5281, %v5046
        %5357 = vst.msk [vmem:[#allocation2 + $0x258] sm:$0xff] %vm5281, %v5048
        %5358 = vst.msk [vmem:[#allocation2 + $0x260] sm:$0xff] %vm5281, %v5050
        %5359 = vst.msk [vmem:[#allocation2 + $0x268] sm:$0xff] %vm5281, %v5052
        %5360 = vst.msk [vmem:[#allocation2 + $0x270] sm:$0xff] %vm5281, %v5054
        %5361 = vst.msk [vmem:[#allocation2 + $0x278] sm:$0xff] %vm5281, %v5056
        %5362 = vst.msk [vmem:[#allocation2 + $0x280] sm:$0xff] %vm5281, %v5058
        %5363 = vst.msk [vmem:[#allocation2 + $0x288] sm:$0xff] %vm5281, %v5060
        %5364 = vst.msk [vmem:[#allocation2 + $0x290] sm:$0xff] %vm5281, %v5062
        %5365 = vst.msk [vmem:[#allocation2 + $0x298] sm:$0xff] %vm5281, %v5064
        %5366 = vst.msk [vmem:[#allocation2 + $0x2a0] sm:$0xff] %vm5281, %v5066
        %5367 = vst.msk [vmem:[#allocation2 + $0x2a8] sm:$0xff] %vm5281, %v5068
        %5368 = vst.msk [vmem:[#allocation2 + $0x2b0] sm:$0xff] %vm5281, %v5070
        %5369 = vst.msk [vmem:[#allocation2 + $0x2b8] sm:$0xff] %vm5281, %v5072
        %5370 = vst.msk [vmem:[#allocation2 + $0x2c0] sm:$0xff] %vm5281, %v5074
        %5371 = vst.msk [vmem:[#allocation2 + $0x2c8] sm:$0xff] %vm5281, %v5076
        %5372 = vst.msk [vmem:[#allocation2 + $0x2d0] sm:$0xff] %vm5281, %v5078
        %5373 = vst.msk [vmem:[#allocation2 + $0x2d8] sm:$0xff] %vm5281, %v5080
        %5374 = vst.msk [vmem:[#allocation2 + $0x2e0] sm:$0xff] %vm5281, %v5082
        %5375 = vst.msk [vmem:[#allocation2 + $0x2e8] sm:$0xff] %vm5281, %v5084
        %5376 = vst.msk [vmem:[#allocation2 + $0x2f0] sm:$0xff] %vm5281, %v5086
        %5377 = vst.msk [vmem:[#allocation2 + $0x2f8] sm:$0xff] %vm5281, %v5088
        %5378 = vst.msk [vmem:[#allocation2 + $0x300] sm:$0xff] %vm5281, %v5090
        %5379 = vst.msk [vmem:[#allocation2 + $0x308] sm:$0xff] %vm5281, %v5092
        %5380 = vst.msk [vmem:[#allocation2 + $0x310] sm:$0xff] %vm5281, %v5094
        %5381 = vst.msk [vmem:[#allocation2 + $0x318] sm:$0xff] %vm5281, %v5096
        %5382 = vst.msk [vmem:[#allocation2 + $0x320] sm:$0xff] %vm5281, %v5098
        %5383 = vst.msk [vmem:[#allocation2 + $0x328] sm:$0xff] %vm5281, %v5100
        %5384 = vst.msk [vmem:[#allocation2 + $0x330] sm:$0xff] %vm5281, %v5102
        %5385 = vst.msk [vmem:[#allocation2 + $0x338] sm:$0xff] %vm5281, %v5104
        %5386 = vst.msk [vmem:[#allocation2 + $0x340] sm:$0xff] %vm5281, %v5106
        %5387 = vst.msk [vmem:[#allocation2 + $0x348] sm:$0xff] %vm5281, %v5108
        %5388 = vst.msk [vmem:[#allocation2 + $0x350] sm:$0xff] %vm5281, %v5110
        %5389 = vst.msk [vmem:[#allocation2 + $0x358] sm:$0xff] %vm5281, %v5112
        %5390 = vst.msk [vmem:[#allocation2 + $0x360] sm:$0xff] %vm5281, %v5114
        %5391 = vst.msk [vmem:[#allocation2 + $0x368] sm:$0xff] %vm5281, %v5116
        %5392 = vst.msk [vmem:[#allocation2 + $0x370] sm:$0xff] %vm5281, %v5118
        %5393 = vst.msk [vmem:[#allocation2 + $0x378] sm:$0xff] %vm5281, %v5120
        %5394 = vst.msk [vmem:[#allocation2 + $0x380] sm:$0xff] %vm5281, %v5122
        %5395 = vst.msk [vmem:[#allocation2 + $0x388] sm:$0xff] %vm5281, %v5124
        %5396 = vst.msk [vmem:[#allocation2 + $0x390] sm:$0xff] %vm5281, %v5126
        %5397 = vst.msk [vmem:[#allocation2 + $0x398] sm:$0xff] %vm5281, %v5128
        %5398 = vst.msk [vmem:[#allocation2 + $0x3a0] sm:$0xff] %vm5281, %v5130
        %5399 = vst.msk [vmem:[#allocation2 + $0x3a8] sm:$0xff] %vm5281, %v5132
        %5400 = vst.msk [vmem:[#allocation2 + $0x3b0] sm:$0xff] %vm5281, %v5134
        %5401 = vst.msk [vmem:[#allocation2 + $0x3b8] sm:$0xff] %vm5281, %v5136
        %5402 = vst.msk [vmem:[#allocation2 + $0x3c0] sm:$0xff] %vm5281, %v5138
        %5403 = vst.msk [vmem:[#allocation2 + $0x3c8] sm:$0xff] %vm5281, %v5140
        %5404 = vst.msk [vmem:[#allocation2 + $0x3d0] sm:$0xff] %vm5281, %v5142
        %5405 = vst.msk [vmem:[#allocation2 + $0x3d8] sm:$0xff] %vm5281, %v5144
        %5406 = vst.msk [vmem:[#allocation2 + $0x3e0] sm:$0xff] %vm5281, %v5146
        %5407 = vst.msk [vmem:[#allocation2 + $0x3e8] sm:$0xff] %vm5281, %v5148
        %5408 = vst.msk [vmem:[#allocation2 + $0x3f0] sm:$0xff] %vm5281, %v5150
        %5409 = vst.msk [vmem:[#allocation2 + $0x3f8] sm:$0xff] %vm5281, %v5152
        %v5410 = vld [vmem:[%s1] sm:$0xff]
        %v5411 = vld [vmem:[#allocation2] sm:$0xff]
        %v5412 = vld [vmem:[#allocation2 + $0x8] sm:$0xff]
        %v5413 = vld [vmem:[#allocation2 + $0x10] sm:$0xff]
        %v5414 = vld [vmem:[#allocation2 + $0x18] sm:$0xff]
        %v5415 = vld [vmem:[#allocation2 + $0x20] sm:$0xff]
        %v5416 = vld [vmem:[#allocation2 + $0x28] sm:$0xff]
        %v5417 = vld [vmem:[#allocation2 + $0x30] sm:$0xff]
        %v5418 = vld [vmem:[#allocation2 + $0x38] sm:$0xff]
        %v5419 = vld [vmem:[#allocation2 + $0x40] sm:$0xff]
        %v5420 = vld [vmem:[#allocation2 + $0x48] sm:$0xff]
        %v5421 = vld [vmem:[#allocation2 + $0x50] sm:$0xff]
        %v5422 = vld [vmem:[#allocation2 + $0x58] sm:$0xff]
        %v5423 = vld [vmem:[#allocation2 + $0x60] sm:$0xff]
        %v5424 = vld [vmem:[#allocation2 + $0x68] sm:$0xff]
        %v5425 = vld [vmem:[#allocation2 + $0x70] sm:$0xff]
        %v5426 = vld [vmem:[#allocation2 + $0x78] sm:$0xff]
        %v5427 = vld [vmem:[#allocation2 + $0x80] sm:$0xff]
        %v5428 = vld [vmem:[#allocation2 + $0x88] sm:$0xff]
        %v5429 = vld [vmem:[#allocation2 + $0x90] sm:$0xff]
        %v5430 = vld [vmem:[#allocation2 + $0x98] sm:$0xff]
        %v5431 = vld [vmem:[#allocation2 + $0xa0] sm:$0xff]
        %v5432 = vld [vmem:[#allocation2 + $0xa8] sm:$0xff]
        %v5433 = vld [vmem:[#allocation2 + $0xb0] sm:$0xff]
        %v5434 = vld [vmem:[#allocation2 + $0xb8] sm:$0xff]
        %v5435 = vld [vmem:[#allocation2 + $0xc0] sm:$0xff]
        %v5436 = vld [vmem:[#allocation2 + $0xc8] sm:$0xff]
        %v5437 = vld [vmem:[#allocation2 + $0xd0] sm:$0xff]
        %v5438 = vld [vmem:[#allocation2 + $0xd8] sm:$0xff]
        %v5439 = vld [vmem:[#allocation2 + $0xe0] sm:$0xff]
        %v5440 = vld [vmem:[#allocation2 + $0xe8] sm:$0xff]
        %v5441 = vld [vmem:[#allocation2 + $0xf0] sm:$0xff]
        %v5442 = vld [vmem:[#allocation2 + $0xf8] sm:$0xff]
        %v5443 = vld [vmem:[#allocation2 + $0x100] sm:$0xff]
        %v5444 = vld [vmem:[#allocation2 + $0x108] sm:$0xff]
        %v5445 = vld [vmem:[#allocation2 + $0x110] sm:$0xff]
        %v5446 = vld [vmem:[#allocation2 + $0x118] sm:$0xff]
        %v5447 = vld [vmem:[#allocation2 + $0x120] sm:$0xff]
        %v5448 = vld [vmem:[#allocation2 + $0x128] sm:$0xff]
        %v5449 = vld [vmem:[#allocation2 + $0x130] sm:$0xff]
        %v5450 = vld [vmem:[#allocation2 + $0x138] sm:$0xff]
        %v5451 = vld [vmem:[#allocation2 + $0x140] sm:$0xff]
        %v5452 = vld [vmem:[#allocation2 + $0x148] sm:$0xff]
        %v5453 = vld [vmem:[#allocation2 + $0x150] sm:$0xff]
        %v5454 = vld [vmem:[#allocation2 + $0x158] sm:$0xff]
        %v5455 = vld [vmem:[#allocation2 + $0x160] sm:$0xff]
        %v5456 = vld [vmem:[#allocation2 + $0x168] sm:$0xff]
        %v5457 = vld [vmem:[#allocation2 + $0x170] sm:$0xff]
        %v5458 = vld [vmem:[#allocation2 + $0x178] sm:$0xff]
        %v5459 = vld [vmem:[#allocation2 + $0x180] sm:$0xff]
        %v5460 = vld [vmem:[#allocation2 + $0x188] sm:$0xff]
        %v5461 = vld [vmem:[#allocation2 + $0x190] sm:$0xff]
        %v5462 = vld [vmem:[#allocation2 + $0x198] sm:$0xff]
        %v5463 = vld [vmem:[#allocation2 + $0x1a0] sm:$0xff]
        %v5464 = vld [vmem:[#allocation2 + $0x1a8] sm:$0xff]
        %v5465 = vld [vmem:[#allocation2 + $0x1b0] sm:$0xff]
        %v5466 = vld [vmem:[#allocation2 + $0x1b8] sm:$0xff]
        %v5467 = vld [vmem:[#allocation2 + $0x1c0] sm:$0xff]
        %v5468 = vld [vmem:[#allocation2 + $0x1c8] sm:$0xff]
        %v5469 = vld [vmem:[#allocation2 + $0x1d0] sm:$0xff]
        %v5470 = vld [vmem:[#allocation2 + $0x1d8] sm:$0xff]
        %v5471 = vld [vmem:[#allocation2 + $0x1e0] sm:$0xff]
        %v5472 = vld [vmem:[#allocation2 + $0x1e8] sm:$0xff]
        %v5473 = vld [vmem:[#allocation2 + $0x1f0] sm:$0xff]
        %v5474 = vld [vmem:[#allocation2 + $0x1f8] sm:$0xff]
        %v5475 = vld [vmem:[#allocation2 + $0x200] sm:$0xff]
        %v5476 = vld [vmem:[#allocation2 + $0x208] sm:$0xff]
        %v5477 = vld [vmem:[#allocation2 + $0x210] sm:$0xff]
        %v5478 = vld [vmem:[#allocation2 + $0x218] sm:$0xff]
        %v5479 = vld [vmem:[#allocation2 + $0x220] sm:$0xff]
        %v5480 = vld [vmem:[#allocation2 + $0x228] sm:$0xff]
        %v5481 = vld [vmem:[#allocation2 + $0x230] sm:$0xff]
        %v5482 = vld [vmem:[#allocation2 + $0x238] sm:$0xff]
        %v5483 = vld [vmem:[#allocation2 + $0x240] sm:$0xff]
        %v5484 = vld [vmem:[#allocation2 + $0x248] sm:$0xff]
        %v5485 = vld [vmem:[#allocation2 + $0x250] sm:$0xff]
        %v5486 = vld [vmem:[#allocation2 + $0x258] sm:$0xff]
        %v5487 = vld [vmem:[#allocation2 + $0x260] sm:$0xff]
        %v5488 = vld [vmem:[#allocation2 + $0x268] sm:$0xff]
        %v5489 = vld [vmem:[#allocation2 + $0x270] sm:$0xff]
        %v5490 = vld [vmem:[#allocation2 + $0x278] sm:$0xff]
        %v5491 = vld [vmem:[#allocation2 + $0x280] sm:$0xff]
        %v5492 = vld [vmem:[#allocation2 + $0x288] sm:$0xff]
        %v5493 = vld [vmem:[#allocation2 + $0x290] sm:$0xff]
        %v5494 = vld [vmem:[#allocation2 + $0x298] sm:$0xff]
        %v5495 = vld [vmem:[#allocation2 + $0x2a0] sm:$0xff]
        %v5496 = vld [vmem:[#allocation2 + $0x2a8] sm:$0xff]
        %v5497 = vld [vmem:[#allocation2 + $0x2b0] sm:$0xff]
        %v5498 = vld [vmem:[#allocation2 + $0x2b8] sm:$0xff]
        %v5499 = vld [vmem:[#allocation2 + $0x2c0] sm:$0xff]
        %v5500 = vld [vmem:[#allocation2 + $0x2c8] sm:$0xff]
        %v5501 = vld [vmem:[#allocation2 + $0x2d0] sm:$0xff]
        %v5502 = vld [vmem:[#allocation2 + $0x2d8] sm:$0xff]
        %v5503 = vld [vmem:[#allocation2 + $0x2e0] sm:$0xff]
        %v5504 = vld [vmem:[#allocation2 + $0x2e8] sm:$0xff]
        %v5505 = vld [vmem:[#allocation2 + $0x2f0] sm:$0xff]
        %v5506 = vld [vmem:[#allocation2 + $0x2f8] sm:$0xff]
        %v5507 = vld [vmem:[#allocation2 + $0x300] sm:$0xff]
        %v5508 = vld [vmem:[#allocation2 + $0x308] sm:$0xff]
        %v5509 = vld [vmem:[#allocation2 + $0x310] sm:$0xff]
        %v5510 = vld [vmem:[#allocation2 + $0x318] sm:$0xff]
        %v5511 = vld [vmem:[#allocation2 + $0x320] sm:$0xff]
        %v5512 = vld [vmem:[#allocation2 + $0x328] sm:$0xff]
        %v5513 = vld [vmem:[#allocation2 + $0x330] sm:$0xff]
        %v5514 = vld [vmem:[#allocation2 + $0x338] sm:$0xff]
        %v5515 = vld [vmem:[#allocation2 + $0x340] sm:$0xff]
        %v5516 = vld [vmem:[#allocation2 + $0x348] sm:$0xff]
        %v5517 = vld [vmem:[#allocation2 + $0x350] sm:$0xff]
        %v5518 = vld [vmem:[#allocation2 + $0x358] sm:$0xff]
        %v5519 = vld [vmem:[#allocation2 + $0x360] sm:$0xff]
        %v5520 = vld [vmem:[#allocation2 + $0x368] sm:$0xff]
        %v5521 = vld [vmem:[#allocation2 + $0x370] sm:$0xff]
        %v5522 = vld [vmem:[#allocation2 + $0x378] sm:$0xff]
        %v5523 = vld [vmem:[#allocation2 + $0x380] sm:$0xff]
        %v5524 = vld [vmem:[#allocation2 + $0x388] sm:$0xff]
        %v5525 = vld [vmem:[#allocation2 + $0x390] sm:$0xff]
        %v5526 = vld [vmem:[#allocation2 + $0x398] sm:$0xff]
        %v5527 = vld [vmem:[#allocation2 + $0x3a0] sm:$0xff]
        %v5528 = vld [vmem:[#allocation2 + $0x3a8] sm:$0xff]
        %v5529 = vld [vmem:[#allocation2 + $0x3b0] sm:$0xff]
        %v5530 = vld [vmem:[#allocation2 + $0x3b8] sm:$0xff]
        %v5531 = vld [vmem:[#allocation2 + $0x3c0] sm:$0xff]
        %v5532 = vld [vmem:[#allocation2 + $0x3c8] sm:$0xff]
        %v5533 = vld [vmem:[#allocation2 + $0x3d0] sm:$0xff]
        %v5534 = vld [vmem:[#allocation2 + $0x3d8] sm:$0xff]
        %v5535 = vld [vmem:[#allocation2 + $0x3e0] sm:$0xff]
        %v5536 = vld [vmem:[#allocation2 + $0x3e8] sm:$0xff]
        %v5537 = vld [vmem:[#allocation2 + $0x3f0] sm:$0xff]
        %v5538 = vld [vmem:[#allocation2 + $0x3f8] sm:$0xff]
        %v5539 = vld [vmem:[%s2] sm:$0xff]
        %5541 = vset.pattern.permute.xlu0 0
        %5542 = vperm.xlu0 %5541, %v5539
        %v5543 = vpop.permute.xlu0 %5542
        %vm5545 = vcmask 293888
        %v5547 = vsel %vm5545, %v5410, 0
        %v5550 = vsel %vm5545, %v5411, 0
        %v5553 = vsel %vm5545, %v5412, 0
        %v5556 = vsel %vm5545, %v5413, 0
        %v5559 = vsel %vm5545, %v5414, 0
        %v5562 = vsel %vm5545, %v5415, 0
        %v5565 = vsel %vm5545, %v5416, 0
        %v5568 = vsel %vm5545, %v5417, 0
        %v5571 = vsel %vm5545, %v5418, 0
        %v5574 = vsel %vm5545, %v5419, 0
        %v5577 = vsel %vm5545, %v5420, 0
        %v5580 = vsel %vm5545, %v5421, 0
        %v5583 = vsel %vm5545, %v5422, 0
        %v5586 = vsel %vm5545, %v5423, 0
        %v5589 = vsel %vm5545, %v5424, 0
        %v5592 = vsel %vm5545, %v5425, 0
        %v5595 = vsel %vm5545, %v5426, 0
        %v5598 = vsel %vm5545, %v5427, 0
        %v5601 = vsel %vm5545, %v5428, 0
        %v5604 = vsel %vm5545, %v5429, 0
        %v5607 = vsel %vm5545, %v5430, 0
        %v5610 = vsel %vm5545, %v5431, 0
        %v5613 = vsel %vm5545, %v5432, 0
        %v5616 = vsel %vm5545, %v5433, 0
        %v5619 = vsel %vm5545, %v5434, 0
        %v5622 = vsel %vm5545, %v5435, 0
        %v5625 = vsel %vm5545, %v5436, 0
        %v5628 = vsel %vm5545, %v5437, 0
        %v5631 = vsel %vm5545, %v5438, 0
        %v5634 = vsel %vm5545, %v5439, 0
        %v5637 = vsel %vm5545, %v5440, 0
        %v5640 = vsel %vm5545, %v5441, 0
        %v5643 = vsel %vm5545, %v5442, 0
        %v5646 = vsel %vm5545, %v5443, 0
        %v5649 = vsel %vm5545, %v5444, 0
        %v5652 = vsel %vm5545, %v5445, 0
        %v5655 = vsel %vm5545, %v5446, 0
        %v5658 = vsel %vm5545, %v5447, 0
        %v5661 = vsel %vm5545, %v5448, 0
        %v5664 = vsel %vm5545, %v5449, 0
        %v5667 = vsel %vm5545, %v5450, 0
        %v5670 = vsel %vm5545, %v5451, 0
        %v5673 = vsel %vm5545, %v5452, 0
        %v5676 = vsel %vm5545, %v5453, 0
        %v5679 = vsel %vm5545, %v5454, 0
        %v5682 = vsel %vm5545, %v5455, 0
        %v5685 = vsel %vm5545, %v5456, 0
        %v5688 = vsel %vm5545, %v5457, 0
        %v5691 = vsel %vm5545, %v5458, 0
        %v5694 = vsel %vm5545, %v5459, 0
        %v5697 = vsel %vm5545, %v5460, 0
        %v5700 = vsel %vm5545, %v5461, 0
        %v5703 = vsel %vm5545, %v5462, 0
        %v5706 = vsel %vm5545, %v5463, 0
        %v5709 = vsel %vm5545, %v5464, 0
        %v5712 = vsel %vm5545, %v5465, 0
        %v5715 = vsel %vm5545, %v5466, 0
        %v5718 = vsel %vm5545, %v5467, 0
        %v5721 = vsel %vm5545, %v5468, 0
        %v5724 = vsel %vm5545, %v5469, 0
        %v5727 = vsel %vm5545, %v5470, 0
        %v5730 = vsel %vm5545, %v5471, 0
        %v5733 = vsel %vm5545, %v5472, 0
        %v5736 = vsel %vm5545, %v5473, 0
        %v5739 = vsel %vm5545, %v5474, 0
        %v5742 = vsel %vm5545, %v5475, 0
        %v5745 = vsel %vm5545, %v5476, 0
        %v5748 = vsel %vm5545, %v5477, 0
        %v5751 = vsel %vm5545, %v5478, 0
        %v5754 = vsel %vm5545, %v5479, 0
        %v5757 = vsel %vm5545, %v5480, 0
        %v5760 = vsel %vm5545, %v5481, 0
        %v5763 = vsel %vm5545, %v5482, 0
        %v5766 = vsel %vm5545, %v5483, 0
        %v5769 = vsel %vm5545, %v5484, 0
        %v5772 = vsel %vm5545, %v5485, 0
        %v5775 = vsel %vm5545, %v5486, 0
        %v5778 = vsel %vm5545, %v5487, 0
        %v5781 = vsel %vm5545, %v5488, 0
        %v5784 = vsel %vm5545, %v5489, 0
        %v5787 = vsel %vm5545, %v5490, 0
        %v5790 = vsel %vm5545, %v5491, 0
        %v5793 = vsel %vm5545, %v5492, 0
        %v5796 = vsel %vm5545, %v5493, 0
        %v5799 = vsel %vm5545, %v5494, 0
        %v5802 = vsel %vm5545, %v5495, 0
        %v5805 = vsel %vm5545, %v5496, 0
        %v5808 = vsel %vm5545, %v5497, 0
        %v5811 = vsel %vm5545, %v5498, 0
        %v5814 = vsel %vm5545, %v5499, 0
        %v5817 = vsel %vm5545, %v5500, 0
        %v5820 = vsel %vm5545, %v5501, 0
        %v5823 = vsel %vm5545, %v5502, 0
        %v5826 = vsel %vm5545, %v5503, 0
        %v5829 = vsel %vm5545, %v5504, 0
        %v5832 = vsel %vm5545, %v5505, 0
        %v5835 = vsel %vm5545, %v5506, 0
        %v5838 = vsel %vm5545, %v5507, 0
        %v5841 = vsel %vm5545, %v5508, 0
        %v5844 = vsel %vm5545, %v5509, 0
        %v5847 = vsel %vm5545, %v5510, 0
        %v5850 = vsel %vm5545, %v5511, 0
        %v5853 = vsel %vm5545, %v5512, 0
        %v5856 = vsel %vm5545, %v5513, 0
        %v5859 = vsel %vm5545, %v5514, 0
        %v5862 = vsel %vm5545, %v5515, 0
        %v5865 = vsel %vm5545, %v5516, 0
        %v5868 = vsel %vm5545, %v5517, 0
        %v5871 = vsel %vm5545, %v5518, 0
        %v5874 = vsel %vm5545, %v5519, 0
        %v5877 = vsel %vm5545, %v5520, 0
        %v5880 = vsel %vm5545, %v5521, 0
        %v5883 = vsel %vm5545, %v5522, 0
        %v5886 = vsel %vm5545, %v5523, 0
        %v5889 = vsel %vm5545, %v5524, 0
        %v5892 = vsel %vm5545, %v5525, 0
        %v5895 = vsel %vm5545, %v5526, 0
        %v5898 = vsel %vm5545, %v5527, 0
        %v5901 = vsel %vm5545, %v5528, 0
        %v5904 = vsel %vm5545, %v5529, 0
        %v5907 = vsel %vm5545, %v5530, 0
        %v5910 = vsel %vm5545, %v5531, 0
        %v5913 = vsel %vm5545, %v5532, 0
        %v5916 = vsel %vm5545, %v5533, 0
        %v5919 = vsel %vm5545, %v5534, 0
        %v5922 = vsel %vm5545, %v5535, 0
        %v5925 = vsel %vm5545, %v5536, 0
        %v5928 = vsel %vm5545, %v5537, 0
        %v5931 = vsel %vm5545, %v5538, 0
        %5933 = vmatpush.xpose.msra.mxu0 %v5595
        %5934 = vmatpush.xpose.msra.mxu0 %v5592
        %5935 = vmatpush.xpose.msra.mxu0 %v5589
        %5936 = vmatpush.xpose.msra.mxu0 %v5586
        %5937 = vmatpush.xpose.msra.mxu0 %v5583
        %5938 = vmatpush.xpose.msra.mxu0 %v5580
        %5939 = vmatpush.xpose.msra.mxu0 %v5577
        %5940 = vmatpush.xpose.msra.mxu0 %v5574
        %5941 = vmatpush.xpose.msra.mxu0 %v5571
        %5942 = vmatpush.xpose.msra.mxu0 %v5568
        %5943 = vmatpush.xpose.msra.mxu0 %v5565
        %5944 = vmatpush.xpose.msra.mxu0 %v5562
        %5945 = vmatpush.xpose.msra.mxu0 %v5559
        %5946 = vmatpush.xpose.msra.mxu0 %v5556
        %5947 = vmatpush.xpose.msra.mxu0 %v5553
        %5948 = vmatpush.xpose.msra.mxu0 %v5550
        %5949 = vmatmul.f32.gmra.mxu0 %v5547
        %v5950 = vpop.f32.mrf.mxu0
        %v5951 = vadd.f32 %v5543, %v5950
        %5952 = vdwg.mxu0
        %5953 = vmatpush.xpose.msra.mxu0 %v5643
        %5954 = vmatpush.xpose.msra.mxu0 %v5640
        %5955 = vmatpush.xpose.msra.mxu0 %v5637
        %5956 = vmatpush.xpose.msra.mxu0 %v5634
        %5957 = vmatpush.xpose.msra.mxu0 %v5631
        %5958 = vmatpush.xpose.msra.mxu0 %v5628
        %5959 = vmatpush.xpose.msra.mxu0 %v5625
        %5960 = vmatpush.xpose.msra.mxu0 %v5622
        %5961 = vmatpush.xpose.msra.mxu0 %v5619
        %5962 = vmatpush.xpose.msra.mxu0 %v5616
        %5963 = vmatpush.xpose.msra.mxu0 %v5613
        %5964 = vmatpush.xpose.msra.mxu0 %v5610
        %5965 = vmatpush.xpose.msra.mxu0 %v5607
        %5966 = vmatpush.xpose.msra.mxu0 %v5604
        %5967 = vmatpush.xpose.msra.mxu0 %v5601
        %5968 = vmatpush.xpose.msra.mxu0 %v5598
        %5969 = vmatmul.f32.gmra.mxu0 %v5547
        %v5970 = vpop.f32.mrf.mxu0
        %v5971 = vadd.f32 %v5543, %v5970
        %5972 = vdwg.mxu0
        %5973 = vmatpush.xpose.msra.mxu0 %v5691
        %5974 = vmatpush.xpose.msra.mxu0 %v5688
        %5975 = vmatpush.xpose.msra.mxu0 %v5685
        %5976 = vmatpush.xpose.msra.mxu0 %v5682
        %5977 = vmatpush.xpose.msra.mxu0 %v5679
        %5978 = vmatpush.xpose.msra.mxu0 %v5676
        %5979 = vmatpush.xpose.msra.mxu0 %v5673
        %5980 = vmatpush.xpose.msra.mxu0 %v5670
        %5981 = vmatpush.xpose.msra.mxu0 %v5667
        %5982 = vmatpush.xpose.msra.mxu0 %v5664
        %5983 = vmatpush.xpose.msra.mxu0 %v5661
        %5984 = vmatpush.xpose.msra.mxu0 %v5658
        %5985 = vmatpush.xpose.msra.mxu0 %v5655
        %5986 = vmatpush.xpose.msra.mxu0 %v5652
        %5987 = vmatpush.xpose.msra.mxu0 %v5649
        %5988 = vmatpush.xpose.msra.mxu0 %v5646
        %5989 = vmatmul.f32.gmra.mxu0 %v5547
        %v5990 = vpop.f32.mrf.mxu0
        %v5991 = vadd.f32 %v5543, %v5990
        %5992 = vdwg.mxu0
        %5993 = vmatpush.xpose.msra.mxu0 %v5739
        %5994 = vmatpush.xpose.msra.mxu0 %v5736
        %5995 = vmatpush.xpose.msra.mxu0 %v5733
        %5996 = vmatpush.xpose.msra.mxu0 %v5730
        %5997 = vmatpush.xpose.msra.mxu0 %v5727
        %5998 = vmatpush.xpose.msra.mxu0 %v5724
        %5999 = vmatpush.xpose.msra.mxu0 %v5721
        %6000 = vmatpush.xpose.msra.mxu0 %v5718
        %6001 = vmatpush.xpose.msra.mxu0 %v5715
        %6002 = vmatpush.xpose.msra.mxu0 %v5712
        %6003 = vmatpush.xpose.msra.mxu0 %v5709
        %6004 = vmatpush.xpose.msra.mxu0 %v5706
        %6005 = vmatpush.xpose.msra.mxu0 %v5703
        %6006 = vmatpush.xpose.msra.mxu0 %v5700
        %6007 = vmatpush.xpose.msra.mxu0 %v5697
        %6008 = vmatpush.xpose.msra.mxu0 %v5694
        %6009 = vmatmul.f32.gmra.mxu0 %v5547
        %v6010 = vpop.f32.mrf.mxu0
        %v6011 = vadd.f32 %v5543, %v6010
        %6012 = vdwg.mxu0
        %6013 = vmatpush.xpose.msra.mxu0 %v5787
        %6014 = vmatpush.xpose.msra.mxu0 %v5784
        %6015 = vmatpush.xpose.msra.mxu0 %v5781
        %6016 = vmatpush.xpose.msra.mxu0 %v5778
        %6017 = vmatpush.xpose.msra.mxu0 %v5775
        %6018 = vmatpush.xpose.msra.mxu0 %v5772
        %6019 = vmatpush.xpose.msra.mxu0 %v5769
        %6020 = vmatpush.xpose.msra.mxu0 %v5766
        %6021 = vmatpush.xpose.msra.mxu0 %v5763
        %6022 = vmatpush.xpose.msra.mxu0 %v5760
        %6023 = vmatpush.xpose.msra.mxu0 %v5757
        %6024 = vmatpush.xpose.msra.mxu0 %v5754
        %6025 = vmatpush.xpose.msra.mxu0 %v5751
        %6026 = vmatpush.xpose.msra.mxu0 %v5748
        %6027 = vmatpush.xpose.msra.mxu0 %v5745
        %6028 = vmatpush.xpose.msra.mxu0 %v5742
        %6029 = vmatmul.f32.gmra.mxu0 %v5547
        %v6030 = vpop.f32.mrf.mxu0
        %v6031 = vadd.f32 %v5543, %v6030
        %6032 = vdwg.mxu0
        %6033 = vmatpush.xpose.msra.mxu0 %v5835
        %6034 = vmatpush.xpose.msra.mxu0 %v5832
        %6035 = vmatpush.xpose.msra.mxu0 %v5829
        %6036 = vmatpush.xpose.msra.mxu0 %v5826
        %6037 = vmatpush.xpose.msra.mxu0 %v5823
        %6038 = vmatpush.xpose.msra.mxu0 %v5820
        %6039 = vmatpush.xpose.msra.mxu0 %v5817
        %6040 = vmatpush.xpose.msra.mxu0 %v5814
        %6041 = vmatpush.xpose.msra.mxu0 %v5811
        %6042 = vmatpush.xpose.msra.mxu0 %v5808
        %6043 = vmatpush.xpose.msra.mxu0 %v5805
        %6044 = vmatpush.xpose.msra.mxu0 %v5802
        %6045 = vmatpush.xpose.msra.mxu0 %v5799
        %6046 = vmatpush.xpose.msra.mxu0 %v5796
        %6047 = vmatpush.xpose.msra.mxu0 %v5793
        %6048 = vmatpush.xpose.msra.mxu0 %v5790
        %6049 = vmatmul.f32.gmra.mxu0 %v5547
        %v6050 = vpop.f32.mrf.mxu0
        %v6051 = vadd.f32 %v5543, %v6050
        %6052 = vdwg.mxu0
        %6053 = vmatpush.xpose.msra.mxu0 %v5883
        %6054 = vmatpush.xpose.msra.mxu0 %v5880
        %6055 = vmatpush.xpose.msra.mxu0 %v5877
        %6056 = vmatpush.xpose.msra.mxu0 %v5874
        %6057 = vmatpush.xpose.msra.mxu0 %v5871
        %6058 = vmatpush.xpose.msra.mxu0 %v5868
        %6059 = vmatpush.xpose.msra.mxu0 %v5865
        %6060 = vmatpush.xpose.msra.mxu0 %v5862
        %6061 = vmatpush.xpose.msra.mxu0 %v5859
        %6062 = vmatpush.xpose.msra.mxu0 %v5856
        %6063 = vmatpush.xpose.msra.mxu0 %v5853
        %6064 = vmatpush.xpose.msra.mxu0 %v5850
        %6065 = vmatpush.xpose.msra.mxu0 %v5847
        %6066 = vmatpush.xpose.msra.mxu0 %v5844
        %6067 = vmatpush.xpose.msra.mxu0 %v5841
        %6068 = vmatpush.xpose.msra.mxu0 %v5838
        %6069 = vmatmul.f32.gmra.mxu0 %v5547
        %v6070 = vpop.f32.mrf.mxu0
        %v6071 = vadd.f32 %v5543, %v6070
        %6072 = vdwg.mxu0
        %6073 = vmatpush.xpose.msra.mxu0 %v5931
        %6074 = vmatpush.xpose.msra.mxu0 %v5928
        %6075 = vmatpush.xpose.msra.mxu0 %v5925
        %6076 = vmatpush.xpose.msra.mxu0 %v5922
        %6077 = vmatpush.xpose.msra.mxu0 %v5919
        %6078 = vmatpush.xpose.msra.mxu0 %v5916
        %6079 = vmatpush.xpose.msra.mxu0 %v5913
        %6080 = vmatpush.xpose.msra.mxu0 %v5910
        %6081 = vmatpush.xpose.msra.mxu0 %v5907
        %6082 = vmatpush.xpose.msra.mxu0 %v5904
        %6083 = vmatpush.xpose.msra.mxu0 %v5901
        %6084 = vmatpush.xpose.msra.mxu0 %v5898
        %6085 = vmatpush.xpose.msra.mxu0 %v5895
        %6086 = vmatpush.xpose.msra.mxu0 %v5892
        %6087 = vmatpush.xpose.msra.mxu0 %v5889
        %6088 = vmatpush.xpose.msra.mxu0 %v5886
        %6089 = vmatmul.f32.gmra.mxu0 %v5547
        %v6090 = vpop.f32.mrf.mxu0
        %v6091 = vadd.f32 %v5543, %v6090
        %6092 = vdwg.mxu0
        %v6093 = vadd.f32 %v5951, %v5971
        %v6094 = vadd.f32 %v6093, %v5991
        %v6095 = vadd.f32 %v6094, %v6011
        %v6096 = vadd.f32 %v6095, %v6031
        %v6097 = vadd.f32 %v6096, %v6051
        %v6098 = vadd.f32 %v6097, %v6071
        %v6099 = vadd.f32 %v6098, %v6091
        %6100 = vadd.xlane.f32.xlu0 %v6099
        %v6101 = vpop.xlane.xlu0 %6100
        %v6102 = vrcp.pop 1024.0
        %v6103 = vmul.f32 1024.0, %v6102
        %v6104 = vsub.f32 1.0, %v6103
        %v6105 = vmul.f32 %v6102, %v6104
        %v6106 = vadd.f32 %v6102, %v6105
        %vm6107 = vweird.f32 %v6102
        %v6108 = vsel %vm6107, %v6102, %v6106
        %v6109 = vmul.f32 %v6101, %v6108
        %v6110 = vsub.f32 %v5951, %v6109
        %v6111 = vsub.f32 %v5971, %v6109
        %v6112 = vsub.f32 %v5991, %v6109
        %v6113 = vsub.f32 %v6011, %v6109
        %v6114 = vsub.f32 %v6031, %v6109
        %v6115 = vsub.f32 %v6051, %v6109
        %v6116 = vsub.f32 %v6071, %v6109
        %v6117 = vsub.f32 %v6091, %v6109
        %v6118 = vmul.f32 %v6110, %v6110
        %v6119 = vmul.f32 %v6111, %v6111
        %v6120 = vmul.f32 %v6112, %v6112
        %v6121 = vmul.f32 %v6113, %v6113
        %v6122 = vmul.f32 %v6114, %v6114
        %v6123 = vmul.f32 %v6115, %v6115
        %v6124 = vmul.f32 %v6116, %v6116
        %v6125 = vmul.f32 %v6117, %v6117
        %v6126 = vadd.f32 %v6118, %v6119
        %v6127 = vadd.f32 %v6126, %v6120
        %v6128 = vadd.f32 %v6127, %v6121
        %v6129 = vadd.f32 %v6128, %v6122
        %v6130 = vadd.f32 %v6129, %v6123
        %v6131 = vadd.f32 %v6130, %v6124
        %v6132 = vadd.f32 %v6131, %v6125
        %6133 = vadd.xlane.f32.xlu0 %v6132
        %v6134 = vpop.xlane.xlu0 %6133
        %v6135 = vmul.f32 %v6134, %v6108
        %v6136 = vld [vmem:[%s3] sm:$0xff]
        %v6137 = vadd.f32 %v6135, 1e-05
        %v6138 = vrsqrt.pop %v6137
        %v6139 = vmul.f32 %v6138, %v6137
        %v6140 = vmul.f32 %v6139, %v6138
        %v6141 = vmul.f32 0.5, %v6140
        %v6142 = vsub.f32 1.5, %v6141
        %v6143 = vmul.f32 %v6138, %v6142
        %vm6144 = vweird.f32 %v6137
        %vm6145 = vweird.f32 %v6138
        %vm6146 = vmor %vm6144, %vm6145
        %v6147 = vsel %vm6146, %v6138, %v6143
        %v6148 = vmul.f32 %v6136, %v6147
        %6150 = vset.pattern.permute.xlu0 0
        %6151 = vperm.xlu0 %6150, %v6148
        %v6152 = vpop.permute.xlu0 %6151
        %v6154 = vmul.f32 %v6110, %v6152
        %v6155 = vmul.f32 %v6111, %v6152
        %v6156 = vmul.f32 %v6112, %v6152
        %v6157 = vmul.f32 %v6113, %v6152
        %v6158 = vmul.f32 %v6114, %v6152
        %v6159 = vmul.f32 %v6115, %v6152
        %v6160 = vmul.f32 %v6116, %v6152
        %v6161 = vmul.f32 %v6117, %v6152
        %v6162 = vld [vmem:[%s4] sm:$0xff]
        %6164 = vset.pattern.permute.xlu0 0
        %6165 = vperm.xlu0 %6164, %v6162
        %v6166 = vpop.permute.xlu0 %6165
        %v6168 = vadd.f32 %v6154, %v6166
        %v6169 = vadd.f32 %v6155, %v6166
        %v6170 = vadd.f32 %v6156, %v6166
        %v6171 = vadd.f32 %v6157, %v6166
        %v6172 = vadd.f32 %v6158, %v6166
        %v6173 = vadd.f32 %v6159, %v6166
        %v6174 = vadd.f32 %v6160, %v6166
        %v6175 = vadd.f32 %v6161, %v6166
        %6176 = vst [vmem:[%s217] sm:$0xff] %v6168
        %6177 = vst [vmem:[%s217 + $0x8] sm:$0xff] %v6169
        %6178 = vst [vmem:[%s217 + $0x10] sm:$0xff] %v6170
        %6179 = vst [vmem:[%s217 + $0x18] sm:$0xff] %v6171
        %6180 = vst [vmem:[%s217 + $0x20] sm:$0xff] %v6172
        %6181 = vst [vmem:[%s217 + $0x28] sm:$0xff] %v6173
        %6182 = vst [vmem:[%s217 + $0x30] sm:$0xff] %v6174
        %6183 = vst [vmem:[%s217 + $0x38] sm:$0xff] %v6175
        %s6184 = sand.u32 %s137, 1
        %s6185 = scalar_lea.sflag [#allocation4], %s6184
        %s6186 = sand.u32 %s137, 1
        %s6187 = smul.addr %s6186, 64
        %s6188 = scalar_lea.vmem [#allocation3], %s6187
        // Predicated region
        $region41: #{tpu_custom_call.1} parent=39 // pred_check
          %p6189 = pneg %p147
        $region42: #{tpu_custom_call.1} parent=39 // pred_check_branch
          %6191 = sbr.rel (%p6189) target = $region44
        $region43: #{tpu_custom_call.1} parent=39 // pred_region
          %6193 = vsyncadd %s6185, 0
          %s6194 = smul.addr %s19, 8
          %s6195 = smul.addr %s6194, 8
          %s6196 = scalar_lea.hbm %s5, %s6195
          %s6198 = sshll.u32 %s6188, 4
          %s6199 = int_to_ptr.vmem [resolvable:$true] %s6198
          %s6200 = sshll.u32 %s6196, 4
          %s6201 = int_to_ptr.hbm [resolvable:$true] %s6200
          %6203 = dma.vmem_to_hbm [thread:$0]  %s6199, 1024, %s6201, %s6185
        $region44: #{tpu_custom_call.1} parent=39 // pred_fallthru
          _
      $region40: #{tpu_custom_call.1} parent=5 // pred_fallthru
        _
      %p6204 = scmp.le.s32.totalorder 2, %s14
      // Predicated region
      $region45: #{tpu_custom_call.1} parent=5 // pred_check
        %p6205 = pneg %p6204
      $region46: #{tpu_custom_call.1} parent=5 // pred_check_branch
        %6207 = sbr.rel (%p6205) target = $region48
      $region47: #{tpu_custom_call.1} parent=5 // pred_region
        %s6208 = ssub.s32 %s14, 2
        // Predicated region
        $region49: #{tpu_custom_call.1} parent=47 // pred_check
          %p6209 = pneg %p153
        $region50: #{tpu_custom_call.1} parent=47 // pred_check_branch
          %6211 = sbr.rel (%p6209) target = $region52
        $region51: #{tpu_custom_call.1} parent=47 // pred_region
          %s6212 = sand.u32 %s138, 1
          %s6213 = scalar_lea.sflag [#allocation4], %s6212
          %s6214 = sand.u32 %s138, 1
          %s6215 = smul.addr %s6214, 64
          %s6216 = scalar_lea.vmem [#allocation3], %s6215
          %6218 = dma.done %s6213, 1024
        $region52: #{tpu_custom_call.1} parent=47 // pred_fallthru
          _
      $region48: #{tpu_custom_call.1} parent=5 // pred_fallthru
        _
    $region6: #{tpu_custom_call.1} parent=1 // loop_footer
      %s18 = sadd.s32 1, %s14
    $region7: #{tpu_custom_call.1} parent=1 // loop_footer_branch
      %13 = sbr.rel target = $region3
    $region8: #{tpu_custom_call.1} parent=1 // loop_exit
      _
    %6219 = vsyncpa [#allocation4], 1
    %s6220 = scalar_lea.sflag [#allocation4], 1
    %6221 = vsyncpa %s6220, 1

</llo_original>
